<compile_context>
chip_gen: v7x
topology: tpu7x:2x2x1
jax: 0.10.0
libtpu: 0.0.40
codegen_flags: <defaults>
</compile_context>

<pallas_src>
import functools

import numpy as np
import jax
import jax.numpy as jnp
from jax.experimental import pallas as pl
from jax.experimental.pallas import tpu as pltpu

# ----------------------------- config (small) -----------------------------
VOCAB = 30
VOCAB_PAD = 32
HIDDEN = 32
NUM_HEADS = 2
HEAD_DIM = HIDDEN // NUM_HEADS
INTERMEDIATE = 64
NUM_LAYERS = 2
MAX_POS = 16
NUM_CLASSES = 3
LN_EPS = 1e-12
LANE = 128           # lane-dense padded width for the classifier output

BATCH = 2
SEQ = 8


# --------------------------- packed-blob layout ----------------------------
def _assign(entries, align):
    slots, off = {}, 0
    for name, r, c in entries:
        slots[name] = (off, r, c)
        off += r
    off = ((off + align - 1) // align) * align
    return slots, off


def _layout():
    wentries = []
    for l in range(NUM_LAYERS):
        for h in range(NUM_HEADS):
            for nm in ("wq", "wk", "wv"):
                wentries.append((f"{nm}_{l}_{h}", HIDDEN, HEAD_DIM))
        wentries += [(f"wo_{l}", HIDDEN, HIDDEN),
                     (f"wi_{l}", HIDDEN, INTERMEDIATE),
                     (f"wo2_{l}", INTERMEDIATE, HIDDEN)]
    wentries += [("pool_w", HIDDEN, HIDDEN), ("fc_w", HIDDEN, LANE)]

    pentries = [("word", VOCAB_PAD, HIDDEN), ("pos", MAX_POS, HIDDEN),
                ("type", 8, HIDDEN),
                ("emb_ln_g", 1, HIDDEN), ("emb_ln_b", 1, HIDDEN)]
    for l in range(NUM_LAYERS):
        for h in range(NUM_HEADS):
            for nm in ("bq", "bk", "bv"):
                pentries.append((f"{nm}_{l}_{h}", 1, HEAD_DIM))
        pentries += [(f"bo_{l}", 1, HIDDEN),
                     (f"ln1_g_{l}", 1, HIDDEN), (f"ln1_b_{l}", 1, HIDDEN),
                     (f"bi_{l}", 1, INTERMEDIATE),
                     (f"bo2_{l}", 1, HIDDEN),
                     (f"ln2_g_{l}", 1, HIDDEN), (f"ln2_b_{l}", 1, HIDDEN)]
    pentries += [("pool_b", 1, HIDDEN), ("fc_b", 1, LANE)]

    wslots, wrows = _assign(wentries, 16)   # bf16 sublane packing
    pslots, prows = _assign(pentries, 8)    # f32 sublane tile
    return wslots, wrows, pslots, prows


_WSLOTS, _WROWS, _PSLOTS, _PROWS = _layout()


# ----------------------------- kernel helpers ------------------------------
def _layernorm(h, g, b, eps=LN_EPS):
    mu = jnp.mean(h, axis=-1, keepdims=True)
    var = jnp.mean((h - mu) ** 2, axis=-1, keepdims=True)
    return (h - mu) * jax.lax.rsqrt(var + eps) * g + b


def _gelu(y):
    # TODO(synk): PyTorch nn.GELU()/HF BERT use the erf form; tanh approx
    # differs by <1e-3 at these magnitudes.
    return 0.5 * y * (1.0 + jnp.tanh(0.7978845608028654 * (y + 0.044715 * y * y * y)))


# ------------------------------ fused kernel -------------------------------
def _fused_kernel(iom_ref, w_ref, p_ref, out_ref, *,
                  batch, seq, num_heads, head_dim, num_layers,
                  vocab_pad, wslots, pslots):
    H = num_heads * head_dim
    BS = batch * seq
    scale = 1.0 / (head_dim ** 0.5)
    f32 = jnp.float32
    bf16 = jnp.bfloat16

    def w(name):                       # bf16 weight view
        off, r, c = wslots[name]
        return w_ref[off:off + r, 0:c]

    def pv(name):                      # f32 param view
        off, r, c = pslots[name]
        return p_ref[off:off + r, 0:c]

    # ---- embeddings: one-hot gather (exact 0/1 matmul) + pos + type -------
    ids = iom_ref[0:BS, 0:1]                                        # (BS, 1)
    vocab_iota = jax.lax.broadcasted_iota(jnp.int32, (1, vocab_pad), 1).astype(f32)
    one_hot = jnp.where(ids == vocab_iota, 1.0, 0.0)                # (BS, V)
    emb = jnp.dot(one_hot, pv("word"), preferred_element_type=f32)  # (BS, H)

    off_pos = pslots["pos"][0]
    pos = p_ref[off_pos:off_pos + seq, 0:H]                         # (S, H)
    off_typ = pslots["type"][0]
    typ = p_ref[off_typ:off_typ + 1, 0:H]                           # (1, H)
    emb = emb + jnp.concatenate([pos] * batch, axis=0) + typ
    x = _layernorm(emb, pv("emb_ln_g"), pv("emb_ln_b"))             # (BS, H) f32

    # ---- additive mask bias, hoisted out of the layer loop -----------------
    mask = iom_ref[BS:BS + batch, 0:seq]                            # (B, S)
    bias = (mask - 1.0) * 10000.0
    bias_cat = jnp.concatenate(
        [jnp.broadcast_to(bias[b:b + 1, :], (num_heads * seq, seq))
         for b in range(batch)], axis=0)                            # (B*nH*S, S)

    # ---- encoder layers -----------------------------------------------------
    for l in range(num_layers):
        xb = x.astype(bf16)

        # per-head Q/K/V projections: results start at lane 0, no extraction
        q_h, k_h, v_h = [], [], []
        for h in range(num_heads):
            q = jnp.dot(xb, w(f"wq_{l}_{h}"), preferred_element_type=f32) + pv(f"bq_{l}_{h}")
            k = jnp.dot(xb, w(f"wk_{l}_{h}"), preferred_element_type=f32) + pv(f"bk_{l}_{h}")
            v = jnp.dot(xb, w(f"wv_{l}_{h}"), preferred_element_type=f32) + pv(f"bv_{l}_{h}")
            q_h.append(q.astype(bf16))
            k_h.append(k.astype(bf16))
            v_h.append(v.astype(bf16))

        # all (batch, head) score blocks, then ONE batched softmax
        blocks = []
        for b in range(batch):
            r0 = b * seq
            for h in range(num_heads):
                s = jax.lax.dot_general(
                    q_h[h][r0:r0 + seq, :], k_h[h][r0:r0 + seq, :],
                    (((1,), (1,)), ((), ())), preferred_element_type=f32)   # (S,S)
                blocks.append(s)
        s_cat = jnp.concatenate(blocks, axis=0) * scale + bias_cat          # (B*nH*S, S)
        s_cat = s_cat - jnp.max(s_cat, axis=-1, keepdims=True)
        e_cat = jnp.exp(s_cat)
        p_cat = e_cat * pl.reciprocal(jnp.sum(e_cat, axis=-1, keepdims=True),
                                      approx=True)
        p_cat = p_cat.astype(bf16)

        # context + output projection folded into per-head sum
        wo_full = w(f"wo_{l}")                                              # (H, H) bf16
        attn_rows = []
        for b in range(batch):
            acc = pv(f"bo_{l}")                                             # (1, H) f32
            for h in range(num_heads):
                r = (b * num_heads + h) * seq
                ctx = jnp.dot(p_cat[r:r + seq, :],
                              v_h[h][b * seq:b * seq + seq, :],
                              preferred_element_type=f32)                   # (S, Dh)
                acc = acc + jnp.dot(ctx.astype(bf16),
                                    wo_full[h * head_dim:(h + 1) * head_dim, :],
                                    preferred_element_type=f32)
            attn_rows.append(acc)
        attn = jnp.concatenate(attn_rows, axis=0)                           # (BS, H)
        x = _layernorm(attn + x, pv(f"ln1_g_{l}"), pv(f"ln1_b_{l}"))

        # feed-forward (GELU kept in f32)
        ff = jnp.dot(x.astype(bf16), w(f"wi_{l}"),
                     preferred_element_type=f32) + pv(f"bi_{l}")
        ff = _gelu(ff)
        ff = jnp.dot(ff.astype(bf16), w(f"wo2_{l}"),
                     preferred_element_type=f32) + pv(f"bo2_{l}")
        x = _layernorm(ff + x, pv(f"ln2_g_{l}"), pv(f"ln2_b_{l}"))

    # ---- BERT pooler on the [CLS] row of every batch element ---------------
    cls = jnp.concatenate([x[b * seq:b * seq + 1, :] for b in range(batch)],
                          axis=0)                                           # (B, H)
    pooled = jnp.tanh(jnp.dot(cls.astype(bf16), w("pool_w"),
                              preferred_element_type=f32) + pv("pool_b"))

    # dropout(0.1) is identity at inference (PyTorch eval semantics)
    # TODO(synk): training-mode dropout (pltpu.prng_*) not implemented.

    # classifier head; fc weights pre-padded to 128 lanes -> lane-dense store
    logits = jnp.dot(pooled.astype(bf16), w("fc_w"),
                     preferred_element_type=f32) + pv("fc_b")               # (B, 128)
    out_ref[...] = logits.astype(out_ref.dtype)


# ------------------------------ parameter init -----------------------------
def init_params(key):
    std = 0.02
    ks = iter(jax.random.split(key, 64))

    def nrm(shape):
        return (std * jax.random.normal(next(ks), shape)).astype(jnp.float32)

    params = {
        "word_emb": nrm((VOCAB, HIDDEN)),
        "pos_emb": nrm((MAX_POS, HIDDEN)),
        "type_emb": nrm((2, HIDDEN)),
        "emb_ln_g": jnp.ones((HIDDEN,), jnp.float32),
        "emb_ln_b": jnp.zeros((HIDDEN,), jnp.float32),
        "layers": [],
        "pool_w": nrm((HIDDEN, HIDDEN)),
        "pool_b": jnp.zeros((HIDDEN,), jnp.float32),
        "fc_w": nrm((HIDDEN, NUM_CLASSES)),
        "fc_b": jnp.zeros((NUM_CLASSES,), jnp.float32),
    }
    for _ in range(NUM_LAYERS):
        params["layers"].append({
            "wq": nrm((HIDDEN, HIDDEN)), "bq": jnp.zeros((HIDDEN,), jnp.float32),
            "wk": nrm((HIDDEN, HIDDEN)), "bk": jnp.zeros((HIDDEN,), jnp.float32),
            "wv": nrm((HIDDEN, HIDDEN)), "bv": jnp.zeros((HIDDEN,), jnp.float32),
            "wo": nrm((HIDDEN, HIDDEN)), "bo": jnp.zeros((HIDDEN,), jnp.float32),
            "ln1_g": jnp.ones((HIDDEN,), jnp.float32),
            "ln1_b": jnp.zeros((HIDDEN,), jnp.float32),
            "wi": nrm((HIDDEN, INTERMEDIATE)),
            "bi": jnp.zeros((INTERMEDIATE,), jnp.float32),
            "wo2": nrm((INTERMEDIATE, HIDDEN)),
            "bo2": jnp.zeros((HIDDEN,), jnp.float32),
            "ln2_g": jnp.ones((HIDDEN,), jnp.float32),
            "ln2_b": jnp.zeros((HIDDEN,), jnp.float32),
        })
    return params


# ----------------------- one-time weight pre-packing -----------------------
def prepack(params):
    """Pack all weights into (bf16 matmul blob, f32 param blob). Run once."""
    wb = np.zeros((_WROWS, LANE), np.float32)
    pb = np.zeros((_PROWS, LANE), np.float32)

    def wput(name, arr):
        off, _, _ = _WSLOTS[name]
        a = np.asarray(arr, np.float32)
        wb[off:off + a.shape[0], :a.shape[1]] = a

    def vput(name, vec):
        off, _, _ = _PSLOTS[name]
        v = np.asarray(vec, np.float32).reshape(-1)
        pb[off, :v.size] = v

    # embedding tables (word padded to VOCAB_PAD rows)
    pb[_PSLOTS["word"][0]:_PSLOTS["word"][0] + VOCAB, :HIDDEN] = np.asarray(params["word_emb"])
    pb[_PSLOTS["pos"][0]:_PSLOTS["pos"][0] + MAX_POS, :HIDDEN] = np.asarray(params["pos_emb"])
    pb[_PSLOTS["type"][0], :HIDDEN] = np.asarray(params["type_emb"][0])
    vput("emb_ln_g", params["emb_ln_g"])
    vput("emb_ln_b", params["emb_ln_b"])

    for l, lyr in enumerate(params["layers"]):
        for h in range(NUM_HEADS):
            c0 = h * HEAD_DIM
            wput(f"wq_{l}_{h}", lyr["wq"][:, c0:c0 + HEAD_DIM])
            wput(f"wk_{l}_{h}", lyr["wk"][:, c0:c0 + HEAD_DIM])
            wput(f"wv_{l}_{h}", lyr["wv"][:, c0:c0 + HEAD_DIM])
            vput(f"bq_{l}_{h}", lyr["bq"][c0:c0 + HEAD_DIM])
            vput(f"bk_{l}_{h}", lyr["bk"][c0:c0 + HEAD_DIM])
            vput(f"bv_{l}_{h}", lyr["bv"][c0:c0 + HEAD_DIM])
        wput(f"wo_{l}", lyr["wo"])
        wput(f"wi_{l}", lyr["wi"])
        wput(f"wo2_{l}", lyr["wo2"])
        vput(f"bo_{l}", lyr["bo"])
        vput(f"ln1_g_{l}", lyr["ln1_g"])
        vput(f"ln1_b_{l}", lyr["ln1_b"])
        vput(f"bi_{l}", lyr["bi"])
        vput(f"bo2_{l}", lyr["bo2"])
        vput(f"ln2_g_{l}", lyr["ln2_g"])
        vput(f"ln2_b_{l}", lyr["ln2_b"])

    wput("pool_w", params["pool_w"])
    vput("pool_b", params["pool_b"])
    wput("fc_w", params["fc_w"])          # (H, 3) -> cols 0:3 of 128-lane slab
    vput("fc_b", params["fc_b"])

    return jnp.asarray(wb, jnp.bfloat16), jnp.asarray(pb, jnp.float32)


# --------------------------------- forward ---------------------------------
@jax.jit
def forward(wblob, pblob, input_ids, attention_mask):
    """Equivalent of REModelWithAttention.forward (inference mode)."""
    B, S = input_ids.shape

    # tiny packed ids+mask buffer: rows 0:B*S col0 = token id, rows B*S: = mask
    ids_col = input_ids.reshape(B * S, 1).astype(jnp.float32)
    ids_block = jnp.pad(ids_col, ((0, 0), (0, S - 1)))          # (B*S, S)
    mask_block = attention_mask.astype(jnp.float32)             # (B, S)
    iom = jnp.concatenate([ids_block, mask_block], axis=0)      # (B*S+B, S)

    kernel = functools.partial(
        _fused_kernel, batch=B, seq=S, num_heads=NUM_HEADS, head_dim=HEAD_DIM,
        num_layers=NUM_LAYERS, vocab_pad=VOCAB_PAD,
        wslots=_WSLOTS, pslots=_PSLOTS)

    vmem = pl.BlockSpec(memory_space=pltpu.MemorySpace.VMEM)
    out = pl.pallas_call(
        kernel,
        out_shape=jax.ShapeDtypeStruct((B, LANE), jnp.float32),
        in_specs=[vmem, vmem, vmem],
        out_specs=vmem,
    )(iom, wblob, pblob)

    return out[:, :NUM_CLASSES]                                 # (B, num_classes)


# ----------------------------------- main -----------------------------------
if __name__ == "__main__":
    key = jax.random.PRNGKey(0)
    kp, kid = jax.random.split(key)
    params = init_params(kp)
    wblob, pblob = prepack(params)        # one-time packing, outside jit

    input_ids = jax.random.randint(kid, (BATCH, SEQ), 0, VOCAB, dtype=jnp.int32)
    attention_mask = jnp.ones((BATCH, SEQ), jnp.int32)
    attention_mask = attention_mask.at[1, 6:].set(0)  # pad last 2 tokens of sample 1

    logits = forward(wblob, pblob, input_ids, attention_mask)
    logits = jax.block_until_ready(logits)
    assert logits.shape == (BATCH, NUM_CLASSES)
    assert bool(jnp.all(jnp.isfinite(logits)))
    print("KERNEL_OK")
</pallas_src>

<mosaic_0001>
module attributes {stable_mosaic.version = 11 : i64} {
  func.func @_fused_kernel(%arg0: memref<18x8xf32, #tpu.memory_space<vmem>>, %arg1: memref<704x128xbf16, #tpu.memory_space<vmem>>, %arg2: memref<88x128xf32, #tpu.memory_space<vmem>>, %arg3: memref<2x128xf32, #tpu.memory_space<vmem>>) attributes {dimension_semantics = [], scalar_prefetch = 0 : i64, scratch_operands = 0 : i64, tpu.core_type = #tpu.core_type<tc>} {
    %c0 = arith.constant 0 : index
    %c0_0 = arith.constant 0 : index
    %0 = vector.load %arg0[%c0, %c0_0] : memref<18x8xf32, #tpu.memory_space<vmem>>, vector<16x1xf32>
    %1 = tpu.iota {dimensions = array<i32: 1>} : vector<1x32xi32>
    %2 = arith.sitofp %1 : vector<1x32xi32> to vector<1x32xf32>
    %3 = vector.broadcast %0 : vector<16x1xf32> to vector<16x32xf32>
    %4 = vector.broadcast %2 : vector<1x32xf32> to vector<16x32xf32>
    %5 = arith.cmpf oeq, %3, %4 : vector<16x32xf32>
    %cst = arith.constant 1.000000e+00 : f32
    %cst_1 = arith.constant 0.000000e+00 : f32
    %6 = vector.broadcast %cst : f32 to vector<16x32xf32>
    %7 = vector.broadcast %cst_1 : f32 to vector<16x32xf32>
    %8 = arith.select %5, %6, %7 : vector<16x32xi1>, vector<16x32xf32>
    %c0_2 = arith.constant 0 : index
    %c0_3 = arith.constant 0 : index
    %9 = vector.load %arg2[%c0_2, %c0_3] : memref<88x128xf32, #tpu.memory_space<vmem>>, vector<32x32xf32>
    %cst_4 = arith.constant dense<0.000000e+00> : vector<16x32xf32>
    %10 = tpu.matmul %8, %9, %cst_4 {dimension_numbers = #tpu.dot_dimension_numbers<[1], [0], [0], [1], [0, 0, 1, 1], [], []>} : vector<16x32xf32>, vector<32x32xf32>, vector<16x32xf32> -> vector<16x32xf32>
    %c32 = arith.constant 32 : index
    %c0_5 = arith.constant 0 : index
    %11 = vector.load %arg2[%c32, %c0_5] : memref<88x128xf32, #tpu.memory_space<vmem>>, vector<8x32xf32>
    %c48 = arith.constant 48 : index
    %c0_6 = arith.constant 0 : index
    %12 = vector.load %arg2[%c48, %c0_6] : memref<88x128xf32, #tpu.memory_space<vmem>>, vector<1x32xf32>
    %13 = tpu.concatenate %11, %11 in 0 : vector<8x32xf32>, vector<8x32xf32> -> vector<16x32xf32>
    %14 = arith.addf %10, %13 : vector<16x32xf32>
    %15 = vector.broadcast %12 : vector<1x32xf32> to vector<16x32xf32>
    %16 = arith.addf %14, %15 : vector<16x32xf32>
    %c56 = arith.constant 56 : index
    %c0_7 = arith.constant 0 : index
    %17 = vector.load %arg2[%c56, %c0_7] : memref<88x128xf32, #tpu.memory_space<vmem>>, vector<1x32xf32>
    %c57 = arith.constant 57 : index
    %c0_8 = arith.constant 0 : index
    %18 = vector.load %arg2[%c57, %c0_8] : memref<88x128xf32, #tpu.memory_space<vmem>>, vector<1x32xf32>
    %cst_9 = arith.constant dense<0.000000e+00> : vector<16xf32>
    %19 = vector.multi_reduction <add>, %16, %cst_9 [1] : vector<16x32xf32> to vector<16xf32>
    %20 = vector.shape_cast %19 : vector<16xf32> to vector<16x1xf32>
    %cst_10 = arith.constant 3.200000e+01 : f32
    %21 = vector.broadcast %cst_10 : f32 to vector<16x1xf32>
    %22 = arith.divf %20, %21 : vector<16x1xf32>
    %23 = vector.broadcast %22 : vector<16x1xf32> to vector<16x32xf32>
    %24 = arith.subf %16, %23 : vector<16x32xf32>
    %25 = arith.mulf %24, %24 : vector<16x32xf32>
    %cst_11 = arith.constant dense<0.000000e+00> : vector<16xf32>
    %26 = vector.multi_reduction <add>, %25, %cst_11 [1] : vector<16x32xf32> to vector<16xf32>
    %27 = vector.shape_cast %26 : vector<16xf32> to vector<16x1xf32>
    %cst_12 = arith.constant 3.200000e+01 : f32
    %28 = vector.broadcast %cst_12 : f32 to vector<16x1xf32>
    %29 = arith.divf %27, %28 : vector<16x1xf32>
    %30 = vector.broadcast %22 : vector<16x1xf32> to vector<16x32xf32>
    %31 = arith.subf %16, %30 : vector<16x32xf32>
    %cst_13 = arith.constant 9.99999996E-13 : f32
    %32 = vector.broadcast %cst_13 : f32 to vector<16x1xf32>
    %33 = arith.addf %29, %32 : vector<16x1xf32>
    %34 = math.rsqrt %33 : vector<16x1xf32>
    %35 = vector.broadcast %34 : vector<16x1xf32> to vector<16x32xf32>
    %36 = arith.mulf %31, %35 : vector<16x32xf32>
    %37 = vector.broadcast %17 : vector<1x32xf32> to vector<16x32xf32>
    %38 = arith.mulf %36, %37 : vector<16x32xf32>
    %39 = vector.broadcast %18 : vector<1x32xf32> to vector<16x32xf32>
    %40 = arith.addf %38, %39 : vector<16x32xf32>
    %c16 = arith.constant 16 : index
    %c0_14 = arith.constant 0 : index
    %41 = vector.load %arg0[%c16, %c0_14] : memref<18x8xf32, #tpu.memory_space<vmem>>, vector<2x8xf32>
    %cst_15 = arith.constant 1.000000e+00 : f32
    %42 = vector.broadcast %cst_15 : f32 to vector<2x8xf32>
    %43 = arith.subf %41, %42 : vector<2x8xf32>
    %cst_16 = arith.constant 1.000000e+04 : f32
    %44 = vector.broadcast %cst_16 : f32 to vector<2x8xf32>
    %45 = arith.mulf %43, %44 : vector<2x8xf32>
    %46 = vector.extract_strided_slice %45 {offsets = [0, 0], sizes = [1, 8], strides = [1, 1]} : vector<2x8xf32> to vector<1x8xf32>
    %47 = vector.shape_cast %46 : vector<1x8xf32> to vector<1x8xf32>
    %48 = vector.broadcast %47 : vector<1x8xf32> to vector<16x8xf32>
    %49 = vector.extract_strided_slice %45 {offsets = [1, 0], sizes = [1, 8], strides = [1, 1]} : vector<2x8xf32> to vector<1x8xf32>
    %50 = vector.shape_cast %49 : vector<1x8xf32> to vector<1x8xf32>
    %51 = vector.broadcast %50 : vector<1x8xf32> to vector<16x8xf32>
    %52 = tpu.concatenate %48, %51 in 0 : vector<16x8xf32>, vector<16x8xf32> -> vector<32x8xf32>
    %53 = arith.truncf %40 : vector<16x32xf32> to vector<16x32xbf16>
    %c0_17 = arith.constant 0 : index
    %c0_18 = arith.constant 0 : index
    %54 = vector.load %arg1[%c0_17, %c0_18] : memref<704x128xbf16, #tpu.memory_space<vmem>>, vector<32x16xbf16>
    %cst_19 = arith.constant dense<0.000000e+00> : vector<16x16xf32>
    %55 = tpu.matmul %53, %54, %cst_19 {dimension_numbers = #tpu.dot_dimension_numbers<[1], [0], [0], [1], [0, 0, 1, 1], [], []>} : vector<16x32xbf16>, vector<32x16xbf16>, vector<16x16xf32> -> vector<16x16xf32>
    %c58 = arith.constant 58 : index
    %c0_20 = arith.constant 0 : index
    %56 = vector.load %arg2[%c58, %c0_20] : memref<88x128xf32, #tpu.memory_space<vmem>>, vector<1x16xf32>
    %57 = vector.broadcast %56 : vector<1x16xf32> to vector<16x16xf32>
    %58 = arith.addf %55, %57 : vector<16x16xf32>
    %c32_21 = arith.constant 32 : index
    %c0_22 = arith.constant 0 : index
    %59 = vector.load %arg1[%c32_21, %c0_22] : memref<704x128xbf16, #tpu.memory_space<vmem>>, vector<32x16xbf16>
    %cst_23 = arith.constant dense<0.000000e+00> : vector<16x16xf32>
    %60 = tpu.matmul %53, %59, %cst_23 {dimension_numbers = #tpu.dot_dimension_numbers<[1], [0], [0], [1], [0, 0, 1, 1], [], []>} : vector<16x32xbf16>, vector<32x16xbf16>, vector<16x16xf32> -> vector<16x16xf32>
    %c59 = arith.constant 59 : index
    %c0_24 = arith.constant 0 : index
    %61 = vector.load %arg2[%c59, %c0_24] : memref<88x128xf32, #tpu.memory_space<vmem>>, vector<1x16xf32>
    %62 = vector.broadcast %61 : vector<1x16xf32> to vector<16x16xf32>
    %63 = arith.addf %60, %62 : vector<16x16xf32>
    %c64 = arith.constant 64 : index
    %c0_25 = arith.constant 0 : index
    %64 = vector.load %arg1[%c64, %c0_25] : memref<704x128xbf16, #tpu.memory_space<vmem>>, vector<32x16xbf16>
    %cst_26 = arith.constant dense<0.000000e+00> : vector<16x16xf32>
    %65 = tpu.matmul %53, %64, %cst_26 {dimension_numbers = #tpu.dot_dimension_numbers<[1], [0], [0], [1], [0, 0, 1, 1], [], []>} : vector<16x32xbf16>, vector<32x16xbf16>, vector<16x16xf32> -> vector<16x16xf32>
    %c60 = arith.constant 60 : index
    %c0_27 = arith.constant 0 : index
    %66 = vector.load %arg2[%c60, %c0_27] : memref<88x128xf32, #tpu.memory_space<vmem>>, vector<1x16xf32>
    %67 = vector.broadcast %66 : vector<1x16xf32> to vector<16x16xf32>
    %68 = arith.addf %65, %67 : vector<16x16xf32>
    %69 = arith.truncf %58 : vector<16x16xf32> to vector<16x16xbf16>
    %70 = arith.truncf %63 : vector<16x16xf32> to vector<16x16xbf16>
    %71 = arith.truncf %68 : vector<16x16xf32> to vector<16x16xbf16>
    %c96 = arith.constant 96 : index
    %c0_28 = arith.constant 0 : index
    %72 = vector.load %arg1[%c96, %c0_28] : memref<704x128xbf16, #tpu.memory_space<vmem>>, vector<32x16xbf16>
    %cst_29 = arith.constant dense<0.000000e+00> : vector<16x16xf32>
    %73 = tpu.matmul %53, %72, %cst_29 {dimension_numbers = #tpu.dot_dimension_numbers<[1], [0], [0], [1], [0, 0, 1, 1], [], []>} : vector<16x32xbf16>, vector<32x16xbf16>, vector<16x16xf32> -> vector<16x16xf32>
    %c61 = arith.constant 61 : index
    %c0_30 = arith.constant 0 : index
    %74 = vector.load %arg2[%c61, %c0_30] : memref<88x128xf32, #tpu.memory_space<vmem>>, vector<1x16xf32>
    %75 = vector.broadcast %74 : vector<1x16xf32> to vector<16x16xf32>
    %76 = arith.addf %73, %75 : vector<16x16xf32>
    %c128 = arith.constant 128 : index
    %c0_31 = arith.constant 0 : index
    %77 = vector.load %arg1[%c128, %c0_31] : memref<704x128xbf16, #tpu.memory_space<vmem>>, vector<32x16xbf16>
    %cst_32 = arith.constant dense<0.000000e+00> : vector<16x16xf32>
    %78 = tpu.matmul %53, %77, %cst_32 {dimension_numbers = #tpu.dot_dimension_numbers<[1], [0], [0], [1], [0, 0, 1, 1], [], []>} : vector<16x32xbf16>, vector<32x16xbf16>, vector<16x16xf32> -> vector<16x16xf32>
    %c62 = arith.constant 62 : index
    %c0_33 = arith.constant 0 : index
    %79 = vector.load %arg2[%c62, %c0_33] : memref<88x128xf32, #tpu.memory_space<vmem>>, vector<1x16xf32>
    %80 = vector.broadcast %79 : vector<1x16xf32> to vector<16x16xf32>
    %81 = arith.addf %78, %80 : vector<16x16xf32>
    %c160 = arith.constant 160 : index
    %c0_34 = arith.constant 0 : index
    %82 = vector.load %arg1[%c160, %c0_34] : memref<704x128xbf16, #tpu.memory_space<vmem>>, vector<32x16xbf16>
    %cst_35 = arith.constant dense<0.000000e+00> : vector<16x16xf32>
    %83 = tpu.matmul %53, %82, %cst_35 {dimension_numbers = #tpu.dot_dimension_numbers<[1], [0], [0], [1], [0, 0, 1, 1], [], []>} : vector<16x32xbf16>, vector<32x16xbf16>, vector<16x16xf32> -> vector<16x16xf32>
    %c63 = arith.constant 63 : index
    %c0_36 = arith.constant 0 : index
    %84 = vector.load %arg2[%c63, %c0_36] : memref<88x128xf32, #tpu.memory_space<vmem>>, vector<1x16xf32>
    %85 = vector.broadcast %84 : vector<1x16xf32> to vector<16x16xf32>
    %86 = arith.addf %83, %85 : vector<16x16xf32>
    %87 = arith.truncf %76 : vector<16x16xf32> to vector<16x16xbf16>
    %88 = arith.truncf %81 : vector<16x16xf32> to vector<16x16xbf16>
    %89 = arith.truncf %86 : vector<16x16xf32> to vector<16x16xbf16>
    %90 = vector.extract_strided_slice %69 {offsets = [0, 0], sizes = [8, 16], strides = [1, 1]} : vector<16x16xbf16> to vector<8x16xbf16>
    %91 = vector.extract_strided_slice %70 {offsets = [0, 0], sizes = [8, 16], strides = [1, 1]} : vector<16x16xbf16> to vector<8x16xbf16>
    %cst_37 = arith.constant dense<0.000000e+00> : vector<8x8xf32>
    %92 = tpu.matmul %90, %91, %cst_37 {dimension_numbers = #tpu.dot_dimension_numbers<[1], [1], [0], [0], [0, 0, 1, 0], [], []>} : vector<8x16xbf16>, vector<8x16xbf16>, vector<8x8xf32> -> vector<8x8xf32>
    %93 = vector.extract_strided_slice %87 {offsets = [0, 0], sizes = [8, 16], strides = [1, 1]} : vector<16x16xbf16> to vector<8x16xbf16>
    %94 = vector.extract_strided_slice %88 {offsets = [0, 0], sizes = [8, 16], strides = [1, 1]} : vector<16x16xbf16> to vector<8x16xbf16>
    %cst_38 = arith.constant dense<0.000000e+00> : vector<8x8xf32>
    %95 = tpu.matmul %93, %94, %cst_38 {dimension_numbers = #tpu.dot_dimension_numbers<[1], [1], [0], [0], [0, 0, 1, 0], [], []>} : vector<8x16xbf16>, vector<8x16xbf16>, vector<8x8xf32> -> vector<8x8xf32>
    %96 = vector.extract_strided_slice %69 {offsets = [8, 0], sizes = [8, 16], strides = [1, 1]} : vector<16x16xbf16> to vector<8x16xbf16>
    %97 = vector.extract_strided_slice %70 {offsets = [8, 0], sizes = [8, 16], strides = [1, 1]} : vector<16x16xbf16> to vector<8x16xbf16>
    %cst_39 = arith.constant dense<0.000000e+00> : vector<8x8xf32>
    %98 = tpu.matmul %96, %97, %cst_39 {dimension_numbers = #tpu.dot_dimension_numbers<[1], [1], [0], [0], [0, 0, 1, 0], [], []>} : vector<8x16xbf16>, vector<8x16xbf16>, vector<8x8xf32> -> vector<8x8xf32>
    %99 = vector.extract_strided_slice %87 {offsets = [8, 0], sizes = [8, 16], strides = [1, 1]} : vector<16x16xbf16> to vector<8x16xbf16>
    %100 = vector.extract_strided_slice %88 {offsets = [8, 0], sizes = [8, 16], strides = [1, 1]} : vector<16x16xbf16> to vector<8x16xbf16>
    %cst_40 = arith.constant dense<0.000000e+00> : vector<8x8xf32>
    %101 = tpu.matmul %99, %100, %cst_40 {dimension_numbers = #tpu.dot_dimension_numbers<[1], [1], [0], [0], [0, 0, 1, 0], [], []>} : vector<8x16xbf16>, vector<8x16xbf16>, vector<8x8xf32> -> vector<8x8xf32>
    %102 = tpu.concatenate %92, %95, %98, %101 in 0 : vector<8x8xf32>, vector<8x8xf32>, vector<8x8xf32>, vector<8x8xf32> -> vector<32x8xf32>
    %cst_41 = arith.constant 2.500000e-01 : f32
    %103 = vector.broadcast %cst_41 : f32 to vector<32x8xf32>
    %104 = arith.mulf %102, %103 : vector<32x8xf32>
    %105 = arith.addf %104, %52 : vector<32x8xf32>
    %cst_42 = arith.constant dense<0xFF800000> : vector<32xf32>
    %106 = vector.multi_reduction <maximumf>, %105, %cst_42 [1] : vector<32x8xf32> to vector<32xf32>
    %107 = vector.shape_cast %106 : vector<32xf32> to vector<32x1xf32>
    %108 = vector.broadcast %107 : vector<32x1xf32> to vector<32x8xf32>
    %109 = arith.subf %105, %108 : vector<32x8xf32>
    %110 = math.exp %109 : vector<32x8xf32>
    %cst_43 = arith.constant dense<0.000000e+00> : vector<32xf32>
    %111 = vector.multi_reduction <add>, %110, %cst_43 [1] : vector<32x8xf32> to vector<32xf32>
    %112 = vector.shape_cast %111 : vector<32xf32> to vector<32x1xf32>
    %113 = tpu.reciprocal %112 {approx = true} : vector<32x1xf32> -> vector<32x1xf32>
    %114 = vector.broadcast %113 : vector<32x1xf32> to vector<32x8xf32>
    %115 = arith.mulf %110, %114 : vector<32x8xf32>
    %116 = arith.truncf %115 : vector<32x8xf32> to vector<32x8xbf16>
    %c192 = arith.constant 192 : index
    %c0_44 = arith.constant 0 : index
    %117 = vector.load %arg1[%c192, %c0_44] : memref<704x128xbf16, #tpu.memory_space<vmem>>, vector<32x32xbf16>
    %c64_45 = arith.constant 64 : index
    %c0_46 = arith.constant 0 : index
    %118 = vector.load %arg2[%c64_45, %c0_46] : memref<88x128xf32, #tpu.memory_space<vmem>>, vector<1x32xf32>
    %119 = vector.extract_strided_slice %116 {offsets = [0, 0], sizes = [8, 8], strides = [1, 1]} : vector<32x8xbf16> to vector<8x8xbf16>
    %120 = vector.extract_strided_slice %71 {offsets = [0, 0], sizes = [8, 16], strides = [1, 1]} : vector<16x16xbf16> to vector<8x16xbf16>
    %cst_47 = arith.constant dense<0.000000e+00> : vector<8x16xf32>
    %121 = tpu.matmul %119, %120, %cst_47 {dimension_numbers = #tpu.dot_dimension_numbers<[1], [0], [0], [1], [0, 0, 1, 1], [], []>} : vector<8x8xbf16>, vector<8x16xbf16>, vector<8x16xf32> -> vector<8x16xf32>
    %122 = arith.truncf %121 : vector<8x16xf32> to vector<8x16xbf16>
    %123 = vector.extract_strided_slice %117 {offsets = [0, 0], sizes = [16, 32], strides = [1, 1]} : vector<32x32xbf16> to vector<16x32xbf16>
    %cst_48 = arith.constant dense<0.000000e+00> : vector<8x32xf32>
    %124 = tpu.matmul %122, %123, %cst_48 {dimension_numbers = #tpu.dot_dimension_numbers<[1], [0], [0], [1], [0, 0, 1, 1], [], []>} : vector<8x16xbf16>, vector<16x32xbf16>, vector<8x32xf32> -> vector<8x32xf32>
    %125 = vector.broadcast %118 : vector<1x32xf32> to vector<8x32xf32>
    %126 = arith.addf %125, %124 : vector<8x32xf32>
    %127 = vector.extract_strided_slice %116 {offsets = [8, 0], sizes = [8, 8], strides = [1, 1]} : vector<32x8xbf16> to vector<8x8xbf16>
    %128 = vector.extract_strided_slice %89 {offsets = [0, 0], sizes = [8, 16], strides = [1, 1]} : vector<16x16xbf16> to vector<8x16xbf16>
    %cst_49 = arith.constant dense<0.000000e+00> : vector<8x16xf32>
    %129 = tpu.matmul %127, %128, %cst_49 {dimension_numbers = #tpu.dot_dimension_numbers<[1], [0], [0], [1], [0, 0, 1, 1], [], []>} : vector<8x8xbf16>, vector<8x16xbf16>, vector<8x16xf32> -> vector<8x16xf32>
    %130 = arith.truncf %129 : vector<8x16xf32> to vector<8x16xbf16>
    %131 = vector.extract_strided_slice %117 {offsets = [16, 0], sizes = [16, 32], strides = [1, 1]} : vector<32x32xbf16> to vector<16x32xbf16>
    %cst_50 = arith.constant dense<0.000000e+00> : vector<8x32xf32>
    %132 = tpu.matmul %130, %131, %cst_50 {dimension_numbers = #tpu.dot_dimension_numbers<[1], [0], [0], [1], [0, 0, 1, 1], [], []>} : vector<8x16xbf16>, vector<16x32xbf16>, vector<8x32xf32> -> vector<8x32xf32>
    %133 = arith.addf %126, %132 : vector<8x32xf32>
    %c64_51 = arith.constant 64 : index
    %c0_52 = arith.constant 0 : index
    %134 = vector.load %arg2[%c64_51, %c0_52] : memref<88x128xf32, #tpu.memory_space<vmem>>, vector<1x32xf32>
    %135 = vector.extract_strided_slice %116 {offsets = [16, 0], sizes = [8, 8], strides = [1, 1]} : vector<32x8xbf16> to vector<8x8xbf16>
    %136 = vector.extract_strided_slice %71 {offsets = [8, 0], sizes = [8, 16], strides = [1, 1]} : vector<16x16xbf16> to vector<8x16xbf16>
    %cst_53 = arith.constant dense<0.000000e+00> : vector<8x16xf32>
    %137 = tpu.matmul %135, %136, %cst_53 {dimension_numbers = #tpu.dot_dimension_numbers<[1], [0], [0], [1], [0, 0, 1, 1], [], []>} : vector<8x8xbf16>, vector<8x16xbf16>, vector<8x16xf32> -> vector<8x16xf32>
    %138 = arith.truncf %137 : vector<8x16xf32> to vector<8x16xbf16>
    %139 = vector.extract_strided_slice %117 {offsets = [0, 0], sizes = [16, 32], strides = [1, 1]} : vector<32x32xbf16> to vector<16x32xbf16>
    %cst_54 = arith.constant dense<0.000000e+00> : vector<8x32xf32>
    %140 = tpu.matmul %138, %139, %cst_54 {dimension_numbers = #tpu.dot_dimension_numbers<[1], [0], [0], [1], [0, 0, 1, 1], [], []>} : vector<8x16xbf16>, vector<16x32xbf16>, vector<8x32xf32> -> vector<8x32xf32>
    %141 = vector.broadcast %134 : vector<1x32xf32> to vector<8x32xf32>
    %142 = arith.addf %141, %140 : vector<8x32xf32>
    %143 = vector.extract_strided_slice %116 {offsets = [24, 0], sizes = [8, 8], strides = [1, 1]} : vector<32x8xbf16> to vector<8x8xbf16>
    %144 = vector.extract_strided_slice %89 {offsets = [8, 0], sizes = [8, 16], strides = [1, 1]} : vector<16x16xbf16> to vector<8x16xbf16>
    %cst_55 = arith.constant dense<0.000000e+00> : vector<8x16xf32>
    %145 = tpu.matmul %143, %144, %cst_55 {dimension_numbers = #tpu.dot_dimension_numbers<[1], [0], [0], [1], [0, 0, 1, 1], [], []>} : vector<8x8xbf16>, vector<8x16xbf16>, vector<8x16xf32> -> vector<8x16xf32>
    %146 = arith.truncf %145 : vector<8x16xf32> to vector<8x16xbf16>
    %147 = vector.extract_strided_slice %117 {offsets = [16, 0], sizes = [16, 32], strides = [1, 1]} : vector<32x32xbf16> to vector<16x32xbf16>
    %cst_56 = arith.constant dense<0.000000e+00> : vector<8x32xf32>
    %148 = tpu.matmul %146, %147, %cst_56 {dimension_numbers = #tpu.dot_dimension_numbers<[1], [0], [0], [1], [0, 0, 1, 1], [], []>} : vector<8x16xbf16>, vector<16x32xbf16>, vector<8x32xf32> -> vector<8x32xf32>
    %149 = arith.addf %142, %148 : vector<8x32xf32>
    %150 = tpu.concatenate %133, %149 in 0 : vector<8x32xf32>, vector<8x32xf32> -> vector<16x32xf32>
    %151 = arith.addf %150, %40 : vector<16x32xf32>
    %c65 = arith.constant 65 : index
    %c0_57 = arith.constant 0 : index
    %152 = vector.load %arg2[%c65, %c0_57] : memref<88x128xf32, #tpu.memory_space<vmem>>, vector<1x32xf32>
    %c66 = arith.constant 66 : index
    %c0_58 = arith.constant 0 : index
    %153 = vector.load %arg2[%c66, %c0_58] : memref<88x128xf32, #tpu.memory_space<vmem>>, vector<1x32xf32>
    %cst_59 = arith.constant dense<0.000000e+00> : vector<16xf32>
    %154 = vector.multi_reduction <add>, %151, %cst_59 [1] : vector<16x32xf32> to vector<16xf32>
    %155 = vector.shape_cast %154 : vector<16xf32> to vector<16x1xf32>
    %cst_60 = arith.constant 3.200000e+01 : f32
    %156 = vector.broadcast %cst_60 : f32 to vector<16x1xf32>
    %157 = arith.divf %155, %156 : vector<16x1xf32>
    %158 = vector.broadcast %157 : vector<16x1xf32> to vector<16x32xf32>
    %159 = arith.subf %151, %158 : vector<16x32xf32>
    %160 = arith.mulf %159, %159 : vector<16x32xf32>
    %cst_61 = arith.constant dense<0.000000e+00> : vector<16xf32>
    %161 = vector.multi_reduction <add>, %160, %cst_61 [1] : vector<16x32xf32> to vector<16xf32>
    %162 = vector.shape_cast %161 : vector<16xf32> to vector<16x1xf32>
    %cst_62 = arith.constant 3.200000e+01 : f32
    %163 = vector.broadcast %cst_62 : f32 to vector<16x1xf32>
    %164 = arith.divf %162, %163 : vector<16x1xf32>
    %165 = vector.broadcast %157 : vector<16x1xf32> to vector<16x32xf32>
    %166 = arith.subf %151, %165 : vector<16x32xf32>
    %cst_63 = arith.constant 9.99999996E-13 : f32
    %167 = vector.broadcast %cst_63 : f32 to vector<16x1xf32>
    %168 = arith.addf %164, %167 : vector<16x1xf32>
    %169 = math.rsqrt %168 : vector<16x1xf32>
    %170 = vector.broadcast %169 : vector<16x1xf32> to vector<16x32xf32>
    %171 = arith.mulf %166, %170 : vector<16x32xf32>
    %172 = vector.broadcast %152 : vector<1x32xf32> to vector<16x32xf32>
    %173 = arith.mulf %171, %172 : vector<16x32xf32>
    %174 = vector.broadcast %153 : vector<1x32xf32> to vector<16x32xf32>
    %175 = arith.addf %173, %174 : vector<16x32xf32>
    %176 = arith.truncf %175 : vector<16x32xf32> to vector<16x32xbf16>
    %c224 = arith.constant 224 : index
    %c0_64 = arith.constant 0 : index
    %177 = vector.load %arg1[%c224, %c0_64] : memref<704x128xbf16, #tpu.memory_space<vmem>>, vector<32x64xbf16>
    %cst_65 = arith.constant dense<0.000000e+00> : vector<16x64xf32>
    %178 = tpu.matmul %176, %177, %cst_65 {dimension_numbers = #tpu.dot_dimension_numbers<[1], [0], [0], [1], [0, 0, 1, 1], [], []>} : vector<16x32xbf16>, vector<32x64xbf16>, vector<16x64xf32> -> vector<16x64xf32>
    %c67 = arith.constant 67 : index
    %c0_66 = arith.constant 0 : index
    %179 = vector.load %arg2[%c67, %c0_66] : memref<88x128xf32, #tpu.memory_space<vmem>>, vector<1x64xf32>
    %180 = vector.broadcast %179 : vector<1x64xf32> to vector<16x64xf32>
    %181 = arith.addf %178, %180 : vector<16x64xf32>
    %cst_67 = arith.constant 5.000000e-01 : f32
    %182 = vector.broadcast %cst_67 : f32 to vector<16x64xf32>
    %183 = arith.mulf %182, %181 : vector<16x64xf32>
    %cst_68 = arith.constant 4.471500e-02 : f32
    %184 = vector.broadcast %cst_68 : f32 to vector<16x64xf32>
    %185 = arith.mulf %184, %181 : vector<16x64xf32>
    %186 = arith.mulf %185, %181 : vector<16x64xf32>
    %187 = arith.mulf %186, %181 : vector<16x64xf32>
    %188 = arith.addf %181, %187 : vector<16x64xf32>
    %cst_69 = arith.constant 0.797884583 : f32
    %189 = vector.broadcast %cst_69 : f32 to vector<16x64xf32>
    %190 = arith.mulf %189, %188 : vector<16x64xf32>
    %191 = math.tanh %190 : vector<16x64xf32>
    %cst_70 = arith.constant 1.000000e+00 : f32
    %192 = vector.broadcast %cst_70 : f32 to vector<16x64xf32>
    %193 = arith.addf %192, %191 : vector<16x64xf32>
    %194 = arith.mulf %183, %193 : vector<16x64xf32>
    %195 = arith.truncf %194 : vector<16x64xf32> to vector<16x64xbf16>
    %c256 = arith.constant 256 : index
    %c0_71 = arith.constant 0 : index
    %196 = vector.load %arg1[%c256, %c0_71] : memref<704x128xbf16, #tpu.memory_space<vmem>>, vector<64x32xbf16>
    %cst_72 = arith.constant dense<0.000000e+00> : vector<16x32xf32>
    %197 = tpu.matmul %195, %196, %cst_72 {dimension_numbers = #tpu.dot_dimension_numbers<[1], [0], [0], [1], [0, 0, 1, 1], [], []>} : vector<16x64xbf16>, vector<64x32xbf16>, vector<16x32xf32> -> vector<16x32xf32>
    %c68 = arith.constant 68 : index
    %c0_73 = arith.constant 0 : index
    %198 = vector.load %arg2[%c68, %c0_73] : memref<88x128xf32, #tpu.memory_space<vmem>>, vector<1x32xf32>
    %199 = vector.broadcast %198 : vector<1x32xf32> to vector<16x32xf32>
    %200 = arith.addf %197, %199 : vector<16x32xf32>
    %201 = arith.addf %200, %175 : vector<16x32xf32>
    %c69 = arith.constant 69 : index
    %c0_74 = arith.constant 0 : index
    %202 = vector.load %arg2[%c69, %c0_74] : memref<88x128xf32, #tpu.memory_space<vmem>>, vector<1x32xf32>
    %c70 = arith.constant 70 : index
    %c0_75 = arith.constant 0 : index
    %203 = vector.load %arg2[%c70, %c0_75] : memref<88x128xf32, #tpu.memory_space<vmem>>, vector<1x32xf32>
    %cst_76 = arith.constant dense<0.000000e+00> : vector<16xf32>
    %204 = vector.multi_reduction <add>, %201, %cst_76 [1] : vector<16x32xf32> to vector<16xf32>
    %205 = vector.shape_cast %204 : vector<16xf32> to vector<16x1xf32>
    %cst_77 = arith.constant 3.200000e+01 : f32
    %206 = vector.broadcast %cst_77 : f32 to vector<16x1xf32>
    %207 = arith.divf %205, %206 : vector<16x1xf32>
    %208 = vector.broadcast %207 : vector<16x1xf32> to vector<16x32xf32>
    %209 = arith.subf %201, %208 : vector<16x32xf32>
    %210 = arith.mulf %209, %209 : vector<16x32xf32>
    %cst_78 = arith.constant dense<0.000000e+00> : vector<16xf32>
    %211 = vector.multi_reduction <add>, %210, %cst_78 [1] : vector<16x32xf32> to vector<16xf32>
    %212 = vector.shape_cast %211 : vector<16xf32> to vector<16x1xf32>
    %cst_79 = arith.constant 3.200000e+01 : f32
    %213 = vector.broadcast %cst_79 : f32 to vector<16x1xf32>
    %214 = arith.divf %212, %213 : vector<16x1xf32>
    %215 = vector.broadcast %207 : vector<16x1xf32> to vector<16x32xf32>
    %216 = arith.subf %201, %215 : vector<16x32xf32>
    %cst_80 = arith.constant 9.99999996E-13 : f32
    %217 = vector.broadcast %cst_80 : f32 to vector<16x1xf32>
    %218 = arith.addf %214, %217 : vector<16x1xf32>
    %219 = math.rsqrt %218 : vector<16x1xf32>
    %220 = vector.broadcast %219 : vector<16x1xf32> to vector<16x32xf32>
    %221 = arith.mulf %216, %220 : vector<16x32xf32>
    %222 = vector.broadcast %202 : vector<1x32xf32> to vector<16x32xf32>
    %223 = arith.mulf %221, %222 : vector<16x32xf32>
    %224 = vector.broadcast %203 : vector<1x32xf32> to vector<16x32xf32>
    %225 = arith.addf %223, %224 : vector<16x32xf32>
    %226 = arith.truncf %225 : vector<16x32xf32> to vector<16x32xbf16>
    %c320 = arith.constant 320 : index
    %c0_81 = arith.constant 0 : index
    %227 = vector.load %arg1[%c320, %c0_81] : memref<704x128xbf16, #tpu.memory_space<vmem>>, vector<32x16xbf16>
    %cst_82 = arith.constant dense<0.000000e+00> : vector<16x16xf32>
    %228 = tpu.matmul %226, %227, %cst_82 {dimension_numbers = #tpu.dot_dimension_numbers<[1], [0], [0], [1], [0, 0, 1, 1], [], []>} : vector<16x32xbf16>, vector<32x16xbf16>, vector<16x16xf32> -> vector<16x16xf32>
    %c71 = arith.constant 71 : index
    %c0_83 = arith.constant 0 : index
    %229 = vector.load %arg2[%c71, %c0_83] : memref<88x128xf32, #tpu.memory_space<vmem>>, vector<1x16xf32>
    %230 = vector.broadcast %229 : vector<1x16xf32> to vector<16x16xf32>
    %231 = arith.addf %228, %230 : vector<16x16xf32>
    %c352 = arith.constant 352 : index
    %c0_84 = arith.constant 0 : index
    %232 = vector.load %arg1[%c352, %c0_84] : memref<704x128xbf16, #tpu.memory_space<vmem>>, vector<32x16xbf16>
    %cst_85 = arith.constant dense<0.000000e+00> : vector<16x16xf32>
    %233 = tpu.matmul %226, %232, %cst_85 {dimension_numbers = #tpu.dot_dimension_numbers<[1], [0], [0], [1], [0, 0, 1, 1], [], []>} : vector<16x32xbf16>, vector<32x16xbf16>, vector<16x16xf32> -> vector<16x16xf32>
    %c72 = arith.constant 72 : index
    %c0_86 = arith.constant 0 : index
    %234 = vector.load %arg2[%c72, %c0_86] : memref<88x128xf32, #tpu.memory_space<vmem>>, vector<1x16xf32>
    %235 = vector.broadcast %234 : vector<1x16xf32> to vector<16x16xf32>
    %236 = arith.addf %233, %235 : vector<16x16xf32>
    %c384 = arith.constant 384 : index
    %c0_87 = arith.constant 0 : index
    %237 = vector.load %arg1[%c384, %c0_87] : memref<704x128xbf16, #tpu.memory_space<vmem>>, vector<32x16xbf16>
    %cst_88 = arith.constant dense<0.000000e+00> : vector<16x16xf32>
    %238 = tpu.matmul %226, %237, %cst_88 {dimension_numbers = #tpu.dot_dimension_numbers<[1], [0], [0], [1], [0, 0, 1, 1], [], []>} : vector<16x32xbf16>, vector<32x16xbf16>, vector<16x16xf32> -> vector<16x16xf32>
    %c73 = arith.constant 73 : index
    %c0_89 = arith.constant 0 : index
    %239 = vector.load %arg2[%c73, %c0_89] : memref<88x128xf32, #tpu.memory_space<vmem>>, vector<1x16xf32>
    %240 = vector.broadcast %239 : vector<1x16xf32> to vector<16x16xf32>
    %241 = arith.addf %238, %240 : vector<16x16xf32>
    %242 = arith.truncf %231 : vector<16x16xf32> to vector<16x16xbf16>
    %243 = arith.truncf %236 : vector<16x16xf32> to vector<16x16xbf16>
    %244 = arith.truncf %241 : vector<16x16xf32> to vector<16x16xbf16>
    %c416 = arith.constant 416 : index
    %c0_90 = arith.constant 0 : index
    %245 = vector.load %arg1[%c416, %c0_90] : memref<704x128xbf16, #tpu.memory_space<vmem>>, vector<32x16xbf16>
    %cst_91 = arith.constant dense<0.000000e+00> : vector<16x16xf32>
    %246 = tpu.matmul %226, %245, %cst_91 {dimension_numbers = #tpu.dot_dimension_numbers<[1], [0], [0], [1], [0, 0, 1, 1], [], []>} : vector<16x32xbf16>, vector<32x16xbf16>, vector<16x16xf32> -> vector<16x16xf32>
    %c74 = arith.constant 74 : index
    %c0_92 = arith.constant 0 : index
    %247 = vector.load %arg2[%c74, %c0_92] : memref<88x128xf32, #tpu.memory_space<vmem>>, vector<1x16xf32>
    %248 = vector.broadcast %247 : vector<1x16xf32> to vector<16x16xf32>
    %249 = arith.addf %246, %248 : vector<16x16xf32>
    %c448 = arith.constant 448 : index
    %c0_93 = arith.constant 0 : index
    %250 = vector.load %arg1[%c448, %c0_93] : memref<704x128xbf16, #tpu.memory_space<vmem>>, vector<32x16xbf16>
    %cst_94 = arith.constant dense<0.000000e+00> : vector<16x16xf32>
    %251 = tpu.matmul %226, %250, %cst_94 {dimension_numbers = #tpu.dot_dimension_numbers<[1], [0], [0], [1], [0, 0, 1, 1], [], []>} : vector<16x32xbf16>, vector<32x16xbf16>, vector<16x16xf32> -> vector<16x16xf32>
    %c75 = arith.constant 75 : index
    %c0_95 = arith.constant 0 : index
    %252 = vector.load %arg2[%c75, %c0_95] : memref<88x128xf32, #tpu.memory_space<vmem>>, vector<1x16xf32>
    %253 = vector.broadcast %252 : vector<1x16xf32> to vector<16x16xf32>
    %254 = arith.addf %251, %253 : vector<16x16xf32>
    %c480 = arith.constant 480 : index
    %c0_96 = arith.constant 0 : index
    %255 = vector.load %arg1[%c480, %c0_96] : memref<704x128xbf16, #tpu.memory_space<vmem>>, vector<32x16xbf16>
    %cst_97 = arith.constant dense<0.000000e+00> : vector<16x16xf32>
    %256 = tpu.matmul %226, %255, %cst_97 {dimension_numbers = #tpu.dot_dimension_numbers<[1], [0], [0], [1], [0, 0, 1, 1], [], []>} : vector<16x32xbf16>, vector<32x16xbf16>, vector<16x16xf32> -> vector<16x16xf32>
    %c76 = arith.constant 76 : index
    %c0_98 = arith.constant 0 : index
    %257 = vector.load %arg2[%c76, %c0_98] : memref<88x128xf32, #tpu.memory_space<vmem>>, vector<1x16xf32>
    %258 = vector.broadcast %257 : vector<1x16xf32> to vector<16x16xf32>
    %259 = arith.addf %256, %258 : vector<16x16xf32>
    %260 = arith.truncf %249 : vector<16x16xf32> to vector<16x16xbf16>
    %261 = arith.truncf %254 : vector<16x16xf32> to vector<16x16xbf16>
    %262 = arith.truncf %259 : vector<16x16xf32> to vector<16x16xbf16>
    %263 = vector.extract_strided_slice %242 {offsets = [0, 0], sizes = [8, 16], strides = [1, 1]} : vector<16x16xbf16> to vector<8x16xbf16>
    %264 = vector.extract_strided_slice %243 {offsets = [0, 0], sizes = [8, 16], strides = [1, 1]} : vector<16x16xbf16> to vector<8x16xbf16>
    %cst_99 = arith.constant dense<0.000000e+00> : vector<8x8xf32>
    %265 = tpu.matmul %263, %264, %cst_99 {dimension_numbers = #tpu.dot_dimension_numbers<[1], [1], [0], [0], [0, 0, 1, 0], [], []>} : vector<8x16xbf16>, vector<8x16xbf16>, vector<8x8xf32> -> vector<8x8xf32>
    %266 = vector.extract_strided_slice %260 {offsets = [0, 0], sizes = [8, 16], strides = [1, 1]} : vector<16x16xbf16> to vector<8x16xbf16>
    %267 = vector.extract_strided_slice %261 {offsets = [0, 0], sizes = [8, 16], strides = [1, 1]} : vector<16x16xbf16> to vector<8x16xbf16>
    %cst_100 = arith.constant dense<0.000000e+00> : vector<8x8xf32>
    %268 = tpu.matmul %266, %267, %cst_100 {dimension_numbers = #tpu.dot_dimension_numbers<[1], [1], [0], [0], [0, 0, 1, 0], [], []>} : vector<8x16xbf16>, vector<8x16xbf16>, vector<8x8xf32> -> vector<8x8xf32>
    %269 = vector.extract_strided_slice %242 {offsets = [8, 0], sizes = [8, 16], strides = [1, 1]} : vector<16x16xbf16> to vector<8x16xbf16>
    %270 = vector.extract_strided_slice %243 {offsets = [8, 0], sizes = [8, 16], strides = [1, 1]} : vector<16x16xbf16> to vector<8x16xbf16>
    %cst_101 = arith.constant dense<0.000000e+00> : vector<8x8xf32>
    %271 = tpu.matmul %269, %270, %cst_101 {dimension_numbers = #tpu.dot_dimension_numbers<[1], [1], [0], [0], [0, 0, 1, 0], [], []>} : vector<8x16xbf16>, vector<8x16xbf16>, vector<8x8xf32> -> vector<8x8xf32>
    %272 = vector.extract_strided_slice %260 {offsets = [8, 0], sizes = [8, 16], strides = [1, 1]} : vector<16x16xbf16> to vector<8x16xbf16>
    %273 = vector.extract_strided_slice %261 {offsets = [8, 0], sizes = [8, 16], strides = [1, 1]} : vector<16x16xbf16> to vector<8x16xbf16>
    %cst_102 = arith.constant dense<0.000000e+00> : vector<8x8xf32>
    %274 = tpu.matmul %272, %273, %cst_102 {dimension_numbers = #tpu.dot_dimension_numbers<[1], [1], [0], [0], [0, 0, 1, 0], [], []>} : vector<8x16xbf16>, vector<8x16xbf16>, vector<8x8xf32> -> vector<8x8xf32>
    %275 = tpu.concatenate %265, %268, %271, %274 in 0 : vector<8x8xf32>, vector<8x8xf32>, vector<8x8xf32>, vector<8x8xf32> -> vector<32x8xf32>
    %cst_103 = arith.constant 2.500000e-01 : f32
    %276 = vector.broadcast %cst_103 : f32 to vector<32x8xf32>
    %277 = arith.mulf %275, %276 : vector<32x8xf32>
    %278 = arith.addf %277, %52 : vector<32x8xf32>
    %cst_104 = arith.constant dense<0xFF800000> : vector<32xf32>
    %279 = vector.multi_reduction <maximumf>, %278, %cst_104 [1] : vector<32x8xf32> to vector<32xf32>
    %280 = vector.shape_cast %279 : vector<32xf32> to vector<32x1xf32>
    %281 = vector.broadcast %280 : vector<32x1xf32> to vector<32x8xf32>
    %282 = arith.subf %278, %281 : vector<32x8xf32>
    %283 = math.exp %282 : vector<32x8xf32>
    %cst_105 = arith.constant dense<0.000000e+00> : vector<32xf32>
    %284 = vector.multi_reduction <add>, %283, %cst_105 [1] : vector<32x8xf32> to vector<32xf32>
    %285 = vector.shape_cast %284 : vector<32xf32> to vector<32x1xf32>
    %286 = tpu.reciprocal %285 {approx = true} : vector<32x1xf32> -> vector<32x1xf32>
    %287 = vector.broadcast %286 : vector<32x1xf32> to vector<32x8xf32>
    %288 = arith.mulf %283, %287 : vector<32x8xf32>
    %289 = arith.truncf %288 : vector<32x8xf32> to vector<32x8xbf16>
    %c512 = arith.constant 512 : index
    %c0_106 = arith.constant 0 : index
    %290 = vector.load %arg1[%c512, %c0_106] : memref<704x128xbf16, #tpu.memory_space<vmem>>, vector<32x32xbf16>
    %c77 = arith.constant 77 : index
    %c0_107 = arith.constant 0 : index
    %291 = vector.load %arg2[%c77, %c0_107] : memref<88x128xf32, #tpu.memory_space<vmem>>, vector<1x32xf32>
    %292 = vector.extract_strided_slice %289 {offsets = [0, 0], sizes = [8, 8], strides = [1, 1]} : vector<32x8xbf16> to vector<8x8xbf16>
    %293 = vector.extract_strided_slice %244 {offsets = [0, 0], sizes = [8, 16], strides = [1, 1]} : vector<16x16xbf16> to vector<8x16xbf16>
    %cst_108 = arith.constant dense<0.000000e+00> : vector<8x16xf32>
    %294 = tpu.matmul %292, %293, %cst_108 {dimension_numbers = #tpu.dot_dimension_numbers<[1], [0], [0], [1], [0, 0, 1, 1], [], []>} : vector<8x8xbf16>, vector<8x16xbf16>, vector<8x16xf32> -> vector<8x16xf32>
    %295 = arith.truncf %294 : vector<8x16xf32> to vector<8x16xbf16>
    %296 = vector.extract_strided_slice %290 {offsets = [0, 0], sizes = [16, 32], strides = [1, 1]} : vector<32x32xbf16> to vector<16x32xbf16>
    %cst_109 = arith.constant dense<0.000000e+00> : vector<8x32xf32>
    %297 = tpu.matmul %295, %296, %cst_109 {dimension_numbers = #tpu.dot_dimension_numbers<[1], [0], [0], [1], [0, 0, 1, 1], [], []>} : vector<8x16xbf16>, vector<16x32xbf16>, vector<8x32xf32> -> vector<8x32xf32>
    %298 = vector.broadcast %291 : vector<1x32xf32> to vector<8x32xf32>
    %299 = arith.addf %298, %297 : vector<8x32xf32>
    %300 = vector.extract_strided_slice %289 {offsets = [8, 0], sizes = [8, 8], strides = [1, 1]} : vector<32x8xbf16> to vector<8x8xbf16>
    %301 = vector.extract_strided_slice %262 {offsets = [0, 0], sizes = [8, 16], strides = [1, 1]} : vector<16x16xbf16> to vector<8x16xbf16>
    %cst_110 = arith.constant dense<0.000000e+00> : vector<8x16xf32>
    %302 = tpu.matmul %300, %301, %cst_110 {dimension_numbers = #tpu.dot_dimension_numbers<[1], [0], [0], [1], [0, 0, 1, 1], [], []>} : vector<8x8xbf16>, vector<8x16xbf16>, vector<8x16xf32> -> vector<8x16xf32>
    %303 = arith.truncf %302 : vector<8x16xf32> to vector<8x16xbf16>
    %304 = vector.extract_strided_slice %290 {offsets = [16, 0], sizes = [16, 32], strides = [1, 1]} : vector<32x32xbf16> to vector<16x32xbf16>
    %cst_111 = arith.constant dense<0.000000e+00> : vector<8x32xf32>
    %305 = tpu.matmul %303, %304, %cst_111 {dimension_numbers = #tpu.dot_dimension_numbers<[1], [0], [0], [1], [0, 0, 1, 1], [], []>} : vector<8x16xbf16>, vector<16x32xbf16>, vector<8x32xf32> -> vector<8x32xf32>
    %306 = arith.addf %299, %305 : vector<8x32xf32>
    %c77_112 = arith.constant 77 : index
    %c0_113 = arith.constant 0 : index
    %307 = vector.load %arg2[%c77_112, %c0_113] : memref<88x128xf32, #tpu.memory_space<vmem>>, vector<1x32xf32>
    %308 = vector.extract_strided_slice %289 {offsets = [16, 0], sizes = [8, 8], strides = [1, 1]} : vector<32x8xbf16> to vector<8x8xbf16>
    %309 = vector.extract_strided_slice %244 {offsets = [8, 0], sizes = [8, 16], strides = [1, 1]} : vector<16x16xbf16> to vector<8x16xbf16>
    %cst_114 = arith.constant dense<0.000000e+00> : vector<8x16xf32>
    %310 = tpu.matmul %308, %309, %cst_114 {dimension_numbers = #tpu.dot_dimension_numbers<[1], [0], [0], [1], [0, 0, 1, 1], [], []>} : vector<8x8xbf16>, vector<8x16xbf16>, vector<8x16xf32> -> vector<8x16xf32>
    %311 = arith.truncf %310 : vector<8x16xf32> to vector<8x16xbf16>
    %312 = vector.extract_strided_slice %290 {offsets = [0, 0], sizes = [16, 32], strides = [1, 1]} : vector<32x32xbf16> to vector<16x32xbf16>
    %cst_115 = arith.constant dense<0.000000e+00> : vector<8x32xf32>
    %313 = tpu.matmul %311, %312, %cst_115 {dimension_numbers = #tpu.dot_dimension_numbers<[1], [0], [0], [1], [0, 0, 1, 1], [], []>} : vector<8x16xbf16>, vector<16x32xbf16>, vector<8x32xf32> -> vector<8x32xf32>
    %314 = vector.broadcast %307 : vector<1x32xf32> to vector<8x32xf32>
    %315 = arith.addf %314, %313 : vector<8x32xf32>
    %316 = vector.extract_strided_slice %289 {offsets = [24, 0], sizes = [8, 8], strides = [1, 1]} : vector<32x8xbf16> to vector<8x8xbf16>
    %317 = vector.extract_strided_slice %262 {offsets = [8, 0], sizes = [8, 16], strides = [1, 1]} : vector<16x16xbf16> to vector<8x16xbf16>
    %cst_116 = arith.constant dense<0.000000e+00> : vector<8x16xf32>
    %318 = tpu.matmul %316, %317, %cst_116 {dimension_numbers = #tpu.dot_dimension_numbers<[1], [0], [0], [1], [0, 0, 1, 1], [], []>} : vector<8x8xbf16>, vector<8x16xbf16>, vector<8x16xf32> -> vector<8x16xf32>
    %319 = arith.truncf %318 : vector<8x16xf32> to vector<8x16xbf16>
    %320 = vector.extract_strided_slice %290 {offsets = [16, 0], sizes = [16, 32], strides = [1, 1]} : vector<32x32xbf16> to vector<16x32xbf16>
    %cst_117 = arith.constant dense<0.000000e+00> : vector<8x32xf32>
    %321 = tpu.matmul %319, %320, %cst_117 {dimension_numbers = #tpu.dot_dimension_numbers<[1], [0], [0], [1], [0, 0, 1, 1], [], []>} : vector<8x16xbf16>, vector<16x32xbf16>, vector<8x32xf32> -> vector<8x32xf32>
    %322 = arith.addf %315, %321 : vector<8x32xf32>
    %323 = tpu.concatenate %306, %322 in 0 : vector<8x32xf32>, vector<8x32xf32> -> vector<16x32xf32>
    %324 = arith.addf %323, %225 : vector<16x32xf32>
    %c78 = arith.constant 78 : index
    %c0_118 = arith.constant 0 : index
    %325 = vector.load %arg2[%c78, %c0_118] : memref<88x128xf32, #tpu.memory_space<vmem>>, vector<1x32xf32>
    %c79 = arith.constant 79 : index
    %c0_119 = arith.constant 0 : index
    %326 = vector.load %arg2[%c79, %c0_119] : memref<88x128xf32, #tpu.memory_space<vmem>>, vector<1x32xf32>
    %cst_120 = arith.constant dense<0.000000e+00> : vector<16xf32>
    %327 = vector.multi_reduction <add>, %324, %cst_120 [1] : vector<16x32xf32> to vector<16xf32>
    %328 = vector.shape_cast %327 : vector<16xf32> to vector<16x1xf32>
    %cst_121 = arith.constant 3.200000e+01 : f32
    %329 = vector.broadcast %cst_121 : f32 to vector<16x1xf32>
    %330 = arith.divf %328, %329 : vector<16x1xf32>
    %331 = vector.broadcast %330 : vector<16x1xf32> to vector<16x32xf32>
    %332 = arith.subf %324, %331 : vector<16x32xf32>
    %333 = arith.mulf %332, %332 : vector<16x32xf32>
    %cst_122 = arith.constant dense<0.000000e+00> : vector<16xf32>
    %334 = vector.multi_reduction <add>, %333, %cst_122 [1] : vector<16x32xf32> to vector<16xf32>
    %335 = vector.shape_cast %334 : vector<16xf32> to vector<16x1xf32>
    %cst_123 = arith.constant 3.200000e+01 : f32
    %336 = vector.broadcast %cst_123 : f32 to vector<16x1xf32>
    %337 = arith.divf %335, %336 : vector<16x1xf32>
    %338 = vector.broadcast %330 : vector<16x1xf32> to vector<16x32xf32>
    %339 = arith.subf %324, %338 : vector<16x32xf32>
    %cst_124 = arith.constant 9.99999996E-13 : f32
    %340 = vector.broadcast %cst_124 : f32 to vector<16x1xf32>
    %341 = arith.addf %337, %340 : vector<16x1xf32>
    %342 = math.rsqrt %341 : vector<16x1xf32>
    %343 = vector.broadcast %342 : vector<16x1xf32> to vector<16x32xf32>
    %344 = arith.mulf %339, %343 : vector<16x32xf32>
    %345 = vector.broadcast %325 : vector<1x32xf32> to vector<16x32xf32>
    %346 = arith.mulf %344, %345 : vector<16x32xf32>
    %347 = vector.broadcast %326 : vector<1x32xf32> to vector<16x32xf32>
    %348 = arith.addf %346, %347 : vector<16x32xf32>
    %349 = arith.truncf %348 : vector<16x32xf32> to vector<16x32xbf16>
    %c544 = arith.constant 544 : index
    %c0_125 = arith.constant 0 : index
    %350 = vector.load %arg1[%c544, %c0_125] : memref<704x128xbf16, #tpu.memory_space<vmem>>, vector<32x64xbf16>
    %cst_126 = arith.constant dense<0.000000e+00> : vector<16x64xf32>
    %351 = tpu.matmul %349, %350, %cst_126 {dimension_numbers = #tpu.dot_dimension_numbers<[1], [0], [0], [1], [0, 0, 1, 1], [], []>} : vector<16x32xbf16>, vector<32x64xbf16>, vector<16x64xf32> -> vector<16x64xf32>
    %c80 = arith.constant 80 : index
    %c0_127 = arith.constant 0 : index
    %352 = vector.load %arg2[%c80, %c0_127] : memref<88x128xf32, #tpu.memory_space<vmem>>, vector<1x64xf32>
    %353 = vector.broadcast %352 : vector<1x64xf32> to vector<16x64xf32>
    %354 = arith.addf %351, %353 : vector<16x64xf32>
    %cst_128 = arith.constant 5.000000e-01 : f32
    %355 = vector.broadcast %cst_128 : f32 to vector<16x64xf32>
    %356 = arith.mulf %355, %354 : vector<16x64xf32>
    %cst_129 = arith.constant 4.471500e-02 : f32
    %357 = vector.broadcast %cst_129 : f32 to vector<16x64xf32>
    %358 = arith.mulf %357, %354 : vector<16x64xf32>
    %359 = arith.mulf %358, %354 : vector<16x64xf32>
    %360 = arith.mulf %359, %354 : vector<16x64xf32>
    %361 = arith.addf %354, %360 : vector<16x64xf32>
    %cst_130 = arith.constant 0.797884583 : f32
    %362 = vector.broadcast %cst_130 : f32 to vector<16x64xf32>
    %363 = arith.mulf %362, %361 : vector<16x64xf32>
    %364 = math.tanh %363 : vector<16x64xf32>
    %cst_131 = arith.constant 1.000000e+00 : f32
    %365 = vector.broadcast %cst_131 : f32 to vector<16x64xf32>
    %366 = arith.addf %365, %364 : vector<16x64xf32>
    %367 = arith.mulf %356, %366 : vector<16x64xf32>
    %368 = arith.truncf %367 : vector<16x64xf32> to vector<16x64xbf16>
    %c576 = arith.constant 576 : index
    %c0_132 = arith.constant 0 : index
    %369 = vector.load %arg1[%c576, %c0_132] : memref<704x128xbf16, #tpu.memory_space<vmem>>, vector<64x32xbf16>
    %cst_133 = arith.constant dense<0.000000e+00> : vector<16x32xf32>
    %370 = tpu.matmul %368, %369, %cst_133 {dimension_numbers = #tpu.dot_dimension_numbers<[1], [0], [0], [1], [0, 0, 1, 1], [], []>} : vector<16x64xbf16>, vector<64x32xbf16>, vector<16x32xf32> -> vector<16x32xf32>
    %c81 = arith.constant 81 : index
    %c0_134 = arith.constant 0 : index
    %371 = vector.load %arg2[%c81, %c0_134] : memref<88x128xf32, #tpu.memory_space<vmem>>, vector<1x32xf32>
    %372 = vector.broadcast %371 : vector<1x32xf32> to vector<16x32xf32>
    %373 = arith.addf %370, %372 : vector<16x32xf32>
    %374 = arith.addf %373, %348 : vector<16x32xf32>
    %c82 = arith.constant 82 : index
    %c0_135 = arith.constant 0 : index
    %375 = vector.load %arg2[%c82, %c0_135] : memref<88x128xf32, #tpu.memory_space<vmem>>, vector<1x32xf32>
    %c83 = arith.constant 83 : index
    %c0_136 = arith.constant 0 : index
    %376 = vector.load %arg2[%c83, %c0_136] : memref<88x128xf32, #tpu.memory_space<vmem>>, vector<1x32xf32>
    %cst_137 = arith.constant dense<0.000000e+00> : vector<16xf32>
    %377 = vector.multi_reduction <add>, %374, %cst_137 [1] : vector<16x32xf32> to vector<16xf32>
    %378 = vector.shape_cast %377 : vector<16xf32> to vector<16x1xf32>
    %cst_138 = arith.constant 3.200000e+01 : f32
    %379 = vector.broadcast %cst_138 : f32 to vector<16x1xf32>
    %380 = arith.divf %378, %379 : vector<16x1xf32>
    %381 = vector.broadcast %380 : vector<16x1xf32> to vector<16x32xf32>
    %382 = arith.subf %374, %381 : vector<16x32xf32>
    %383 = arith.mulf %382, %382 : vector<16x32xf32>
    %cst_139 = arith.constant dense<0.000000e+00> : vector<16xf32>
    %384 = vector.multi_reduction <add>, %383, %cst_139 [1] : vector<16x32xf32> to vector<16xf32>
    %385 = vector.shape_cast %384 : vector<16xf32> to vector<16x1xf32>
    %cst_140 = arith.constant 3.200000e+01 : f32
    %386 = vector.broadcast %cst_140 : f32 to vector<16x1xf32>
    %387 = arith.divf %385, %386 : vector<16x1xf32>
    %388 = vector.broadcast %380 : vector<16x1xf32> to vector<16x32xf32>
    %389 = arith.subf %374, %388 : vector<16x32xf32>
    %cst_141 = arith.constant 9.99999996E-13 : f32
    %390 = vector.broadcast %cst_141 : f32 to vector<16x1xf32>
    %391 = arith.addf %387, %390 : vector<16x1xf32>
    %392 = math.rsqrt %391 : vector<16x1xf32>
    %393 = vector.broadcast %392 : vector<16x1xf32> to vector<16x32xf32>
    %394 = arith.mulf %389, %393 : vector<16x32xf32>
    %395 = vector.broadcast %375 : vector<1x32xf32> to vector<16x32xf32>
    %396 = arith.mulf %394, %395 : vector<16x32xf32>
    %397 = vector.broadcast %376 : vector<1x32xf32> to vector<16x32xf32>
    %398 = arith.addf %396, %397 : vector<16x32xf32>
    %399 = vector.extract_strided_slice %398 {offsets = [0, 0], sizes = [1, 32], strides = [1, 1]} : vector<16x32xf32> to vector<1x32xf32>
    %400 = vector.extract_strided_slice %398 {offsets = [8, 0], sizes = [1, 32], strides = [1, 1]} : vector<16x32xf32> to vector<1x32xf32>
    %401 = tpu.concatenate %399, %400 in 0 : vector<1x32xf32>, vector<1x32xf32> -> vector<2x32xf32>
    %402 = arith.truncf %401 : vector<2x32xf32> to vector<2x32xbf16>
    %c640 = arith.constant 640 : index
    %c0_142 = arith.constant 0 : index
    %403 = vector.load %arg1[%c640, %c0_142] : memref<704x128xbf16, #tpu.memory_space<vmem>>, vector<32x32xbf16>
    %cst_143 = arith.constant dense<0.000000e+00> : vector<2x32xf32>
    %404 = tpu.matmul %402, %403, %cst_143 {dimension_numbers = #tpu.dot_dimension_numbers<[1], [0], [0], [1], [0, 0, 1, 1], [], []>} : vector<2x32xbf16>, vector<32x32xbf16>, vector<2x32xf32> -> vector<2x32xf32>
    %c84 = arith.constant 84 : index
    %c0_144 = arith.constant 0 : index
    %405 = vector.load %arg2[%c84, %c0_144] : memref<88x128xf32, #tpu.memory_space<vmem>>, vector<1x32xf32>
    %406 = vector.broadcast %405 : vector<1x32xf32> to vector<2x32xf32>
    %407 = arith.addf %404, %406 : vector<2x32xf32>
    %408 = math.tanh %407 : vector<2x32xf32>
    %409 = arith.truncf %408 : vector<2x32xf32> to vector<2x32xbf16>
    %c672 = arith.constant 672 : index
    %c0_145 = arith.constant 0 : index
    %410 = vector.load %arg1[%c672, %c0_145] : memref<704x128xbf16, #tpu.memory_space<vmem>>, vector<32x128xbf16>
    %cst_146 = arith.constant dense<0.000000e+00> : vector<2x128xf32>
    %411 = tpu.matmul %409, %410, %cst_146 {dimension_numbers = #tpu.dot_dimension_numbers<[1], [0], [0], [1], [0, 0, 1, 1], [], []>} : vector<2x32xbf16>, vector<32x128xbf16>, vector<2x128xf32> -> vector<2x128xf32>
    %c85 = arith.constant 85 : index
    %c0_147 = arith.constant 0 : index
    %412 = vector.load %arg2[%c85, %c0_147] : memref<88x128xf32, #tpu.memory_space<vmem>>, vector<1x128xf32>
    %413 = vector.broadcast %412 : vector<1x128xf32> to vector<2x128xf32>
    %414 = arith.addf %411, %413 : vector<2x128xf32>
    %c0_148 = arith.constant 0 : index
    %c0_149 = arith.constant 0 : index
    %415 = vector.load %arg3[%c0_148, %c0_149] : memref<2x128xf32, #tpu.memory_space<vmem>>, vector<2x128xf32>
    tpu.vector_store %arg3[%c0_148, %c0_149], %414 {strides = array<i32>} : memref<2x128xf32, #tpu.memory_space<vmem>>, vector<2x128xf32>,
    return
  }
}

</mosaic_0001>

<llo_original>
// kernel: forward.1
$region0: #{forward.1}
  #allocation0 [shape = 'u32[]', space=smem, size = 0x4, offset = 0x4, fixed_abs, tag = 'smem constant byte address 0x4 - core index']
  #allocation1 [shape = 'u32[144,128]{1,0:T(1,128)}', space=vmem, size = 0x12000, scoped, tag = 'internal scratch']
  %s0 = inlined_call_operand.vmem [shape: f32[18,8], index: 0, kind: input, shape index: {}]
  %s1 = inlined_call_operand.hbm [shape: bf16[704,128], index: 1, kind: input, shape index: {}]
  %s2 = inlined_call_operand.hbm [shape: f32[88,128], index: 2, kind: input, shape index: {}]
  %s3 = inlined_call_operand.hbm [shape: f32[2,128], index: 3, kind: output, shape index: {}]
  %s4 = sld [smem:[#allocation0]]
  $region30: #{forward.1} parent=0
    _
  %s6 = ssub.s32 1, %s4
  %s7 = scalar_select 0, %s6, %s4
  $region1: #{forward.1} parent=0
    #allocation2 [shape = 'u8[180224]{0}', space=vmem, size = 0x2c000, scoped, tag = 'input window, operand 1, single buffered']
    #allocation3 [shape = 's32[1]{0}', space=sflag, size = 0x4, scoped, tag = 'scoped memory for forward.1']
    #allocation4 [shape = 's32[1]{0}', space=sflag, size = 0x4, scoped, tag = 'scoped memory for forward.1']
    #allocation5 [shape = 'u8[45056]{0}', space=vmem, size = 0xb000, scoped, tag = 'input window, operand 2, single buffered']
    #allocation6 [shape = 's32[1]{0}', space=sflag, size = 0x4, scoped, tag = 'scoped memory for forward.1']
    #allocation7 [shape = 'u8[1024]{0}', space=vmem, size = 0x400, scoped, tag = 'output window, operand 0, single buffered']
    %8 = vsyncpa [#allocation3], 0
    %9 = vsyncpa [#allocation6], 0
    %10 = vsyncpa [#allocation4], 0
    // Predicated region
    $region2: #{forward.1} parent=1 // pred_check
      _
    $region3: #{forward.1} parent=1 // pred_check_branch
      %12 = sbr.rel (0) target = $region5
    $region4: #{forward.1} parent=1 // pred_region
      _
    $region5: #{forward.1} parent=1 // pred_fallthru
      _
    // Predicated region
    $region6: #{forward.1} parent=1 // pred_check
      _
    $region7: #{forward.1} parent=1 // pred_check_branch
      %14 = sbr.rel (0) target = $region9
    $region8: #{forward.1} parent=1 // pred_region
      %s16 = ssub.s32 5632, 5632
      %17 = vsyncadd [#allocation3], %s16
      %s18 = sshll.u32 [#allocation2], 4
      %s19 = int_to_ptr.vmem [resolvable:$true] %s18
      %24 = dma.hbm_to_vmem [thread:$0]  %s1, 5632, %s19, [#allocation3], 64, 64, 4
    $region9: #{forward.1} parent=1 // pred_fallthru
      _
    // Predicated region
    $region10: #{forward.1} parent=1 // pred_check
      _
    $region11: #{forward.1} parent=1 // pred_check_branch
      %26 = sbr.rel (0) target = $region13
    $region12: #{forward.1} parent=1 // pred_region
      %s28 = ssub.s32 1408, 1408
      %29 = vsyncadd [#allocation6], %s28
      %s30 = sshll.u32 [#allocation5], 4
      %s31 = int_to_ptr.vmem [resolvable:$true] %s30
      %36 = dma.hbm_to_vmem [thread:$0]  %s2, 1408, %s31, [#allocation6], 128, 128, 8
    $region13: #{forward.1} parent=1 // pred_fallthru
      _
    // Predicated region
    $region14: #{forward.1} parent=1 // pred_check
      _
    $region15: #{forward.1} parent=1 // pred_check_branch
      %38 = sbr.rel (0) target = $region17
    $region16: #{forward.1} parent=1 // pred_region
      %39 = dma.done [#allocation3], 5632
    $region17: #{forward.1} parent=1 // pred_fallthru
      _
    // Predicated region
    $region18: #{forward.1} parent=1 // pred_check
      _
    $region19: #{forward.1} parent=1 // pred_check_branch
      %41 = sbr.rel (0) target = $region21
    $region20: #{forward.1} parent=1 // pred_region
      %42 = dma.done [#allocation6], 1408
    $region21: #{forward.1} parent=1 // pred_fallthru
      _
    %v44 = vld [vmem:[%s0] sm:$0xff]
    %v45 = vld [vmem:[%s0 + $0x8] sm:$0xff]
    %v46 = vlaneseq
    %v47 = vand.u32 %v46, 127
    %v48 = vcvt.s32.f32 %v47
    %50 = vset.pattern.permute.xlu0 0
    %51 = vperm.xlu0 %50, %v44
    %v52 = vpop.permute.xlu0 %51
    %55 = vset.pattern.permute.xlu0 0
    %56 = vperm.xlu0 %55, %v45
    %v57 = vpop.permute.xlu0 %56
    %vm59 = vcmp.eq.f32.partialorder %v52, %v48
    %vm60 = vcmp.eq.f32.partialorder %v57, %v48
    %v61 = vsel %vm59, 1.0, 0.0
    %v62 = vsel %vm60, 1.0, 0.0
    %v63 = vld [vmem:[#allocation5] sm:$0xff]
    %v64 = vld [vmem:[#allocation5 + $0x8] sm:$0xff]
    %v65 = vld [vmem:[#allocation5 + $0x10] sm:$0xff]
    %v66 = vld [vmem:[#allocation5 + $0x18] sm:$0xff]
    %v67 = vld [vmem:[#allocation5 + $0x20] sm:$0xff]
    %v68 = vld [vmem:[#allocation5 + $0x30] sm:$0x1]
    %vm69 = vcmask 261120
    %v71 = vsel %vm69, %v61, 0
    %v74 = vsel %vm69, %v62, 0
    %76 = vmatprep.subr.mxu0 0.0
    %77 = vmatpush1.msra.mxu0 %v63
    %78 = vmatprep.subr.mxu0 0.0
    %79 = vmatpush1.msra.mxu0 %v64
    %80 = vmatprep.subr.mxu0 0.0
    %81 = vmatpush1.msra.mxu0 %v65
    %82 = vmatprep.subr.mxu0 0.0
    %83 = vmatpush1.msra.mxu0 %v66
    %84 = vmatprep.subr.mxu0 0.0
    %85 = vmatpush1.msra.mxu0 0.0
    %86 = vmatprep.subr.mxu0 0.0
    %87 = vmatpush1.msra.mxu0 0.0
    %88 = vmatprep.subr.mxu0 0.0
    %89 = vmatpush1.msra.mxu0 0.0
    %90 = vmatprep.subr.mxu0 0.0
    %91 = vmatpush1.msra.mxu0 0.0
    %92 = vmatprep.subr.mxu0 0.0
    %93 = vmatpush1.msra.mxu0 0.0
    %94 = vmatprep.subr.mxu0 0.0
    %95 = vmatpush1.msra.mxu0 0.0
    %96 = vmatprep.subr.mxu0 0.0
    %97 = vmatpush1.msra.mxu0 0.0
    %98 = vmatprep.subr.mxu0 0.0
    %99 = vmatpush1.msra.mxu0 0.0
    %100 = vmatprep.subr.mxu0 0.0
    %101 = vmatpush1.msra.mxu0 0.0
    %102 = vmatprep.subr.mxu0 0.0
    %103 = vmatpush1.msra.mxu0 0.0
    %104 = vmatprep.subr.mxu0 0.0
    %105 = vmatpush1.msra.mxu0 0.0
    %106 = vmatprep.subr.mxu0 0.0
    %107 = vmatpush1.msra.mxu0 0.0
    %108 = vmatprep.subr.mxu0 0.0
    %109 = vmatpush1.msra.mxu0 0.0
    %110 = vmatprep.subr.mxu0 0.0
    %111 = vmatpush1.msra.mxu0 0.0
    %112 = vmatprep.subr.mxu0 0.0
    %113 = vmatpush1.msra.mxu0 0.0
    %114 = vmatprep.subr.mxu0 0.0
    %115 = vmatpush1.msra.mxu0 0.0
    %116 = vmatprep.subr.mxu0 0.0
    %117 = vmatpush1.msra.mxu0 0.0
    %118 = vmatprep.subr.mxu0 0.0
    %119 = vmatpush1.msra.mxu0 0.0
    %120 = vmatprep.subr.mxu0 0.0
    %121 = vmatpush1.msra.mxu0 0.0
    %122 = vmatprep.subr.mxu0 0.0
    %123 = vmatpush1.msra.mxu0 0.0
    %124 = vmatprep.subr.mxu0 0.0
    %125 = vmatpush1.msra.mxu0 0.0
    %126 = vmatprep.subr.mxu0 0.0
    %127 = vmatpush1.msra.mxu0 0.0
    %128 = vmatprep.subr.mxu0 0.0
    %129 = vmatpush1.msra.mxu0 0.0
    %130 = vmatprep.subr.mxu0 0.0
    %131 = vmatpush1.msra.mxu0 0.0
    %132 = vmatprep.subr.mxu0 0.0
    %133 = vmatpush1.msra.mxu0 0.0
    %134 = vmatprep.subr.mxu0 0.0
    %135 = vmatpush1.msra.mxu0 0.0
    %136 = vmatprep.subr.mxu0 0.0
    %137 = vmatpush1.msra.mxu0 0.0
    %138 = vmatprep.subr.mxu0 0.0
    %139 = vmatpush1.msra.mxu0 0.0
    %140 = vmatprep.mubr.f32.mxu0 0.0
    %141 = vmatmul.mubr.f32.gmra.mrb[0].mxu0 %v71
    %v142 = vpop.f32.mrb[0].mxu0
    %v143 = vadd.f32 %v67, %v142
    %v144 = vpop.f32.mrb[0].mxu0
    %145 = vmatprep.mubr.f32.mxu0 0.0
    %146 = vmatmul.mubr.f32.gmra.mrb[0].mxu0 %v74
    %v147 = vpop.f32.mrb[0].mxu0
    %v148 = vadd.f32 %v67, %v147
    %v149 = vpop.f32.mrb[0].mxu0
    %150 = vdwg.mxu0
    %v151 = vlaneseq
    %v152 = vshrl.u32 %v151, 7
    %v153 = vsub.s32 0, %v152
    %v154 = vrot.slane %v68, %v153
    %v155 = vadd.f32 %v143, %v154
    %v156 = vadd.f32 %v148, %v154
    %v157 = vld [vmem:[#allocation5 + $0x38] sm:$0x1]
    %v158 = vld [vmem:[#allocation5 + $0x39] sm:$0x1]
    %v159 = vsel %vm69, %v155, 0.0
    %160 = vadd.xlane.f32.xlu0 %v159
    %v161 = vpop.xlane.xlu0 %160
    %v162 = vsel %vm69, %v156, 0.0
    %163 = vadd.xlane.f32.xlu0 %v162
    %v164 = vpop.xlane.xlu0 %163
    %v165 = vrcp.pop 32.0
    %v166 = vmul.f32 %v161, %v165
    %v167 = vmul.f32 %v164, %v165
    %v168 = vsub.f32 %v155, %v166
    %v169 = vsub.f32 %v156, %v167
    %v170 = vmul.f32 %v168, %v168
    %v171 = vmul.f32 %v169, %v169
    %v172 = vsel %vm69, %v170, 0.0
    %173 = vadd.xlane.f32.xlu0 %v172
    %v174 = vpop.xlane.xlu0 %173
    %v175 = vsel %vm69, %v171, 0.0
    %176 = vadd.xlane.f32.xlu0 %v175
    %v177 = vpop.xlane.xlu0 %176
    %v178 = vmul.f32 %v174, %v165
    %v179 = vmul.f32 %v177, %v165
    %v180 = vadd.f32 %v178, 1e-12
    %v181 = vadd.f32 %v179, 1e-12
    %v182 = vrsqrt.pop %v180
    %v183 = vrsqrt.pop %v181
    %v184 = vmul.f32 %v168, %v182
    %v185 = vmul.f32 %v169, %v183
    %v186 = vlaneseq
    %v187 = vshrl.u32 %v186, 7
    %v188 = vsub.s32 0, %v187
    %v189 = vrot.slane %v157, %v188
    %v190 = vmul.f32 %v184, %v189
    %v191 = vmul.f32 %v185, %v189
    %v192 = vlaneseq
    %v193 = vshrl.u32 %v192, 7
    %v194 = vsub.s32 0, %v193
    %v195 = vrot.slane %v158, %v194
    %v196 = vadd.f32 %v190, %v195
    %v197 = vadd.f32 %v191, %v195
    %v198 = vld [vmem:[%s0 + $0x10] sm:$0x3]
    %v199 = vsub.f32 %v198, 1.0
    %v200 = vmul.f32 %v199, 10000.0
    %v201 = vlaneseq
    %v202 = vshrl.u32 %v201, 7
    %v203 = vsub.s32 0, %v202
    %v204 = vrot.slane %v200, %v203
    %v205 = vlaneseq
    %v206 = vshrl.u32 %v205, 7
    %v207 = vsub.s32 1, %v206
    %v208 = vrot.slane %v200, %v207
    %v209 = vpack.c.bf16 %v197, %v196
    %v210 = vld [vmem:[#allocation2] sm:$0xf]
    %v211 = vld [vmem:[#allocation2 + $0x4] sm:$0xf]
    %v212 = vld [vmem:[#allocation2 + $0x8] sm:$0xf]
    %v213 = vld [vmem:[#allocation2 + $0xc] sm:$0xf]
    %v214 = vld [vmem:[#allocation5 + $0x3a] sm:$0x1]
    %v215 = vlaneseq
    %v216 = vshrl.u32 %v215, 7
    %v217 = vsub.s32 0, %v216
    %v218 = vrot.slane %v214, %v217
    %v223 = vunpack.c.l.b16 %v210
    %v224 = vunpack.c.l.b16 %v211
    %v225 = vunpack.c.l.b16 %v212
    %v226 = vunpack.c.l.b16 %v213
    %v227 = vpack.c.b16 %v224, %v223
    %v228 = vpack.c.b16 %v226, %v225
    %v232 = vsel %vm69, %v209, 0
    %234 = vmatprep.subr.bf16.mxu0 0
    %235 = vmatpush1.bf16.msra.mxu0 %v227
    %236 = vmatprep.subr.bf16.mxu0 0
    %237 = vmatpush1.bf16.msra.mxu0 %v228
    %238 = vmatprep.subr.bf16.mxu0 0
    %239 = vmatpush1.bf16.msra.mxu0 0
    %240 = vmatprep.subr.bf16.mxu0 0
    %241 = vmatpush1.bf16.msra.mxu0 0
    %242 = vmatprep.subr.bf16.mxu0 0
    %243 = vmatpush1.bf16.msra.mxu0 0
    %244 = vmatprep.subr.bf16.mxu0 0
    %245 = vmatpush1.bf16.msra.mxu0 0
    %246 = vmatprep.subr.bf16.mxu0 0
    %247 = vmatpush1.bf16.msra.mxu0 0
    %248 = vmatprep.subr.bf16.mxu0 0
    %249 = vmatpush1.bf16.msra.mxu0 0
    %250 = vmatprep.subr.bf16.mxu0 0
    %251 = vmatpush1.bf16.msra.mxu0 0
    %252 = vmatprep.subr.bf16.mxu0 0
    %253 = vmatpush1.bf16.msra.mxu0 0
    %254 = vmatprep.subr.bf16.mxu0 0
    %255 = vmatpush1.bf16.msra.mxu0 0
    %256 = vmatprep.subr.bf16.mxu0 0
    %257 = vmatpush1.bf16.msra.mxu0 0
    %258 = vmatprep.subr.bf16.mxu0 0
    %259 = vmatpush1.bf16.msra.mxu0 0
    %260 = vmatprep.subr.bf16.mxu0 0
    %261 = vmatpush1.bf16.msra.mxu0 0
    %262 = vmatprep.subr.bf16.mxu0 0
    %263 = vmatpush1.bf16.msra.mxu0 0
    %264 = vmatprep.subr.bf16.mxu0 0
    %265 = vmatpush1.bf16.msra.mxu0 0
    %266 = vmatprep.mubr.bf16.mxu0 0
    %267 = vmatmul.mubr.bf16.gmra.mrb[0].mxu0 %v232
    %v268 = vpop.f32.mrb[0].mxu0
    %v269 = vadd.f32 %v218, %v268
    %v270 = vpop.f32.mrb[0].mxu0
    %v271 = vpop.f32.mrb[0].mxu0
    %v272 = vadd.f32 %v218, %v271
    %v273 = vpop.f32.mrb[0].mxu0
    %274 = vdwg.mxu0
    %v275 = vld [vmem:[#allocation2 + $0x10] sm:$0xf]
    %v276 = vld [vmem:[#allocation2 + $0x14] sm:$0xf]
    %v277 = vld [vmem:[#allocation2 + $0x18] sm:$0xf]
    %v278 = vld [vmem:[#allocation2 + $0x1c] sm:$0xf]
    %v279 = vld [vmem:[#allocation5 + $0x3b] sm:$0x1]
    %v280 = vlaneseq
    %v281 = vshrl.u32 %v280, 7
    %v282 = vsub.s32 0, %v281
    %v283 = vrot.slane %v279, %v282
    %v288 = vunpack.c.l.b16 %v275
    %v289 = vunpack.c.l.b16 %v276
    %v290 = vunpack.c.l.b16 %v277
    %v291 = vunpack.c.l.b16 %v278
    %v292 = vpack.c.b16 %v289, %v288
    %v293 = vpack.c.b16 %v291, %v290
    %296 = vmatprep.subr.bf16.mxu0 0
    %297 = vmatpush1.bf16.msra.mxu0 %v292
    %298 = vmatprep.subr.bf16.mxu0 0
    %299 = vmatpush1.bf16.msra.mxu0 %v293
    %300 = vmatprep.subr.bf16.mxu0 0
    %301 = vmatpush1.bf16.msra.mxu0 0
    %302 = vmatprep.subr.bf16.mxu0 0
    %303 = vmatpush1.bf16.msra.mxu0 0
    %304 = vmatprep.subr.bf16.mxu0 0
    %305 = vmatpush1.bf16.msra.mxu0 0
    %306 = vmatprep.subr.bf16.mxu0 0
    %307 = vmatpush1.bf16.msra.mxu0 0
    %308 = vmatprep.subr.bf16.mxu0 0
    %309 = vmatpush1.bf16.msra.mxu0 0
    %310 = vmatprep.subr.bf16.mxu0 0
    %311 = vmatpush1.bf16.msra.mxu0 0
    %312 = vmatprep.subr.bf16.mxu0 0
    %313 = vmatpush1.bf16.msra.mxu0 0
    %314 = vmatprep.subr.bf16.mxu0 0
    %315 = vmatpush1.bf16.msra.mxu0 0
    %316 = vmatprep.subr.bf16.mxu0 0
    %317 = vmatpush1.bf16.msra.mxu0 0
    %318 = vmatprep.subr.bf16.mxu0 0
    %319 = vmatpush1.bf16.msra.mxu0 0
    %320 = vmatprep.subr.bf16.mxu0 0
    %321 = vmatpush1.bf16.msra.mxu0 0
    %322 = vmatprep.subr.bf16.mxu0 0
    %323 = vmatpush1.bf16.msra.mxu0 0
    %324 = vmatprep.subr.bf16.mxu0 0
    %325 = vmatpush1.bf16.msra.mxu0 0
    %326 = vmatprep.subr.bf16.mxu0 0
    %327 = vmatpush1.bf16.msra.mxu0 0
    %328 = vmatprep.mubr.bf16.mxu0 0
    %329 = vmatmul.mubr.bf16.gmra.mrb[0].mxu0 %v232
    %v330 = vpop.f32.mrb[0].mxu0
    %v331 = vadd.f32 %v283, %v330
    %v332 = vpop.f32.mrb[0].mxu0
    %v333 = vpop.f32.mrb[0].mxu0
    %v334 = vadd.f32 %v283, %v333
    %v335 = vpop.f32.mrb[0].mxu0
    %336 = vdwg.mxu0
    %v337 = vld [vmem:[#allocation2 + $0x20] sm:$0xf]
    %v338 = vld [vmem:[#allocation2 + $0x24] sm:$0xf]
    %v339 = vld [vmem:[#allocation2 + $0x28] sm:$0xf]
    %v340 = vld [vmem:[#allocation2 + $0x2c] sm:$0xf]
    %v341 = vld [vmem:[#allocation5 + $0x3c] sm:$0x1]
    %v342 = vlaneseq
    %v343 = vshrl.u32 %v342, 7
    %v344 = vsub.s32 0, %v343
    %v345 = vrot.slane %v341, %v344
    %v350 = vunpack.c.l.b16 %v337
    %v351 = vunpack.c.l.b16 %v338
    %v352 = vunpack.c.l.b16 %v339
    %v353 = vunpack.c.l.b16 %v340
    %v354 = vpack.c.b16 %v351, %v350
    %v355 = vpack.c.b16 %v353, %v352
    %358 = vmatprep.subr.bf16.mxu0 0
    %359 = vmatpush1.bf16.msra.mxu0 %v354
    %360 = vmatprep.subr.bf16.mxu0 0
    %361 = vmatpush1.bf16.msra.mxu0 %v355
    %362 = vmatprep.subr.bf16.mxu0 0
    %363 = vmatpush1.bf16.msra.mxu0 0
    %364 = vmatprep.subr.bf16.mxu0 0
    %365 = vmatpush1.bf16.msra.mxu0 0
    %366 = vmatprep.subr.bf16.mxu0 0
    %367 = vmatpush1.bf16.msra.mxu0 0
    %368 = vmatprep.subr.bf16.mxu0 0
    %369 = vmatpush1.bf16.msra.mxu0 0
    %370 = vmatprep.subr.bf16.mxu0 0
    %371 = vmatpush1.bf16.msra.mxu0 0
    %372 = vmatprep.subr.bf16.mxu0 0
    %373 = vmatpush1.bf16.msra.mxu0 0
    %374 = vmatprep.subr.bf16.mxu0 0
    %375 = vmatpush1.bf16.msra.mxu0 0
    %376 = vmatprep.subr.bf16.mxu0 0
    %377 = vmatpush1.bf16.msra.mxu0 0
    %378 = vmatprep.subr.bf16.mxu0 0
    %379 = vmatpush1.bf16.msra.mxu0 0
    %380 = vmatprep.subr.bf16.mxu0 0
    %381 = vmatpush1.bf16.msra.mxu0 0
    %382 = vmatprep.subr.bf16.mxu0 0
    %383 = vmatpush1.bf16.msra.mxu0 0
    %384 = vmatprep.subr.bf16.mxu0 0
    %385 = vmatpush1.bf16.msra.mxu0 0
    %386 = vmatprep.subr.bf16.mxu0 0
    %387 = vmatpush1.bf16.msra.mxu0 0
    %388 = vmatprep.subr.bf16.mxu0 0
    %389 = vmatpush1.bf16.msra.mxu0 0
    %390 = vmatprep.mubr.bf16.mxu0 0
    %391 = vmatmul.mubr.bf16.gmra.mrb[0].mxu0 %v232
    %v392 = vpop.f32.mrb[0].mxu0
    %v393 = vadd.f32 %v345, %v392
    %v394 = vpop.f32.mrb[0].mxu0
    %v395 = vpop.f32.mrb[0].mxu0
    %v396 = vadd.f32 %v345, %v395
    %v397 = vpop.f32.mrb[0].mxu0
    %398 = vdwg.mxu0
    %v399 = vpack.c.bf16 %v272, %v269
    %v400 = vpack.c.bf16 %v334, %v331
    %v401 = vpack.c.bf16 %v396, %v393
    %v402 = vld [vmem:[#allocation2 + $0x30] sm:$0xf]
    %v403 = vld [vmem:[#allocation2 + $0x34] sm:$0xf]
    %v404 = vld [vmem:[#allocation2 + $0x38] sm:$0xf]
    %v405 = vld [vmem:[#allocation2 + $0x3c] sm:$0xf]
    %v406 = vld [vmem:[#allocation5 + $0x3d] sm:$0x1]
    %v407 = vlaneseq
    %v408 = vshrl.u32 %v407, 7
    %v409 = vsub.s32 0, %v408
    %v410 = vrot.slane %v406, %v409
    %v415 = vunpack.c.l.b16 %v402
    %v416 = vunpack.c.l.b16 %v403
    %v417 = vunpack.c.l.b16 %v404
    %v418 = vunpack.c.l.b16 %v405
    %v419 = vpack.c.b16 %v416, %v415
    %v420 = vpack.c.b16 %v418, %v417
    %423 = vmatprep.subr.bf16.mxu0 0
    %424 = vmatpush1.bf16.msra.mxu0 %v419
    %425 = vmatprep.subr.bf16.mxu0 0
    %426 = vmatpush1.bf16.msra.mxu0 %v420
    %427 = vmatprep.subr.bf16.mxu0 0
    %428 = vmatpush1.bf16.msra.mxu0 0
    %429 = vmatprep.subr.bf16.mxu0 0
    %430 = vmatpush1.bf16.msra.mxu0 0
    %431 = vmatprep.subr.bf16.mxu0 0
    %432 = vmatpush1.bf16.msra.mxu0 0
    %433 = vmatprep.subr.bf16.mxu0 0
    %434 = vmatpush1.bf16.msra.mxu0 0
    %435 = vmatprep.subr.bf16.mxu0 0
    %436 = vmatpush1.bf16.msra.mxu0 0
    %437 = vmatprep.subr.bf16.mxu0 0
    %438 = vmatpush1.bf16.msra.mxu0 0
    %439 = vmatprep.subr.bf16.mxu0 0
    %440 = vmatpush1.bf16.msra.mxu0 0
    %441 = vmatprep.subr.bf16.mxu0 0
    %442 = vmatpush1.bf16.msra.mxu0 0
    %443 = vmatprep.subr.bf16.mxu0 0
    %444 = vmatpush1.bf16.msra.mxu0 0
    %445 = vmatprep.subr.bf16.mxu0 0
    %446 = vmatpush1.bf16.msra.mxu0 0
    %447 = vmatprep.subr.bf16.mxu0 0
    %448 = vmatpush1.bf16.msra.mxu0 0
    %449 = vmatprep.subr.bf16.mxu0 0
    %450 = vmatpush1.bf16.msra.mxu0 0
    %451 = vmatprep.subr.bf16.mxu0 0
    %452 = vmatpush1.bf16.msra.mxu0 0
    %453 = vmatprep.subr.bf16.mxu0 0
    %454 = vmatpush1.bf16.msra.mxu0 0
    %455 = vmatprep.mubr.bf16.mxu0 0
    %456 = vmatmul.mubr.bf16.gmra.mrb[0].mxu0 %v232
    %v457 = vpop.f32.mrb[0].mxu0
    %v458 = vadd.f32 %v410, %v457
    %v459 = vpop.f32.mrb[0].mxu0
    %v460 = vpop.f32.mrb[0].mxu0
    %v461 = vadd.f32 %v410, %v460
    %v462 = vpop.f32.mrb[0].mxu0
    %463 = vdwg.mxu0
    %v464 = vld [vmem:[#allocation2 + $0x40] sm:$0xf]
    %v465 = vld [vmem:[#allocation2 + $0x44] sm:$0xf]
    %v466 = vld [vmem:[#allocation2 + $0x48] sm:$0xf]
    %v467 = vld [vmem:[#allocation2 + $0x4c] sm:$0xf]
    %v468 = vld [vmem:[#allocation5 + $0x3e] sm:$0x1]
    %v469 = vlaneseq
    %v470 = vshrl.u32 %v469, 7
    %v471 = vsub.s32 0, %v470
    %v472 = vrot.slane %v468, %v471
    %v477 = vunpack.c.l.b16 %v464
    %v478 = vunpack.c.l.b16 %v465
    %v479 = vunpack.c.l.b16 %v466
    %v480 = vunpack.c.l.b16 %v467
    %v481 = vpack.c.b16 %v478, %v477
    %v482 = vpack.c.b16 %v480, %v479
    %485 = vmatprep.subr.bf16.mxu0 0
    %486 = vmatpush1.bf16.msra.mxu0 %v481
    %487 = vmatprep.subr.bf16.mxu0 0
    %488 = vmatpush1.bf16.msra.mxu0 %v482
    %489 = vmatprep.subr.bf16.mxu0 0
    %490 = vmatpush1.bf16.msra.mxu0 0
    %491 = vmatprep.subr.bf16.mxu0 0
    %492 = vmatpush1.bf16.msra.mxu0 0
    %493 = vmatprep.subr.bf16.mxu0 0
    %494 = vmatpush1.bf16.msra.mxu0 0
    %495 = vmatprep.subr.bf16.mxu0 0
    %496 = vmatpush1.bf16.msra.mxu0 0
    %497 = vmatprep.subr.bf16.mxu0 0
    %498 = vmatpush1.bf16.msra.mxu0 0
    %499 = vmatprep.subr.bf16.mxu0 0
    %500 = vmatpush1.bf16.msra.mxu0 0
    %501 = vmatprep.subr.bf16.mxu0 0
    %502 = vmatpush1.bf16.msra.mxu0 0
    %503 = vmatprep.subr.bf16.mxu0 0
    %504 = vmatpush1.bf16.msra.mxu0 0
    %505 = vmatprep.subr.bf16.mxu0 0
    %506 = vmatpush1.bf16.msra.mxu0 0
    %507 = vmatprep.subr.bf16.mxu0 0
    %508 = vmatpush1.bf16.msra.mxu0 0
    %509 = vmatprep.subr.bf16.mxu0 0
    %510 = vmatpush1.bf16.msra.mxu0 0
    %511 = vmatprep.subr.bf16.mxu0 0
    %512 = vmatpush1.bf16.msra.mxu0 0
    %513 = vmatprep.subr.bf16.mxu0 0
    %514 = vmatpush1.bf16.msra.mxu0 0
    %515 = vmatprep.subr.bf16.mxu0 0
    %516 = vmatpush1.bf16.msra.mxu0 0
    %517 = vmatprep.mubr.bf16.mxu0 0
    %518 = vmatmul.mubr.bf16.gmra.mrb[0].mxu0 %v232
    %v519 = vpop.f32.mrb[0].mxu0
    %v520 = vadd.f32 %v472, %v519
    %v521 = vpop.f32.mrb[0].mxu0
    %v522 = vpop.f32.mrb[0].mxu0
    %v523 = vadd.f32 %v472, %v522
    %v524 = vpop.f32.mrb[0].mxu0
    %525 = vdwg.mxu0
    %v526 = vld [vmem:[#allocation2 + $0x50] sm:$0xf]
    %v527 = vld [vmem:[#allocation2 + $0x54] sm:$0xf]
    %v528 = vld [vmem:[#allocation2 + $0x58] sm:$0xf]
    %v529 = vld [vmem:[#allocation2 + $0x5c] sm:$0xf]
    %v530 = vld [vmem:[#allocation5 + $0x3f] sm:$0x1]
    %v531 = vlaneseq
    %v532 = vshrl.u32 %v531, 7
    %v533 = vsub.s32 0, %v532
    %v534 = vrot.slane %v530, %v533
    %v539 = vunpack.c.l.b16 %v526
    %v540 = vunpack.c.l.b16 %v527
    %v541 = vunpack.c.l.b16 %v528
    %v542 = vunpack.c.l.b16 %v529
    %v543 = vpack.c.b16 %v540, %v539
    %v544 = vpack.c.b16 %v542, %v541
    %547 = vmatprep.subr.bf16.mxu0 0
    %548 = vmatpush1.bf16.msra.mxu0 %v543
    %549 = vmatprep.subr.bf16.mxu0 0
    %550 = vmatpush1.bf16.msra.mxu0 %v544
    %551 = vmatprep.subr.bf16.mxu0 0
    %552 = vmatpush1.bf16.msra.mxu0 0
    %553 = vmatprep.subr.bf16.mxu0 0
    %554 = vmatpush1.bf16.msra.mxu0 0
    %555 = vmatprep.subr.bf16.mxu0 0
    %556 = vmatpush1.bf16.msra.mxu0 0
    %557 = vmatprep.subr.bf16.mxu0 0
    %558 = vmatpush1.bf16.msra.mxu0 0
    %559 = vmatprep.subr.bf16.mxu0 0
    %560 = vmatpush1.bf16.msra.mxu0 0
    %561 = vmatprep.subr.bf16.mxu0 0
    %562 = vmatpush1.bf16.msra.mxu0 0
    %563 = vmatprep.subr.bf16.mxu0 0
    %564 = vmatpush1.bf16.msra.mxu0 0
    %565 = vmatprep.subr.bf16.mxu0 0
    %566 = vmatpush1.bf16.msra.mxu0 0
    %567 = vmatprep.subr.bf16.mxu0 0
    %568 = vmatpush1.bf16.msra.mxu0 0
    %569 = vmatprep.subr.bf16.mxu0 0
    %570 = vmatpush1.bf16.msra.mxu0 0
    %571 = vmatprep.subr.bf16.mxu0 0
    %572 = vmatpush1.bf16.msra.mxu0 0
    %573 = vmatprep.subr.bf16.mxu0 0
    %574 = vmatpush1.bf16.msra.mxu0 0
    %575 = vmatprep.subr.bf16.mxu0 0
    %576 = vmatpush1.bf16.msra.mxu0 0
    %577 = vmatprep.subr.bf16.mxu0 0
    %578 = vmatpush1.bf16.msra.mxu0 0
    %579 = vmatprep.mubr.bf16.mxu0 0
    %580 = vmatmul.mubr.bf16.gmra.mrb[0].mxu0 %v232
    %v581 = vpop.f32.mrb[0].mxu0
    %v582 = vadd.f32 %v534, %v581
    %v583 = vpop.f32.mrb[0].mxu0
    %v584 = vpop.f32.mrb[0].mxu0
    %v585 = vadd.f32 %v534, %v584
    %v586 = vpop.f32.mrb[0].mxu0
    %587 = vdwg.mxu0
    %v588 = vpack.c.bf16 %v461, %v458
    %v589 = vpack.c.bf16 %v523, %v520
    %v590 = vpack.c.bf16 %v585, %v582
    %vm591 = vcmask 130048
    %v593 = vsel %vm591, %v399, 0
    %v596 = vsel %vm591, %v400, 0
    %598 = vmatprep.subr.bf16.mxu0 0
    %599 = vmatpush1.bf16.xpose.msra.mxu0 %v596
    %600 = vmatprep.subr.bf16.mxu0 0
    %601 = vmatpush1.bf16.xpose.msra.mxu0 0
    %602 = vmatprep.subr.bf16.mxu0 0
    %603 = vmatpush1.bf16.xpose.msra.mxu0 0
    %604 = vmatprep.subr.bf16.mxu0 0
    %605 = vmatpush1.bf16.xpose.msra.mxu0 0
    %606 = vmatprep.subr.bf16.mxu0 0
    %607 = vmatpush1.bf16.xpose.msra.mxu0 0
    %608 = vmatprep.subr.bf16.mxu0 0
    %609 = vmatpush1.bf16.xpose.msra.mxu0 0
    %610 = vmatprep.subr.bf16.mxu0 0
    %611 = vmatpush1.bf16.xpose.msra.mxu0 0
    %612 = vmatprep.subr.bf16.mxu0 0
    %613 = vmatpush1.bf16.xpose.msra.mxu0 0
    %614 = vmatprep.subr.bf16.mxu0 0
    %615 = vmatpush1.bf16.xpose.msra.mxu0 0
    %616 = vmatprep.subr.bf16.mxu0 0
    %617 = vmatpush1.bf16.xpose.msra.mxu0 0
    %618 = vmatprep.subr.bf16.mxu0 0
    %619 = vmatpush1.bf16.xpose.msra.mxu0 0
    %620 = vmatprep.subr.bf16.mxu0 0
    %621 = vmatpush1.bf16.xpose.msra.mxu0 0
    %622 = vmatprep.subr.bf16.mxu0 0
    %623 = vmatpush1.bf16.xpose.msra.mxu0 0
    %624 = vmatprep.subr.bf16.mxu0 0
    %625 = vmatpush1.bf16.xpose.msra.mxu0 0
    %626 = vmatprep.subr.bf16.mxu0 0
    %627 = vmatpush1.bf16.xpose.msra.mxu0 0
    %628 = vmatprep.subr.bf16.mxu0 0
    %629 = vmatpush1.bf16.xpose.msra.mxu0 0
    %630 = vmatprep.mubr.bf16.mxu0 0
    %631 = vmatmul.mubr.bf16.gmra.mrb[0].mxu0 %v593
    %v632 = vpop.f32.mrb[0].mxu0
    %v633 = vadd.f32 0.0, %v632
    %v634 = vpop.f32.mrb[0].mxu0
    %v635 = vpop.f32.mrb[0].mxu0
    %v636 = vpop.f32.mrb[0].mxu0
    %637 = vdwg.mxu0
    %v639 = vsel %vm591, %v588, 0
    %v642 = vsel %vm591, %v589, 0
    %644 = vmatprep.subr.bf16.mxu0 0
    %645 = vmatpush1.bf16.xpose.msra.mxu0 %v642
    %646 = vmatprep.subr.bf16.mxu0 0
    %647 = vmatpush1.bf16.xpose.msra.mxu0 0
    %648 = vmatprep.subr.bf16.mxu0 0
    %649 = vmatpush1.bf16.xpose.msra.mxu0 0
    %650 = vmatprep.subr.bf16.mxu0 0
    %651 = vmatpush1.bf16.xpose.msra.mxu0 0
    %652 = vmatprep.subr.bf16.mxu0 0
    %653 = vmatpush1.bf16.xpose.msra.mxu0 0
    %654 = vmatprep.subr.bf16.mxu0 0
    %655 = vmatpush1.bf16.xpose.msra.mxu0 0
    %656 = vmatprep.subr.bf16.mxu0 0
    %657 = vmatpush1.bf16.xpose.msra.mxu0 0
    %658 = vmatprep.subr.bf16.mxu0 0
    %659 = vmatpush1.bf16.xpose.msra.mxu0 0
    %660 = vmatprep.subr.bf16.mxu0 0
    %661 = vmatpush1.bf16.xpose.msra.mxu0 0
    %662 = vmatprep.subr.bf16.mxu0 0
    %663 = vmatpush1.bf16.xpose.msra.mxu0 0
    %664 = vmatprep.subr.bf16.mxu0 0
    %665 = vmatpush1.bf16.xpose.msra.mxu0 0
    %666 = vmatprep.subr.bf16.mxu0 0
    %667 = vmatpush1.bf16.xpose.msra.mxu0 0
    %668 = vmatprep.subr.bf16.mxu0 0
    %669 = vmatpush1.bf16.xpose.msra.mxu0 0
    %670 = vmatprep.subr.bf16.mxu0 0
    %671 = vmatpush1.bf16.xpose.msra.mxu0 0
    %672 = vmatprep.subr.bf16.mxu0 0
    %673 = vmatpush1.bf16.xpose.msra.mxu0 0
    %674 = vmatprep.subr.bf16.mxu0 0
    %675 = vmatpush1.bf16.xpose.msra.mxu0 0
    %676 = vmatprep.mubr.bf16.mxu0 0
    %677 = vmatmul.mubr.bf16.gmra.mrb[0].mxu0 %v639
    %v678 = vpop.f32.mrb[0].mxu0
    %v679 = vadd.f32 0.0, %v678
    %v680 = vpop.f32.mrb[0].mxu0
    %v681 = vpop.f32.mrb[0].mxu0
    %v682 = vpop.f32.mrb[0].mxu0
    %683 = vdwg.mxu0
    %v685 = vrot.slane %v399, 4
    %v687 = vrot.slane %v400, 4
    %v689 = vsel %vm591, %v685, 0
    %v692 = vsel %vm591, %v687, 0
    %694 = vmatprep.subr.bf16.mxu0 0
    %695 = vmatpush1.bf16.xpose.msra.mxu0 %v692
    %696 = vmatprep.subr.bf16.mxu0 0
    %697 = vmatpush1.bf16.xpose.msra.mxu0 0
    %698 = vmatprep.subr.bf16.mxu0 0
    %699 = vmatpush1.bf16.xpose.msra.mxu0 0
    %700 = vmatprep.subr.bf16.mxu0 0
    %701 = vmatpush1.bf16.xpose.msra.mxu0 0
    %702 = vmatprep.subr.bf16.mxu0 0
    %703 = vmatpush1.bf16.xpose.msra.mxu0 0
    %704 = vmatprep.subr.bf16.mxu0 0
    %705 = vmatpush1.bf16.xpose.msra.mxu0 0
    %706 = vmatprep.subr.bf16.mxu0 0
    %707 = vmatpush1.bf16.xpose.msra.mxu0 0
    %708 = vmatprep.subr.bf16.mxu0 0
    %709 = vmatpush1.bf16.xpose.msra.mxu0 0
    %710 = vmatprep.subr.bf16.mxu0 0
    %711 = vmatpush1.bf16.xpose.msra.mxu0 0
    %712 = vmatprep.subr.bf16.mxu0 0
    %713 = vmatpush1.bf16.xpose.msra.mxu0 0
    %714 = vmatprep.subr.bf16.mxu0 0
    %715 = vmatpush1.bf16.xpose.msra.mxu0 0
    %716 = vmatprep.subr.bf16.mxu0 0
    %717 = vmatpush1.bf16.xpose.msra.mxu0 0
    %718 = vmatprep.subr.bf16.mxu0 0
    %719 = vmatpush1.bf16.xpose.msra.mxu0 0
    %720 = vmatprep.subr.bf16.mxu0 0
    %721 = vmatpush1.bf16.xpose.msra.mxu0 0
    %722 = vmatprep.subr.bf16.mxu0 0
    %723 = vmatpush1.bf16.xpose.msra.mxu0 0
    %724 = vmatprep.subr.bf16.mxu0 0
    %725 = vmatpush1.bf16.xpose.msra.mxu0 0
    %726 = vmatprep.mubr.bf16.mxu0 0
    %727 = vmatmul.mubr.bf16.gmra.mrb[0].mxu0 %v689
    %v728 = vpop.f32.mrb[0].mxu0
    %v729 = vadd.f32 0.0, %v728
    %v730 = vpop.f32.mrb[0].mxu0
    %v731 = vpop.f32.mrb[0].mxu0
    %v732 = vpop.f32.mrb[0].mxu0
    %733 = vdwg.mxu0
    %v735 = vrot.slane %v588, 4
    %v737 = vrot.slane %v589, 4
    %v739 = vsel %vm591, %v735, 0
    %v742 = vsel %vm591, %v737, 0
    %744 = vmatprep.subr.bf16.mxu0 0
    %745 = vmatpush1.bf16.xpose.msra.mxu0 %v742
    %746 = vmatprep.subr.bf16.mxu0 0
    %747 = vmatpush1.bf16.xpose.msra.mxu0 0
    %748 = vmatprep.subr.bf16.mxu0 0
    %749 = vmatpush1.bf16.xpose.msra.mxu0 0
    %750 = vmatprep.subr.bf16.mxu0 0
    %751 = vmatpush1.bf16.xpose.msra.mxu0 0
    %752 = vmatprep.subr.bf16.mxu0 0
    %753 = vmatpush1.bf16.xpose.msra.mxu0 0
    %754 = vmatprep.subr.bf16.mxu0 0
    %755 = vmatpush1.bf16.xpose.msra.mxu0 0
    %756 = vmatprep.subr.bf16.mxu0 0
    %757 = vmatpush1.bf16.xpose.msra.mxu0 0
    %758 = vmatprep.subr.bf16.mxu0 0
    %759 = vmatpush1.bf16.xpose.msra.mxu0 0
    %760 = vmatprep.subr.bf16.mxu0 0
    %761 = vmatpush1.bf16.xpose.msra.mxu0 0
    %762 = vmatprep.subr.bf16.mxu0 0
    %763 = vmatpush1.bf16.xpose.msra.mxu0 0
    %764 = vmatprep.subr.bf16.mxu0 0
    %765 = vmatpush1.bf16.xpose.msra.mxu0 0
    %766 = vmatprep.subr.bf16.mxu0 0
    %767 = vmatpush1.bf16.xpose.msra.mxu0 0
    %768 = vmatprep.subr.bf16.mxu0 0
    %769 = vmatpush1.bf16.xpose.msra.mxu0 0
    %770 = vmatprep.subr.bf16.mxu0 0
    %771 = vmatpush1.bf16.xpose.msra.mxu0 0
    %772 = vmatprep.subr.bf16.mxu0 0
    %773 = vmatpush1.bf16.xpose.msra.mxu0 0
    %774 = vmatprep.subr.bf16.mxu0 0
    %775 = vmatpush1.bf16.xpose.msra.mxu0 0
    %776 = vmatprep.mubr.bf16.mxu0 0
    %777 = vmatmul.mubr.bf16.gmra.mrb[0].mxu0 %v739
    %v778 = vpop.f32.mrb[0].mxu0
    %v779 = vadd.f32 0.0, %v778
    %v780 = vpop.f32.mrb[0].mxu0
    %v781 = vpop.f32.mrb[0].mxu0
    %v782 = vpop.f32.mrb[0].mxu0
    %783 = vdwg.mxu0
    %v784 = vmul.f32 %v633, 0.25
    %v785 = vmul.f32 %v679, 0.25
    %v786 = vmul.f32 %v729, 0.25
    %v787 = vmul.f32 %v779, 0.25
    %v788 = vadd.f32 %v784, %v204
    %v789 = vadd.f32 %v785, %v204
    %v790 = vadd.f32 %v786, %v208
    %v791 = vadd.f32 %v787, %v208
    %vm792 = vcmask 64512
    %v793 = vsel %vm792, %v788, -inf
    %794 = vmax.xlane.f32.xlu0 %v793
    %v795 = vpop.xlane.xlu0 %794
    %v796 = vsel %vm792, %v789, -inf
    %797 = vmax.xlane.f32.xlu0 %v796
    %v798 = vpop.xlane.xlu0 %797
    %v799 = vsel %vm792, %v790, -inf
    %800 = vmax.xlane.f32.xlu0 %v799
    %v801 = vpop.xlane.xlu0 %800
    %v802 = vsel %vm792, %v791, -inf
    %803 = vmax.xlane.f32.xlu0 %v802
    %v804 = vpop.xlane.xlu0 %803
    %v805 = vsub.f32 %v788, %v795
    %v806 = vsub.f32 %v789, %v798
    %v807 = vsub.f32 %v790, %v801
    %v808 = vsub.f32 %v791, %v804
    %v809 = vmul.f32 %v805, 1.442695
    %v810 = vpow.pop %v809
    %v811 = vmul.f32 %v806, 1.442695
    %v812 = vpow.pop %v811
    %v813 = vmul.f32 %v807, 1.442695
    %v814 = vpow.pop %v813
    %v815 = vmul.f32 %v808, 1.442695
    %v816 = vpow.pop %v815
    %v817 = vsel %vm792, %v810, 0.0
    %818 = vadd.xlane.f32.xlu0 %v817
    %v819 = vpop.xlane.xlu0 %818
    %v820 = vsel %vm792, %v812, 0.0
    %821 = vadd.xlane.f32.xlu0 %v820
    %v822 = vpop.xlane.xlu0 %821
    %v823 = vsel %vm792, %v814, 0.0
    %824 = vadd.xlane.f32.xlu0 %v823
    %v825 = vpop.xlane.xlu0 %824
    %v826 = vsel %vm792, %v816, 0.0
    %827 = vadd.xlane.f32.xlu0 %v826
    %v828 = vpop.xlane.xlu0 %827
    %v829 = vrcp.pop %v819
    %v830 = vrcp.pop %v822
    %v831 = vrcp.pop %v825
    %v832 = vrcp.pop %v828
    %v833 = vmul.f32 %v810, %v829
    %v834 = vmul.f32 %v812, %v830
    %v835 = vmul.f32 %v814, %v831
    %v836 = vmul.f32 %v816, %v832
    %v837 = vpack.c.bf16 %v834, %v833
    %v838 = vpack.c.bf16 %v836, %v835
    %v839 = vld [vmem:[#allocation2 + $0x60] sm:$0xf]
    %v840 = vld [vmem:[#allocation2 + $0x64] sm:$0xf]
    %v841 = vld [vmem:[#allocation2 + $0x68] sm:$0xf]
    %v842 = vld [vmem:[#allocation2 + $0x6c] sm:$0xf]
    %v843 = vld [vmem:[#allocation5 + $0x40] sm:$0x1]
    %v845 = vsel %vm792, %v837, 0
    %vm847 = vcmask 1043456
    %v849 = vsel %vm847, %v401, 0
    %851 = vmatprep.subr.bf16.mxu0 0
    %852 = vmatpush1.bf16.msra.mxu0 %v849
    %853 = vmatprep.subr.bf16.mxu0 0
    %854 = vmatpush1.bf16.msra.mxu0 0
    %855 = vmatprep.subr.bf16.mxu0 0
    %856 = vmatpush1.bf16.msra.mxu0 0
    %857 = vmatprep.subr.bf16.mxu0 0
    %858 = vmatpush1.bf16.msra.mxu0 0
    %859 = vmatprep.subr.bf16.mxu0 0
    %860 = vmatpush1.bf16.msra.mxu0 0
    %861 = vmatprep.subr.bf16.mxu0 0
    %862 = vmatpush1.bf16.msra.mxu0 0
    %863 = vmatprep.subr.bf16.mxu0 0
    %864 = vmatpush1.bf16.msra.mxu0 0
    %865 = vmatprep.subr.bf16.mxu0 0
    %866 = vmatpush1.bf16.msra.mxu0 0
    %867 = vmatprep.subr.bf16.mxu0 0
    %868 = vmatpush1.bf16.msra.mxu0 0
    %869 = vmatprep.subr.bf16.mxu0 0
    %870 = vmatpush1.bf16.msra.mxu0 0
    %871 = vmatprep.subr.bf16.mxu0 0
    %872 = vmatpush1.bf16.msra.mxu0 0
    %873 = vmatprep.subr.bf16.mxu0 0
    %874 = vmatpush1.bf16.msra.mxu0 0
    %875 = vmatprep.subr.bf16.mxu0 0
    %876 = vmatpush1.bf16.msra.mxu0 0
    %877 = vmatprep.subr.bf16.mxu0 0
    %878 = vmatpush1.bf16.msra.mxu0 0
    %879 = vmatprep.subr.bf16.mxu0 0
    %880 = vmatpush1.bf16.msra.mxu0 0
    %881 = vmatprep.subr.bf16.mxu0 0
    %882 = vmatpush1.bf16.msra.mxu0 0
    %883 = vmatprep.mubr.bf16.mxu0 0
    %884 = vmatmul.mubr.bf16.gmra.mrb[0].mxu0 %v845
    %v885 = vpop.f32.mrb[0].mxu0
    %v886 = vadd.f32 0.0, %v885
    %v887 = vpop.f32.mrb[0].mxu0
    %v888 = vpop.f32.mrb[0].mxu0
    %v889 = vpop.f32.mrb[0].mxu0
    %890 = vdwg.mxu0
    %v891 = vpack.c.bf16 %v886, %v886
    %v894 = vunpack.c.l.b16 %v839
    %v895 = vunpack.c.l.b16 %v840
    %v896 = vpack.c.b16 %v895, %v894
    %v899 = vsel %vm591, %v891, 0
    %901 = vmatprep.subr.bf16.mxu0 0
    %902 = vmatpush1.bf16.msra.mxu0 %v896
    %903 = vmatprep.subr.bf16.mxu0 0
    %904 = vmatpush1.bf16.msra.mxu0 0
    %905 = vmatprep.subr.bf16.mxu0 0
    %906 = vmatpush1.bf16.msra.mxu0 0
    %907 = vmatprep.subr.bf16.mxu0 0
    %908 = vmatpush1.bf16.msra.mxu0 0
    %909 = vmatprep.subr.bf16.mxu0 0
    %910 = vmatpush1.bf16.msra.mxu0 0
    %911 = vmatprep.subr.bf16.mxu0 0
    %912 = vmatpush1.bf16.msra.mxu0 0
    %913 = vmatprep.subr.bf16.mxu0 0
    %914 = vmatpush1.bf16.msra.mxu0 0
    %915 = vmatprep.subr.bf16.mxu0 0
    %916 = vmatpush1.bf16.msra.mxu0 0
    %917 = vmatprep.subr.bf16.mxu0 0
    %918 = vmatpush1.bf16.msra.mxu0 0
    %919 = vmatprep.subr.bf16.mxu0 0
    %920 = vmatpush1.bf16.msra.mxu0 0
    %921 = vmatprep.subr.bf16.mxu0 0
    %922 = vmatpush1.bf16.msra.mxu0 0
    %923 = vmatprep.subr.bf16.mxu0 0
    %924 = vmatpush1.bf16.msra.mxu0 0
    %925 = vmatprep.subr.bf16.mxu0 0
    %926 = vmatpush1.bf16.msra.mxu0 0
    %927 = vmatprep.subr.bf16.mxu0 0
    %928 = vmatpush1.bf16.msra.mxu0 0
    %929 = vmatprep.subr.bf16.mxu0 0
    %930 = vmatpush1.bf16.msra.mxu0 0
    %931 = vmatprep.subr.bf16.mxu0 0
    %932 = vmatpush1.bf16.msra.mxu0 0
    %933 = vmatprep.mubr.bf16.mxu0 0
    %934 = vmatmul.mubr.bf16.gmra.mrb[0].mxu0 %v899
    %v935 = vpop.f32.mrb[0].mxu0
    %v936 = vadd.f32 0.0, %v935
    %v937 = vpop.f32.mrb[0].mxu0
    %v938 = vpop.f32.mrb[0].mxu0
    %v939 = vpop.f32.mrb[0].mxu0
    %940 = vdwg.mxu0
    %v941 = vlaneseq
    %v942 = vshrl.u32 %v941, 7
    %v943 = vsub.s32 0, %v942
    %v944 = vrot.slane %v843, %v943
    %v945 = vadd.f32 %v944, %v936
    %v947 = vrot.slane %v837, 4
    %v949 = vsel %vm792, %v947, 0
    %v952 = vsel %vm847, %v590, 0
    %954 = vmatprep.subr.bf16.mxu0 0
    %955 = vmatpush1.bf16.msra.mxu0 %v952
    %956 = vmatprep.subr.bf16.mxu0 0
    %957 = vmatpush1.bf16.msra.mxu0 0
    %958 = vmatprep.subr.bf16.mxu0 0
    %959 = vmatpush1.bf16.msra.mxu0 0
    %960 = vmatprep.subr.bf16.mxu0 0
    %961 = vmatpush1.bf16.msra.mxu0 0
    %962 = vmatprep.subr.bf16.mxu0 0
    %963 = vmatpush1.bf16.msra.mxu0 0
    %964 = vmatprep.subr.bf16.mxu0 0
    %965 = vmatpush1.bf16.msra.mxu0 0
    %966 = vmatprep.subr.bf16.mxu0 0
    %967 = vmatpush1.bf16.msra.mxu0 0
    %968 = vmatprep.subr.bf16.mxu0 0
    %969 = vmatpush1.bf16.msra.mxu0 0
    %970 = vmatprep.subr.bf16.mxu0 0
    %971 = vmatpush1.bf16.msra.mxu0 0
    %972 = vmatprep.subr.bf16.mxu0 0
    %973 = vmatpush1.bf16.msra.mxu0 0
    %974 = vmatprep.subr.bf16.mxu0 0
    %975 = vmatpush1.bf16.msra.mxu0 0
    %976 = vmatprep.subr.bf16.mxu0 0
    %977 = vmatpush1.bf16.msra.mxu0 0
    %978 = vmatprep.subr.bf16.mxu0 0
    %979 = vmatpush1.bf16.msra.mxu0 0
    %980 = vmatprep.subr.bf16.mxu0 0
    %981 = vmatpush1.bf16.msra.mxu0 0
    %982 = vmatprep.subr.bf16.mxu0 0
    %983 = vmatpush1.bf16.msra.mxu0 0
    %984 = vmatprep.subr.bf16.mxu0 0
    %985 = vmatpush1.bf16.msra.mxu0 0
    %986 = vmatprep.mubr.bf16.mxu0 0
    %987 = vmatmul.mubr.bf16.gmra.mrb[0].mxu0 %v949
    %v988 = vpop.f32.mrb[0].mxu0
    %v989 = vadd.f32 0.0, %v988
    %v990 = vpop.f32.mrb[0].mxu0
    %v991 = vpop.f32.mrb[0].mxu0
    %v992 = vpop.f32.mrb[0].mxu0
    %993 = vdwg.mxu0
    %v994 = vpack.c.bf16 %v989, %v989
    %v997 = vunpack.c.l.b16 %v841
    %v998 = vunpack.c.l.b16 %v842
    %v999 = vpack.c.b16 %v998, %v997
    %v1002 = vsel %vm591, %v994, 0
    %1004 = vmatprep.subr.bf16.mxu0 0
    %1005 = vmatpush1.bf16.msra.mxu0 %v999
    %1006 = vmatprep.subr.bf16.mxu0 0
    %1007 = vmatpush1.bf16.msra.mxu0 0
    %1008 = vmatprep.subr.bf16.mxu0 0
    %1009 = vmatpush1.bf16.msra.mxu0 0
    %1010 = vmatprep.subr.bf16.mxu0 0
    %1011 = vmatpush1.bf16.msra.mxu0 0
    %1012 = vmatprep.subr.bf16.mxu0 0
    %1013 = vmatpush1.bf16.msra.mxu0 0
    %1014 = vmatprep.subr.bf16.mxu0 0
    %1015 = vmatpush1.bf16.msra.mxu0 0
    %1016 = vmatprep.subr.bf16.mxu0 0
    %1017 = vmatpush1.bf16.msra.mxu0 0
    %1018 = vmatprep.subr.bf16.mxu0 0
    %1019 = vmatpush1.bf16.msra.mxu0 0
    %1020 = vmatprep.subr.bf16.mxu0 0
    %1021 = vmatpush1.bf16.msra.mxu0 0
    %1022 = vmatprep.subr.bf16.mxu0 0
    %1023 = vmatpush1.bf16.msra.mxu0 0
    %1024 = vmatprep.subr.bf16.mxu0 0
    %1025 = vmatpush1.bf16.msra.mxu0 0
    %1026 = vmatprep.subr.bf16.mxu0 0
    %1027 = vmatpush1.bf16.msra.mxu0 0
    %1028 = vmatprep.subr.bf16.mxu0 0
    %1029 = vmatpush1.bf16.msra.mxu0 0
    %1030 = vmatprep.subr.bf16.mxu0 0
    %1031 = vmatpush1.bf16.msra.mxu0 0
    %1032 = vmatprep.subr.bf16.mxu0 0
    %1033 = vmatpush1.bf16.msra.mxu0 0
    %1034 = vmatprep.subr.bf16.mxu0 0
    %1035 = vmatpush1.bf16.msra.mxu0 0
    %1036 = vmatprep.mubr.bf16.mxu0 0
    %1037 = vmatmul.mubr.bf16.gmra.mrb[0].mxu0 %v1002
    %v1038 = vpop.f32.mrb[0].mxu0
    %v1039 = vadd.f32 0.0, %v1038
    %v1040 = vpop.f32.mrb[0].mxu0
    %v1041 = vpop.f32.mrb[0].mxu0
    %v1042 = vpop.f32.mrb[0].mxu0
    %1043 = vdwg.mxu0
    %v1044 = vadd.f32 %v945, %v1039
    %v1046 = vrot.slane %v401, 4
    %v1048 = vsel %vm792, %v838, 0
    %v1051 = vsel %vm847, %v1046, 0
    %1053 = vmatprep.subr.bf16.mxu0 0
    %1054 = vmatpush1.bf16.msra.mxu0 %v1051
    %1055 = vmatprep.subr.bf16.mxu0 0
    %1056 = vmatpush1.bf16.msra.mxu0 0
    %1057 = vmatprep.subr.bf16.mxu0 0
    %1058 = vmatpush1.bf16.msra.mxu0 0
    %1059 = vmatprep.subr.bf16.mxu0 0
    %1060 = vmatpush1.bf16.msra.mxu0 0
    %1061 = vmatprep.subr.bf16.mxu0 0
    %1062 = vmatpush1.bf16.msra.mxu0 0
    %1063 = vmatprep.subr.bf16.mxu0 0
    %1064 = vmatpush1.bf16.msra.mxu0 0
    %1065 = vmatprep.subr.bf16.mxu0 0
    %1066 = vmatpush1.bf16.msra.mxu0 0
    %1067 = vmatprep.subr.bf16.mxu0 0
    %1068 = vmatpush1.bf16.msra.mxu0 0
    %1069 = vmatprep.subr.bf16.mxu0 0
    %1070 = vmatpush1.bf16.msra.mxu0 0
    %1071 = vmatprep.subr.bf16.mxu0 0
    %1072 = vmatpush1.bf16.msra.mxu0 0
    %1073 = vmatprep.subr.bf16.mxu0 0
    %1074 = vmatpush1.bf16.msra.mxu0 0
    %1075 = vmatprep.subr.bf16.mxu0 0
    %1076 = vmatpush1.bf16.msra.mxu0 0
    %1077 = vmatprep.subr.bf16.mxu0 0
    %1078 = vmatpush1.bf16.msra.mxu0 0
    %1079 = vmatprep.subr.bf16.mxu0 0
    %1080 = vmatpush1.bf16.msra.mxu0 0
    %1081 = vmatprep.subr.bf16.mxu0 0
    %1082 = vmatpush1.bf16.msra.mxu0 0
    %1083 = vmatprep.subr.bf16.mxu0 0
    %1084 = vmatpush1.bf16.msra.mxu0 0
    %1085 = vmatprep.mubr.bf16.mxu0 0
    %1086 = vmatmul.mubr.bf16.gmra.mrb[0].mxu0 %v1048
    %v1087 = vpop.f32.mrb[0].mxu0
    %v1088 = vadd.f32 0.0, %v1087
    %v1089 = vpop.f32.mrb[0].mxu0
    %v1090 = vpop.f32.mrb[0].mxu0
    %v1091 = vpop.f32.mrb[0].mxu0
    %1092 = vdwg.mxu0
    %v1093 = vpack.c.bf16 %v1088, %v1088
    %v1095 = vsel %vm591, %v1093, 0
    %1097 = vmatprep.subr.bf16.mxu0 0
    %1098 = vmatpush1.bf16.msra.mxu0 %v896
    %1099 = vmatprep.subr.bf16.mxu0 0
    %1100 = vmatpush1.bf16.msra.mxu0 0
    %1101 = vmatprep.subr.bf16.mxu0 0
    %1102 = vmatpush1.bf16.msra.mxu0 0
    %1103 = vmatprep.subr.bf16.mxu0 0
    %1104 = vmatpush1.bf16.msra.mxu0 0
    %1105 = vmatprep.subr.bf16.mxu0 0
    %1106 = vmatpush1.bf16.msra.mxu0 0
    %1107 = vmatprep.subr.bf16.mxu0 0
    %1108 = vmatpush1.bf16.msra.mxu0 0
    %1109 = vmatprep.subr.bf16.mxu0 0
    %1110 = vmatpush1.bf16.msra.mxu0 0
    %1111 = vmatprep.subr.bf16.mxu0 0
    %1112 = vmatpush1.bf16.msra.mxu0 0
    %1113 = vmatprep.subr.bf16.mxu0 0
    %1114 = vmatpush1.bf16.msra.mxu0 0
    %1115 = vmatprep.subr.bf16.mxu0 0
    %1116 = vmatpush1.bf16.msra.mxu0 0
    %1117 = vmatprep.subr.bf16.mxu0 0
    %1118 = vmatpush1.bf16.msra.mxu0 0
    %1119 = vmatprep.subr.bf16.mxu0 0
    %1120 = vmatpush1.bf16.msra.mxu0 0
    %1121 = vmatprep.subr.bf16.mxu0 0
    %1122 = vmatpush1.bf16.msra.mxu0 0
    %1123 = vmatprep.subr.bf16.mxu0 0
    %1124 = vmatpush1.bf16.msra.mxu0 0
    %1125 = vmatprep.subr.bf16.mxu0 0
    %1126 = vmatpush1.bf16.msra.mxu0 0
    %1127 = vmatprep.subr.bf16.mxu0 0
    %1128 = vmatpush1.bf16.msra.mxu0 0
    %1129 = vmatprep.mubr.bf16.mxu0 0
    %1130 = vmatmul.mubr.bf16.gmra.mrb[0].mxu0 %v1095
    %v1131 = vpop.f32.mrb[0].mxu0
    %v1132 = vadd.f32 0.0, %v1131
    %v1133 = vpop.f32.mrb[0].mxu0
    %v1134 = vpop.f32.mrb[0].mxu0
    %v1135 = vpop.f32.mrb[0].mxu0
    %1136 = vdwg.mxu0
    %v1137 = vadd.f32 %v944, %v1132
    %v1139 = vrot.slane %v838, 4
    %v1141 = vrot.slane %v590, 4
    %v1143 = vsel %vm792, %v1139, 0
    %v1146 = vsel %vm847, %v1141, 0
    %1148 = vmatprep.subr.bf16.mxu0 0
    %1149 = vmatpush1.bf16.msra.mxu0 %v1146
    %1150 = vmatprep.subr.bf16.mxu0 0
    %1151 = vmatpush1.bf16.msra.mxu0 0
    %1152 = vmatprep.subr.bf16.mxu0 0
    %1153 = vmatpush1.bf16.msra.mxu0 0
    %1154 = vmatprep.subr.bf16.mxu0 0
    %1155 = vmatpush1.bf16.msra.mxu0 0
    %1156 = vmatprep.subr.bf16.mxu0 0
    %1157 = vmatpush1.bf16.msra.mxu0 0
    %1158 = vmatprep.subr.bf16.mxu0 0
    %1159 = vmatpush1.bf16.msra.mxu0 0
    %1160 = vmatprep.subr.bf16.mxu0 0
    %1161 = vmatpush1.bf16.msra.mxu0 0
    %1162 = vmatprep.subr.bf16.mxu0 0
    %1163 = vmatpush1.bf16.msra.mxu0 0
    %1164 = vmatprep.subr.bf16.mxu0 0
    %1165 = vmatpush1.bf16.msra.mxu0 0
    %1166 = vmatprep.subr.bf16.mxu0 0
    %1167 = vmatpush1.bf16.msra.mxu0 0
    %1168 = vmatprep.subr.bf16.mxu0 0
    %1169 = vmatpush1.bf16.msra.mxu0 0
    %1170 = vmatprep.subr.bf16.mxu0 0
    %1171 = vmatpush1.bf16.msra.mxu0 0
    %1172 = vmatprep.subr.bf16.mxu0 0
    %1173 = vmatpush1.bf16.msra.mxu0 0
    %1174 = vmatprep.subr.bf16.mxu0 0
    %1175 = vmatpush1.bf16.msra.mxu0 0
    %1176 = vmatprep.subr.bf16.mxu0 0
    %1177 = vmatpush1.bf16.msra.mxu0 0
    %1178 = vmatprep.subr.bf16.mxu0 0
    %1179 = vmatpush1.bf16.msra.mxu0 0
    %1180 = vmatprep.mubr.bf16.mxu0 0
    %1181 = vmatmul.mubr.bf16.gmra.mrb[0].mxu0 %v1143
    %v1182 = vpop.f32.mrb[0].mxu0
    %v1183 = vadd.f32 0.0, %v1182
    %v1184 = vpop.f32.mrb[0].mxu0
    %v1185 = vpop.f32.mrb[0].mxu0
    %v1186 = vpop.f32.mrb[0].mxu0
    %1187 = vdwg.mxu0
    %v1188 = vpack.c.bf16 %v1183, %v1183
    %v1190 = vsel %vm591, %v1188, 0
    %1192 = vmatprep.subr.bf16.mxu0 0
    %1193 = vmatpush1.bf16.msra.mxu0 %v999
    %1194 = vmatprep.subr.bf16.mxu0 0
    %1195 = vmatpush1.bf16.msra.mxu0 0
    %1196 = vmatprep.subr.bf16.mxu0 0
    %1197 = vmatpush1.bf16.msra.mxu0 0
    %1198 = vmatprep.subr.bf16.mxu0 0
    %1199 = vmatpush1.bf16.msra.mxu0 0
    %1200 = vmatprep.subr.bf16.mxu0 0
    %1201 = vmatpush1.bf16.msra.mxu0 0
    %1202 = vmatprep.subr.bf16.mxu0 0
    %1203 = vmatpush1.bf16.msra.mxu0 0
    %1204 = vmatprep.subr.bf16.mxu0 0
    %1205 = vmatpush1.bf16.msra.mxu0 0
    %1206 = vmatprep.subr.bf16.mxu0 0
    %1207 = vmatpush1.bf16.msra.mxu0 0
    %1208 = vmatprep.subr.bf16.mxu0 0
    %1209 = vmatpush1.bf16.msra.mxu0 0
    %1210 = vmatprep.subr.bf16.mxu0 0
    %1211 = vmatpush1.bf16.msra.mxu0 0
    %1212 = vmatprep.subr.bf16.mxu0 0
    %1213 = vmatpush1.bf16.msra.mxu0 0
    %1214 = vmatprep.subr.bf16.mxu0 0
    %1215 = vmatpush1.bf16.msra.mxu0 0
    %1216 = vmatprep.subr.bf16.mxu0 0
    %1217 = vmatpush1.bf16.msra.mxu0 0
    %1218 = vmatprep.subr.bf16.mxu0 0
    %1219 = vmatpush1.bf16.msra.mxu0 0
    %1220 = vmatprep.subr.bf16.mxu0 0
    %1221 = vmatpush1.bf16.msra.mxu0 0
    %1222 = vmatprep.subr.bf16.mxu0 0
    %1223 = vmatpush1.bf16.msra.mxu0 0
    %1224 = vmatprep.mubr.bf16.mxu0 0
    %1225 = vmatmul.mubr.bf16.gmra.mrb[0].mxu0 %v1190
    %v1226 = vpop.f32.mrb[0].mxu0
    %v1227 = vadd.f32 0.0, %v1226
    %v1228 = vpop.f32.mrb[0].mxu0
    %v1229 = vpop.f32.mrb[0].mxu0
    %v1230 = vpop.f32.mrb[0].mxu0
    %1231 = vdwg.mxu0
    %v1232 = vadd.f32 %v1137, %v1227
    %v1233 = vadd.f32 %v1044, %v196
    %v1234 = vadd.f32 %v1232, %v197
    %v1235 = vld [vmem:[#allocation5 + $0x41] sm:$0x1]
    %v1236 = vld [vmem:[#allocation5 + $0x42] sm:$0x1]
    %v1237 = vsel %vm69, %v1233, 0.0
    %1238 = vadd.xlane.f32.xlu0 %v1237
    %v1239 = vpop.xlane.xlu0 %1238
    %v1240 = vsel %vm69, %v1234, 0.0
    %1241 = vadd.xlane.f32.xlu0 %v1240
    %v1242 = vpop.xlane.xlu0 %1241
    %v1243 = vmul.f32 %v1239, %v165
    %v1244 = vmul.f32 %v1242, %v165
    %v1245 = vsub.f32 %v1233, %v1243
    %v1246 = vsub.f32 %v1234, %v1244
    %v1247 = vmul.f32 %v1245, %v1245
    %v1248 = vmul.f32 %v1246, %v1246
    %v1249 = vsel %vm69, %v1247, 0.0
    %1250 = vadd.xlane.f32.xlu0 %v1249
    %v1251 = vpop.xlane.xlu0 %1250
    %v1252 = vsel %vm69, %v1248, 0.0
    %1253 = vadd.xlane.f32.xlu0 %v1252
    %v1254 = vpop.xlane.xlu0 %1253
    %v1255 = vmul.f32 %v1251, %v165
    %v1256 = vmul.f32 %v1254, %v165
    %v1257 = vadd.f32 %v1255, 1e-12
    %v1258 = vadd.f32 %v1256, 1e-12
    %v1259 = vrsqrt.pop %v1257
    %v1260 = vrsqrt.pop %v1258
    %v1261 = vmul.f32 %v1245, %v1259
    %v1262 = vmul.f32 %v1246, %v1260
    %v1263 = vlaneseq
    %v1264 = vshrl.u32 %v1263, 7
    %v1265 = vsub.s32 0, %v1264
    %v1266 = vrot.slane %v1235, %v1265
    %v1267 = vmul.f32 %v1261, %v1266
    %v1268 = vmul.f32 %v1262, %v1266
    %v1269 = vlaneseq
    %v1270 = vshrl.u32 %v1269, 7
    %v1271 = vsub.s32 0, %v1270
    %v1272 = vrot.slane %v1236, %v1271
    %v1273 = vadd.f32 %v1267, %v1272
    %v1274 = vadd.f32 %v1268, %v1272
    %v1275 = vpack.c.bf16 %v1274, %v1273
    %v1276 = vld [vmem:[#allocation2 + $0x70] sm:$0xf]
    %v1277 = vld [vmem:[#allocation2 + $0x74] sm:$0xf]
    %v1278 = vld [vmem:[#allocation2 + $0x78] sm:$0xf]
    %v1279 = vld [vmem:[#allocation2 + $0x7c] sm:$0xf]
    %v1280 = vld [vmem:[#allocation5 + $0x43] sm:$0x1]
    %v1281 = vlaneseq
    %v1282 = vshrl.u32 %v1281, 7
    %v1283 = vsub.s32 0, %v1282
    %v1284 = vrot.slane %v1280, %v1283
    %v1289 = vunpack.c.l.b16 %v1276
    %v1290 = vunpack.c.l.b16 %v1277
    %v1291 = vunpack.c.l.b16 %v1278
    %v1292 = vunpack.c.l.b16 %v1279
    %v1293 = vpack.c.b16 %v1290, %v1289
    %v1294 = vpack.c.b16 %v1292, %v1291
    %v1298 = vsel %vm69, %v1275, 0
    %1300 = vmatprep.subr.bf16.mxu0 0
    %1301 = vmatpush1.bf16.msra.mxu0 %v1293
    %1302 = vmatprep.subr.bf16.mxu0 0
    %1303 = vmatpush1.bf16.msra.mxu0 %v1294
    %1304 = vmatprep.subr.bf16.mxu0 0
    %1305 = vmatpush1.bf16.msra.mxu0 0
    %1306 = vmatprep.subr.bf16.mxu0 0
    %1307 = vmatpush1.bf16.msra.mxu0 0
    %1308 = vmatprep.subr.bf16.mxu0 0
    %1309 = vmatpush1.bf16.msra.mxu0 0
    %1310 = vmatprep.subr.bf16.mxu0 0
    %1311 = vmatpush1.bf16.msra.mxu0 0
    %1312 = vmatprep.subr.bf16.mxu0 0
    %1313 = vmatpush1.bf16.msra.mxu0 0
    %1314 = vmatprep.subr.bf16.mxu0 0
    %1315 = vmatpush1.bf16.msra.mxu0 0
    %1316 = vmatprep.subr.bf16.mxu0 0
    %1317 = vmatpush1.bf16.msra.mxu0 0
    %1318 = vmatprep.subr.bf16.mxu0 0
    %1319 = vmatpush1.bf16.msra.mxu0 0
    %1320 = vmatprep.subr.bf16.mxu0 0
    %1321 = vmatpush1.bf16.msra.mxu0 0
    %1322 = vmatprep.subr.bf16.mxu0 0
    %1323 = vmatpush1.bf16.msra.mxu0 0
    %1324 = vmatprep.subr.bf16.mxu0 0
    %1325 = vmatpush1.bf16.msra.mxu0 0
    %1326 = vmatprep.subr.bf16.mxu0 0
    %1327 = vmatpush1.bf16.msra.mxu0 0
    %1328 = vmatprep.subr.bf16.mxu0 0
    %1329 = vmatpush1.bf16.msra.mxu0 0
    %1330 = vmatprep.subr.bf16.mxu0 0
    %1331 = vmatpush1.bf16.msra.mxu0 0
    %1332 = vmatprep.mubr.bf16.mxu0 0
    %1333 = vmatmul.mubr.bf16.gmra.mrb[0].mxu0 %v1298
    %v1334 = vpop.f32.mrb[0].mxu0
    %v1335 = vadd.f32 %v1284, %v1334
    %v1336 = vpop.f32.mrb[0].mxu0
    %v1337 = vpop.f32.mrb[0].mxu0
    %v1338 = vadd.f32 %v1284, %v1337
    %v1339 = vpop.f32.mrb[0].mxu0
    %1340 = vdwg.mxu0
    %v1341 = vmul.f32 %v1335, 0.5
    %v1342 = vmul.f32 %v1338, 0.5
    %v1343 = vmul.f32 %v1335, 0.044715
    %v1344 = vmul.f32 %v1338, 0.044715
    %v1345 = vmul.f32 %v1343, %v1335
    %v1346 = vmul.f32 %v1344, %v1338
    %v1347 = vmul.f32 %v1345, %v1335
    %v1348 = vmul.f32 %v1346, %v1338
    %v1349 = vadd.f32 %v1335, %v1347
    %v1350 = vadd.f32 %v1338, %v1348
    %v1351 = vmul.f32 %v1349, 0.7978846
    %v1352 = vmul.f32 %v1350, 0.7978846
    %v1353 = vtanh.pop %v1351
    %v1354 = vtanh.pop %v1352
    %v1355 = vadd.f32 %v1353, 1.0
    %v1356 = vadd.f32 %v1354, 1.0
    %v1357 = vmul.f32 %v1341, %v1355
    %v1358 = vmul.f32 %v1342, %v1356
    %v1359 = vpack.c.bf16 %v1358, %v1357
    %v1360 = vld [vmem:[#allocation2 + $0x80] sm:$0xf]
    %v1361 = vld [vmem:[#allocation2 + $0x84] sm:$0xf]
    %v1362 = vld [vmem:[#allocation2 + $0x88] sm:$0xf]
    %v1363 = vld [vmem:[#allocation2 + $0x8c] sm:$0xf]
    %v1364 = vld [vmem:[#allocation2 + $0x90] sm:$0xf]
    %v1365 = vld [vmem:[#allocation2 + $0x94] sm:$0xf]
    %v1366 = vld [vmem:[#allocation2 + $0x98] sm:$0xf]
    %v1367 = vld [vmem:[#allocation2 + $0x9c] sm:$0xf]
    %v1368 = vld [vmem:[#allocation5 + $0x44] sm:$0x1]
    %v1369 = vlaneseq
    %v1370 = vshrl.u32 %v1369, 7
    %v1371 = vsub.s32 0, %v1370
    %v1372 = vrot.slane %v1368, %v1371
    %v1381 = vunpack.c.l.b16 %v1360
    %v1382 = vunpack.c.l.b16 %v1361
    %v1383 = vunpack.c.l.b16 %v1362
    %v1384 = vunpack.c.l.b16 %v1363
    %v1385 = vunpack.c.l.b16 %v1364
    %v1386 = vunpack.c.l.b16 %v1365
    %v1387 = vunpack.c.l.b16 %v1366
    %v1388 = vunpack.c.l.b16 %v1367
    %v1389 = vpack.c.b16 %v1382, %v1381
    %v1390 = vpack.c.b16 %v1384, %v1383
    %v1391 = vpack.c.b16 %v1386, %v1385
    %v1392 = vpack.c.b16 %v1388, %v1387
    %vm1397 = vcmask 523264
    %v1399 = vsel %vm1397, %v1359, 0
    %1401 = vmatprep.subr.bf16.mxu0 0
    %1402 = vmatpush1.bf16.msra.mxu0 %v1389
    %1403 = vmatprep.subr.bf16.mxu0 0
    %1404 = vmatpush1.bf16.msra.mxu0 %v1390
    %1405 = vmatprep.subr.bf16.mxu0 0
    %1406 = vmatpush1.bf16.msra.mxu0 %v1391
    %1407 = vmatprep.subr.bf16.mxu0 0
    %1408 = vmatpush1.bf16.msra.mxu0 %v1392
    %1409 = vmatprep.subr.bf16.mxu0 0
    %1410 = vmatpush1.bf16.msra.mxu0 0
    %1411 = vmatprep.subr.bf16.mxu0 0
    %1412 = vmatpush1.bf16.msra.mxu0 0
    %1413 = vmatprep.subr.bf16.mxu0 0
    %1414 = vmatpush1.bf16.msra.mxu0 0
    %1415 = vmatprep.subr.bf16.mxu0 0
    %1416 = vmatpush1.bf16.msra.mxu0 0
    %1417 = vmatprep.subr.bf16.mxu0 0
    %1418 = vmatpush1.bf16.msra.mxu0 0
    %1419 = vmatprep.subr.bf16.mxu0 0
    %1420 = vmatpush1.bf16.msra.mxu0 0
    %1421 = vmatprep.subr.bf16.mxu0 0
    %1422 = vmatpush1.bf16.msra.mxu0 0
    %1423 = vmatprep.subr.bf16.mxu0 0
    %1424 = vmatpush1.bf16.msra.mxu0 0
    %1425 = vmatprep.subr.bf16.mxu0 0
    %1426 = vmatpush1.bf16.msra.mxu0 0
    %1427 = vmatprep.subr.bf16.mxu0 0
    %1428 = vmatpush1.bf16.msra.mxu0 0
    %1429 = vmatprep.subr.bf16.mxu0 0
    %1430 = vmatpush1.bf16.msra.mxu0 0
    %1431 = vmatprep.subr.bf16.mxu0 0
    %1432 = vmatpush1.bf16.msra.mxu0 0
    %1433 = vmatprep.mubr.bf16.mxu0 0
    %1434 = vmatmul.mubr.bf16.gmra.mrb[0].mxu0 %v1399
    %v1435 = vpop.f32.mrb[0].mxu0
    %v1436 = vadd.f32 %v1372, %v1435
    %v1437 = vpop.f32.mrb[0].mxu0
    %v1438 = vpop.f32.mrb[0].mxu0
    %v1439 = vadd.f32 %v1372, %v1438
    %v1440 = vpop.f32.mrb[0].mxu0
    %1441 = vdwg.mxu0
    %v1442 = vadd.f32 %v1436, %v1273
    %v1443 = vadd.f32 %v1439, %v1274
    %v1444 = vld [vmem:[#allocation5 + $0x45] sm:$0x1]
    %v1445 = vld [vmem:[#allocation5 + $0x46] sm:$0x1]
    %v1446 = vsel %vm69, %v1442, 0.0
    %1447 = vadd.xlane.f32.xlu0 %v1446
    %v1448 = vpop.xlane.xlu0 %1447
    %v1449 = vsel %vm69, %v1443, 0.0
    %1450 = vadd.xlane.f32.xlu0 %v1449
    %v1451 = vpop.xlane.xlu0 %1450
    %v1452 = vmul.f32 %v1448, %v165
    %v1453 = vmul.f32 %v1451, %v165
    %v1454 = vsub.f32 %v1442, %v1452
    %v1455 = vsub.f32 %v1443, %v1453
    %v1456 = vmul.f32 %v1454, %v1454
    %v1457 = vmul.f32 %v1455, %v1455
    %v1458 = vsel %vm69, %v1456, 0.0
    %1459 = vadd.xlane.f32.xlu0 %v1458
    %v1460 = vpop.xlane.xlu0 %1459
    %v1461 = vsel %vm69, %v1457, 0.0
    %1462 = vadd.xlane.f32.xlu0 %v1461
    %v1463 = vpop.xlane.xlu0 %1462
    %v1464 = vmul.f32 %v1460, %v165
    %v1465 = vmul.f32 %v1463, %v165
    %v1466 = vadd.f32 %v1464, 1e-12
    %v1467 = vadd.f32 %v1465, 1e-12
    %v1468 = vrsqrt.pop %v1466
    %v1469 = vrsqrt.pop %v1467
    %v1470 = vmul.f32 %v1454, %v1468
    %v1471 = vmul.f32 %v1455, %v1469
    %v1472 = vlaneseq
    %v1473 = vshrl.u32 %v1472, 7
    %v1474 = vsub.s32 0, %v1473
    %v1475 = vrot.slane %v1444, %v1474
    %v1476 = vmul.f32 %v1470, %v1475
    %v1477 = vmul.f32 %v1471, %v1475
    %v1478 = vlaneseq
    %v1479 = vshrl.u32 %v1478, 7
    %v1480 = vsub.s32 0, %v1479
    %v1481 = vrot.slane %v1445, %v1480
    %v1482 = vadd.f32 %v1476, %v1481
    %v1483 = vadd.f32 %v1477, %v1481
    %v1484 = vpack.c.bf16 %v1483, %v1482
    %v1485 = vld [vmem:[#allocation2 + $0xa0] sm:$0xf]
    %v1486 = vld [vmem:[#allocation2 + $0xa4] sm:$0xf]
    %v1487 = vld [vmem:[#allocation2 + $0xa8] sm:$0xf]
    %v1488 = vld [vmem:[#allocation2 + $0xac] sm:$0xf]
    %v1489 = vld [vmem:[#allocation5 + $0x47] sm:$0x1]
    %v1490 = vlaneseq
    %v1491 = vshrl.u32 %v1490, 7
    %v1492 = vsub.s32 0, %v1491
    %v1493 = vrot.slane %v1489, %v1492
    %v1498 = vunpack.c.l.b16 %v1485
    %v1499 = vunpack.c.l.b16 %v1486
    %v1500 = vunpack.c.l.b16 %v1487
    %v1501 = vunpack.c.l.b16 %v1488
    %v1502 = vpack.c.b16 %v1499, %v1498
    %v1503 = vpack.c.b16 %v1501, %v1500
    %v1507 = vsel %vm69, %v1484, 0
    %1509 = vmatprep.subr.bf16.mxu0 0
    %1510 = vmatpush1.bf16.msra.mxu0 %v1502
    %1511 = vmatprep.subr.bf16.mxu0 0
    %1512 = vmatpush1.bf16.msra.mxu0 %v1503
    %1513 = vmatprep.subr.bf16.mxu0 0
    %1514 = vmatpush1.bf16.msra.mxu0 0
    %1515 = vmatprep.subr.bf16.mxu0 0
    %1516 = vmatpush1.bf16.msra.mxu0 0
    %1517 = vmatprep.subr.bf16.mxu0 0
    %1518 = vmatpush1.bf16.msra.mxu0 0
    %1519 = vmatprep.subr.bf16.mxu0 0
    %1520 = vmatpush1.bf16.msra.mxu0 0
    %1521 = vmatprep.subr.bf16.mxu0 0
    %1522 = vmatpush1.bf16.msra.mxu0 0
    %1523 = vmatprep.subr.bf16.mxu0 0
    %1524 = vmatpush1.bf16.msra.mxu0 0
    %1525 = vmatprep.subr.bf16.mxu0 0
    %1526 = vmatpush1.bf16.msra.mxu0 0
    %1527 = vmatprep.subr.bf16.mxu0 0
    %1528 = vmatpush1.bf16.msra.mxu0 0
    %1529 = vmatprep.subr.bf16.mxu0 0
    %1530 = vmatpush1.bf16.msra.mxu0 0
    %1531 = vmatprep.subr.bf16.mxu0 0
    %1532 = vmatpush1.bf16.msra.mxu0 0
    %1533 = vmatprep.subr.bf16.mxu0 0
    %1534 = vmatpush1.bf16.msra.mxu0 0
    %1535 = vmatprep.subr.bf16.mxu0 0
    %1536 = vmatpush1.bf16.msra.mxu0 0
    %1537 = vmatprep.subr.bf16.mxu0 0
    %1538 = vmatpush1.bf16.msra.mxu0 0
    %1539 = vmatprep.subr.bf16.mxu0 0
    %1540 = vmatpush1.bf16.msra.mxu0 0
    %1541 = vmatprep.mubr.bf16.mxu0 0
    %1542 = vmatmul.mubr.bf16.gmra.mrb[0].mxu0 %v1507
    %v1543 = vpop.f32.mrb[0].mxu0
    %v1544 = vadd.f32 %v1493, %v1543
    %v1545 = vpop.f32.mrb[0].mxu0
    %v1546 = vpop.f32.mrb[0].mxu0
    %v1547 = vadd.f32 %v1493, %v1546
    %v1548 = vpop.f32.mrb[0].mxu0
    %1549 = vdwg.mxu0
    %v1550 = vld [vmem:[#allocation2 + $0xb0] sm:$0xf]
    %v1551 = vld [vmem:[#allocation2 + $0xb4] sm:$0xf]
    %v1552 = vld [vmem:[#allocation2 + $0xb8] sm:$0xf]
    %v1553 = vld [vmem:[#allocation2 + $0xbc] sm:$0xf]
    %v1554 = vld [vmem:[#allocation5 + $0x48] sm:$0x1]
    %v1555 = vlaneseq
    %v1556 = vshrl.u32 %v1555, 7
    %v1557 = vsub.s32 0, %v1556
    %v1558 = vrot.slane %v1554, %v1557
    %v1563 = vunpack.c.l.b16 %v1550
    %v1564 = vunpack.c.l.b16 %v1551
    %v1565 = vunpack.c.l.b16 %v1552
    %v1566 = vunpack.c.l.b16 %v1553
    %v1567 = vpack.c.b16 %v1564, %v1563
    %v1568 = vpack.c.b16 %v1566, %v1565
    %1571 = vmatprep.subr.bf16.mxu0 0
    %1572 = vmatpush1.bf16.msra.mxu0 %v1567
    %1573 = vmatprep.subr.bf16.mxu0 0
    %1574 = vmatpush1.bf16.msra.mxu0 %v1568
    %1575 = vmatprep.subr.bf16.mxu0 0
    %1576 = vmatpush1.bf16.msra.mxu0 0
    %1577 = vmatprep.subr.bf16.mxu0 0
    %1578 = vmatpush1.bf16.msra.mxu0 0
    %1579 = vmatprep.subr.bf16.mxu0 0
    %1580 = vmatpush1.bf16.msra.mxu0 0
    %1581 = vmatprep.subr.bf16.mxu0 0
    %1582 = vmatpush1.bf16.msra.mxu0 0
    %1583 = vmatprep.subr.bf16.mxu0 0
    %1584 = vmatpush1.bf16.msra.mxu0 0
    %1585 = vmatprep.subr.bf16.mxu0 0
    %1586 = vmatpush1.bf16.msra.mxu0 0
    %1587 = vmatprep.subr.bf16.mxu0 0
    %1588 = vmatpush1.bf16.msra.mxu0 0
    %1589 = vmatprep.subr.bf16.mxu0 0
    %1590 = vmatpush1.bf16.msra.mxu0 0
    %1591 = vmatprep.subr.bf16.mxu0 0
    %1592 = vmatpush1.bf16.msra.mxu0 0
    %1593 = vmatprep.subr.bf16.mxu0 0
    %1594 = vmatpush1.bf16.msra.mxu0 0
    %1595 = vmatprep.subr.bf16.mxu0 0
    %1596 = vmatpush1.bf16.msra.mxu0 0
    %1597 = vmatprep.subr.bf16.mxu0 0
    %1598 = vmatpush1.bf16.msra.mxu0 0
    %1599 = vmatprep.subr.bf16.mxu0 0
    %1600 = vmatpush1.bf16.msra.mxu0 0
    %1601 = vmatprep.subr.bf16.mxu0 0
    %1602 = vmatpush1.bf16.msra.mxu0 0
    %1603 = vmatprep.mubr.bf16.mxu0 0
    %1604 = vmatmul.mubr.bf16.gmra.mrb[0].mxu0 %v1507
    %v1605 = vpop.f32.mrb[0].mxu0
    %v1606 = vadd.f32 %v1558, %v1605
    %v1607 = vpop.f32.mrb[0].mxu0
    %v1608 = vpop.f32.mrb[0].mxu0
    %v1609 = vadd.f32 %v1558, %v1608
    %v1610 = vpop.f32.mrb[0].mxu0
    %1611 = vdwg.mxu0
    %v1612 = vld [vmem:[#allocation2 + $0xc0] sm:$0xf]
    %v1613 = vld [vmem:[#allocation2 + $0xc4] sm:$0xf]
    %v1614 = vld [vmem:[#allocation2 + $0xc8] sm:$0xf]
    %v1615 = vld [vmem:[#allocation2 + $0xcc] sm:$0xf]
    %v1616 = vld [vmem:[#allocation5 + $0x49] sm:$0x1]
    %v1617 = vlaneseq
    %v1618 = vshrl.u32 %v1617, 7
    %v1619 = vsub.s32 0, %v1618
    %v1620 = vrot.slane %v1616, %v1619
    %v1625 = vunpack.c.l.b16 %v1612
    %v1626 = vunpack.c.l.b16 %v1613
    %v1627 = vunpack.c.l.b16 %v1614
    %v1628 = vunpack.c.l.b16 %v1615
    %v1629 = vpack.c.b16 %v1626, %v1625
    %v1630 = vpack.c.b16 %v1628, %v1627
    %1633 = vmatprep.subr.bf16.mxu0 0
    %1634 = vmatpush1.bf16.msra.mxu0 %v1629
    %1635 = vmatprep.subr.bf16.mxu0 0
    %1636 = vmatpush1.bf16.msra.mxu0 %v1630
    %1637 = vmatprep.subr.bf16.mxu0 0
    %1638 = vmatpush1.bf16.msra.mxu0 0
    %1639 = vmatprep.subr.bf16.mxu0 0
    %1640 = vmatpush1.bf16.msra.mxu0 0
    %1641 = vmatprep.subr.bf16.mxu0 0
    %1642 = vmatpush1.bf16.msra.mxu0 0
    %1643 = vmatprep.subr.bf16.mxu0 0
    %1644 = vmatpush1.bf16.msra.mxu0 0
    %1645 = vmatprep.subr.bf16.mxu0 0
    %1646 = vmatpush1.bf16.msra.mxu0 0
    %1647 = vmatprep.subr.bf16.mxu0 0
    %1648 = vmatpush1.bf16.msra.mxu0 0
    %1649 = vmatprep.subr.bf16.mxu0 0
    %1650 = vmatpush1.bf16.msra.mxu0 0
    %1651 = vmatprep.subr.bf16.mxu0 0
    %1652 = vmatpush1.bf16.msra.mxu0 0
    %1653 = vmatprep.subr.bf16.mxu0 0
    %1654 = vmatpush1.bf16.msra.mxu0 0
    %1655 = vmatprep.subr.bf16.mxu0 0
    %1656 = vmatpush1.bf16.msra.mxu0 0
    %1657 = vmatprep.subr.bf16.mxu0 0
    %1658 = vmatpush1.bf16.msra.mxu0 0
    %1659 = vmatprep.subr.bf16.mxu0 0
    %1660 = vmatpush1.bf16.msra.mxu0 0
    %1661 = vmatprep.subr.bf16.mxu0 0
    %1662 = vmatpush1.bf16.msra.mxu0 0
    %1663 = vmatprep.subr.bf16.mxu0 0
    %1664 = vmatpush1.bf16.msra.mxu0 0
    %1665 = vmatprep.mubr.bf16.mxu0 0
    %1666 = vmatmul.mubr.bf16.gmra.mrb[0].mxu0 %v1507
    %v1667 = vpop.f32.mrb[0].mxu0
    %v1668 = vadd.f32 %v1620, %v1667
    %v1669 = vpop.f32.mrb[0].mxu0
    %v1670 = vpop.f32.mrb[0].mxu0
    %v1671 = vadd.f32 %v1620, %v1670
    %v1672 = vpop.f32.mrb[0].mxu0
    %1673 = vdwg.mxu0
    %v1674 = vpack.c.bf16 %v1547, %v1544
    %v1675 = vpack.c.bf16 %v1609, %v1606
    %v1676 = vpack.c.bf16 %v1671, %v1668
    %v1677 = vld [vmem:[#allocation2 + $0xd0] sm:$0xf]
    %v1678 = vld [vmem:[#allocation2 + $0xd4] sm:$0xf]
    %v1679 = vld [vmem:[#allocation2 + $0xd8] sm:$0xf]
    %v1680 = vld [vmem:[#allocation2 + $0xdc] sm:$0xf]
    %v1681 = vld [vmem:[#allocation5 + $0x4a] sm:$0x1]
    %v1682 = vlaneseq
    %v1683 = vshrl.u32 %v1682, 7
    %v1684 = vsub.s32 0, %v1683
    %v1685 = vrot.slane %v1681, %v1684
    %v1690 = vunpack.c.l.b16 %v1677
    %v1691 = vunpack.c.l.b16 %v1678
    %v1692 = vunpack.c.l.b16 %v1679
    %v1693 = vunpack.c.l.b16 %v1680
    %v1694 = vpack.c.b16 %v1691, %v1690
    %v1695 = vpack.c.b16 %v1693, %v1692
    %1698 = vmatprep.subr.bf16.mxu0 0
    %1699 = vmatpush1.bf16.msra.mxu0 %v1694
    %1700 = vmatprep.subr.bf16.mxu0 0
    %1701 = vmatpush1.bf16.msra.mxu0 %v1695
    %1702 = vmatprep.subr.bf16.mxu0 0
    %1703 = vmatpush1.bf16.msra.mxu0 0
    %1704 = vmatprep.subr.bf16.mxu0 0
    %1705 = vmatpush1.bf16.msra.mxu0 0
    %1706 = vmatprep.subr.bf16.mxu0 0
    %1707 = vmatpush1.bf16.msra.mxu0 0
    %1708 = vmatprep.subr.bf16.mxu0 0
    %1709 = vmatpush1.bf16.msra.mxu0 0
    %1710 = vmatprep.subr.bf16.mxu0 0
    %1711 = vmatpush1.bf16.msra.mxu0 0
    %1712 = vmatprep.subr.bf16.mxu0 0
    %1713 = vmatpush1.bf16.msra.mxu0 0
    %1714 = vmatprep.subr.bf16.mxu0 0
    %1715 = vmatpush1.bf16.msra.mxu0 0
    %1716 = vmatprep.subr.bf16.mxu0 0
    %1717 = vmatpush1.bf16.msra.mxu0 0
    %1718 = vmatprep.subr.bf16.mxu0 0
    %1719 = vmatpush1.bf16.msra.mxu0 0
    %1720 = vmatprep.subr.bf16.mxu0 0
    %1721 = vmatpush1.bf16.msra.mxu0 0
    %1722 = vmatprep.subr.bf16.mxu0 0
    %1723 = vmatpush1.bf16.msra.mxu0 0
    %1724 = vmatprep.subr.bf16.mxu0 0
    %1725 = vmatpush1.bf16.msra.mxu0 0
    %1726 = vmatprep.subr.bf16.mxu0 0
    %1727 = vmatpush1.bf16.msra.mxu0 0
    %1728 = vmatprep.subr.bf16.mxu0 0
    %1729 = vmatpush1.bf16.msra.mxu0 0
    %1730 = vmatprep.mubr.bf16.mxu0 0
    %1731 = vmatmul.mubr.bf16.gmra.mrb[0].mxu0 %v1507
    %v1732 = vpop.f32.mrb[0].mxu0
    %v1733 = vadd.f32 %v1685, %v1732
    %v1734 = vpop.f32.mrb[0].mxu0
    %v1735 = vpop.f32.mrb[0].mxu0
    %v1736 = vadd.f32 %v1685, %v1735
    %v1737 = vpop.f32.mrb[0].mxu0
    %1738 = vdwg.mxu0
    %v1739 = vld [vmem:[#allocation2 + $0xe0] sm:$0xf]
    %v1740 = vld [vmem:[#allocation2 + $0xe4] sm:$0xf]
    %v1741 = vld [vmem:[#allocation2 + $0xe8] sm:$0xf]
    %v1742 = vld [vmem:[#allocation2 + $0xec] sm:$0xf]
    %v1743 = vld [vmem:[#allocation5 + $0x4b] sm:$0x1]
    %v1744 = vlaneseq
    %v1745 = vshrl.u32 %v1744, 7
    %v1746 = vsub.s32 0, %v1745
    %v1747 = vrot.slane %v1743, %v1746
    %v1752 = vunpack.c.l.b16 %v1739
    %v1753 = vunpack.c.l.b16 %v1740
    %v1754 = vunpack.c.l.b16 %v1741
    %v1755 = vunpack.c.l.b16 %v1742
    %v1756 = vpack.c.b16 %v1753, %v1752
    %v1757 = vpack.c.b16 %v1755, %v1754
    %1760 = vmatprep.subr.bf16.mxu0 0
    %1761 = vmatpush1.bf16.msra.mxu0 %v1756
    %1762 = vmatprep.subr.bf16.mxu0 0
    %1763 = vmatpush1.bf16.msra.mxu0 %v1757
    %1764 = vmatprep.subr.bf16.mxu0 0
    %1765 = vmatpush1.bf16.msra.mxu0 0
    %1766 = vmatprep.subr.bf16.mxu0 0
    %1767 = vmatpush1.bf16.msra.mxu0 0
    %1768 = vmatprep.subr.bf16.mxu0 0
    %1769 = vmatpush1.bf16.msra.mxu0 0
    %1770 = vmatprep.subr.bf16.mxu0 0
    %1771 = vmatpush1.bf16.msra.mxu0 0
    %1772 = vmatprep.subr.bf16.mxu0 0
    %1773 = vmatpush1.bf16.msra.mxu0 0
    %1774 = vmatprep.subr.bf16.mxu0 0
    %1775 = vmatpush1.bf16.msra.mxu0 0
    %1776 = vmatprep.subr.bf16.mxu0 0
    %1777 = vmatpush1.bf16.msra.mxu0 0
    %1778 = vmatprep.subr.bf16.mxu0 0
    %1779 = vmatpush1.bf16.msra.mxu0 0
    %1780 = vmatprep.subr.bf16.mxu0 0
    %1781 = vmatpush1.bf16.msra.mxu0 0
    %1782 = vmatprep.subr.bf16.mxu0 0
    %1783 = vmatpush1.bf16.msra.mxu0 0
    %1784 = vmatprep.subr.bf16.mxu0 0
    %1785 = vmatpush1.bf16.msra.mxu0 0
    %1786 = vmatprep.subr.bf16.mxu0 0
    %1787 = vmatpush1.bf16.msra.mxu0 0
    %1788 = vmatprep.subr.bf16.mxu0 0
    %1789 = vmatpush1.bf16.msra.mxu0 0
    %1790 = vmatprep.subr.bf16.mxu0 0
    %1791 = vmatpush1.bf16.msra.mxu0 0
    %1792 = vmatprep.mubr.bf16.mxu0 0
    %1793 = vmatmul.mubr.bf16.gmra.mrb[0].mxu0 %v1507
    %v1794 = vpop.f32.mrb[0].mxu0
    %v1795 = vadd.f32 %v1747, %v1794
    %v1796 = vpop.f32.mrb[0].mxu0
    %v1797 = vpop.f32.mrb[0].mxu0
    %v1798 = vadd.f32 %v1747, %v1797
    %v1799 = vpop.f32.mrb[0].mxu0
    %1800 = vdwg.mxu0
    %v1801 = vld [vmem:[#allocation2 + $0xf0] sm:$0xf]
    %v1802 = vld [vmem:[#allocation2 + $0xf4] sm:$0xf]
    %v1803 = vld [vmem:[#allocation2 + $0xf8] sm:$0xf]
    %v1804 = vld [vmem:[#allocation2 + $0xfc] sm:$0xf]
    %v1805 = vld [vmem:[#allocation5 + $0x4c] sm:$0x1]
    %v1806 = vlaneseq
    %v1807 = vshrl.u32 %v1806, 7
    %v1808 = vsub.s32 0, %v1807
    %v1809 = vrot.slane %v1805, %v1808
    %v1814 = vunpack.c.l.b16 %v1801
    %v1815 = vunpack.c.l.b16 %v1802
    %v1816 = vunpack.c.l.b16 %v1803
    %v1817 = vunpack.c.l.b16 %v1804
    %v1818 = vpack.c.b16 %v1815, %v1814
    %v1819 = vpack.c.b16 %v1817, %v1816
    %1822 = vmatprep.subr.bf16.mxu0 0
    %1823 = vmatpush1.bf16.msra.mxu0 %v1818
    %1824 = vmatprep.subr.bf16.mxu0 0
    %1825 = vmatpush1.bf16.msra.mxu0 %v1819
    %1826 = vmatprep.subr.bf16.mxu0 0
    %1827 = vmatpush1.bf16.msra.mxu0 0
    %1828 = vmatprep.subr.bf16.mxu0 0
    %1829 = vmatpush1.bf16.msra.mxu0 0
    %1830 = vmatprep.subr.bf16.mxu0 0
    %1831 = vmatpush1.bf16.msra.mxu0 0
    %1832 = vmatprep.subr.bf16.mxu0 0
    %1833 = vmatpush1.bf16.msra.mxu0 0
    %1834 = vmatprep.subr.bf16.mxu0 0
    %1835 = vmatpush1.bf16.msra.mxu0 0
    %1836 = vmatprep.subr.bf16.mxu0 0
    %1837 = vmatpush1.bf16.msra.mxu0 0
    %1838 = vmatprep.subr.bf16.mxu0 0
    %1839 = vmatpush1.bf16.msra.mxu0 0
    %1840 = vmatprep.subr.bf16.mxu0 0
    %1841 = vmatpush1.bf16.msra.mxu0 0
    %1842 = vmatprep.subr.bf16.mxu0 0
    %1843 = vmatpush1.bf16.msra.mxu0 0
    %1844 = vmatprep.subr.bf16.mxu0 0
    %1845 = vmatpush1.bf16.msra.mxu0 0
    %1846 = vmatprep.subr.bf16.mxu0 0
    %1847 = vmatpush1.bf16.msra.mxu0 0
    %1848 = vmatprep.subr.bf16.mxu0 0
    %1849 = vmatpush1.bf16.msra.mxu0 0
    %1850 = vmatprep.subr.bf16.mxu0 0
    %1851 = vmatpush1.bf16.msra.mxu0 0
    %1852 = vmatprep.subr.bf16.mxu0 0
    %1853 = vmatpush1.bf16.msra.mxu0 0
    %1854 = vmatprep.mubr.bf16.mxu0 0
    %1855 = vmatmul.mubr.bf16.gmra.mrb[0].mxu0 %v1507
    %v1856 = vpop.f32.mrb[0].mxu0
    %v1857 = vadd.f32 %v1809, %v1856
    %v1858 = vpop.f32.mrb[0].mxu0
    %v1859 = vpop.f32.mrb[0].mxu0
    %v1860 = vadd.f32 %v1809, %v1859
    %v1861 = vpop.f32.mrb[0].mxu0
    %1862 = vdwg.mxu0
    %v1863 = vpack.c.bf16 %v1736, %v1733
    %v1864 = vpack.c.bf16 %v1798, %v1795
    %v1865 = vpack.c.bf16 %v1860, %v1857
    %v1867 = vsel %vm591, %v1674, 0
    %v1870 = vsel %vm591, %v1675, 0
    %1872 = vmatprep.subr.bf16.mxu0 0
    %1873 = vmatpush1.bf16.xpose.msra.mxu0 %v1870
    %1874 = vmatprep.subr.bf16.mxu0 0
    %1875 = vmatpush1.bf16.xpose.msra.mxu0 0
    %1876 = vmatprep.subr.bf16.mxu0 0
    %1877 = vmatpush1.bf16.xpose.msra.mxu0 0
    %1878 = vmatprep.subr.bf16.mxu0 0
    %1879 = vmatpush1.bf16.xpose.msra.mxu0 0
    %1880 = vmatprep.subr.bf16.mxu0 0
    %1881 = vmatpush1.bf16.xpose.msra.mxu0 0
    %1882 = vmatprep.subr.bf16.mxu0 0
    %1883 = vmatpush1.bf16.xpose.msra.mxu0 0
    %1884 = vmatprep.subr.bf16.mxu0 0
    %1885 = vmatpush1.bf16.xpose.msra.mxu0 0
    %1886 = vmatprep.subr.bf16.mxu0 0
    %1887 = vmatpush1.bf16.xpose.msra.mxu0 0
    %1888 = vmatprep.subr.bf16.mxu0 0
    %1889 = vmatpush1.bf16.xpose.msra.mxu0 0
    %1890 = vmatprep.subr.bf16.mxu0 0
    %1891 = vmatpush1.bf16.xpose.msra.mxu0 0
    %1892 = vmatprep.subr.bf16.mxu0 0
    %1893 = vmatpush1.bf16.xpose.msra.mxu0 0
    %1894 = vmatprep.subr.bf16.mxu0 0
    %1895 = vmatpush1.bf16.xpose.msra.mxu0 0
    %1896 = vmatprep.subr.bf16.mxu0 0
    %1897 = vmatpush1.bf16.xpose.msra.mxu0 0
    %1898 = vmatprep.subr.bf16.mxu0 0
    %1899 = vmatpush1.bf16.xpose.msra.mxu0 0
    %1900 = vmatprep.subr.bf16.mxu0 0
    %1901 = vmatpush1.bf16.xpose.msra.mxu0 0
    %1902 = vmatprep.subr.bf16.mxu0 0
    %1903 = vmatpush1.bf16.xpose.msra.mxu0 0
    %1904 = vmatprep.mubr.bf16.mxu0 0
    %1905 = vmatmul.mubr.bf16.gmra.mrb[0].mxu0 %v1867
    %v1906 = vpop.f32.mrb[0].mxu0
    %v1907 = vadd.f32 0.0, %v1906
    %v1908 = vpop.f32.mrb[0].mxu0
    %v1909 = vpop.f32.mrb[0].mxu0
    %v1910 = vpop.f32.mrb[0].mxu0
    %1911 = vdwg.mxu0
    %v1913 = vsel %vm591, %v1863, 0
    %v1916 = vsel %vm591, %v1864, 0
    %1918 = vmatprep.subr.bf16.mxu0 0
    %1919 = vmatpush1.bf16.xpose.msra.mxu0 %v1916
    %1920 = vmatprep.subr.bf16.mxu0 0
    %1921 = vmatpush1.bf16.xpose.msra.mxu0 0
    %1922 = vmatprep.subr.bf16.mxu0 0
    %1923 = vmatpush1.bf16.xpose.msra.mxu0 0
    %1924 = vmatprep.subr.bf16.mxu0 0
    %1925 = vmatpush1.bf16.xpose.msra.mxu0 0
    %1926 = vmatprep.subr.bf16.mxu0 0
    %1927 = vmatpush1.bf16.xpose.msra.mxu0 0
    %1928 = vmatprep.subr.bf16.mxu0 0
    %1929 = vmatpush1.bf16.xpose.msra.mxu0 0
    %1930 = vmatprep.subr.bf16.mxu0 0
    %1931 = vmatpush1.bf16.xpose.msra.mxu0 0
    %1932 = vmatprep.subr.bf16.mxu0 0
    %1933 = vmatpush1.bf16.xpose.msra.mxu0 0
    %1934 = vmatprep.subr.bf16.mxu0 0
    %1935 = vmatpush1.bf16.xpose.msra.mxu0 0
    %1936 = vmatprep.subr.bf16.mxu0 0
    %1937 = vmatpush1.bf16.xpose.msra.mxu0 0
    %1938 = vmatprep.subr.bf16.mxu0 0
    %1939 = vmatpush1.bf16.xpose.msra.mxu0 0
    %1940 = vmatprep.subr.bf16.mxu0 0
    %1941 = vmatpush1.bf16.xpose.msra.mxu0 0
    %1942 = vmatprep.subr.bf16.mxu0 0
    %1943 = vmatpush1.bf16.xpose.msra.mxu0 0
    %1944 = vmatprep.subr.bf16.mxu0 0
    %1945 = vmatpush1.bf16.xpose.msra.mxu0 0
    %1946 = vmatprep.subr.bf16.mxu0 0
    %1947 = vmatpush1.bf16.xpose.msra.mxu0 0
    %1948 = vmatprep.subr.bf16.mxu0 0
    %1949 = vmatpush1.bf16.xpose.msra.mxu0 0
    %1950 = vmatprep.mubr.bf16.mxu0 0
    %1951 = vmatmul.mubr.bf16.gmra.mrb[0].mxu0 %v1913
    %v1952 = vpop.f32.mrb[0].mxu0
    %v1953 = vadd.f32 0.0, %v1952
    %v1954 = vpop.f32.mrb[0].mxu0
    %v1955 = vpop.f32.mrb[0].mxu0
    %v1956 = vpop.f32.mrb[0].mxu0
    %1957 = vdwg.mxu0
    %v1959 = vrot.slane %v1674, 4
    %v1961 = vrot.slane %v1675, 4
    %v1963 = vsel %vm591, %v1959, 0
    %v1966 = vsel %vm591, %v1961, 0
    %1968 = vmatprep.subr.bf16.mxu0 0
    %1969 = vmatpush1.bf16.xpose.msra.mxu0 %v1966
    %1970 = vmatprep.subr.bf16.mxu0 0
    %1971 = vmatpush1.bf16.xpose.msra.mxu0 0
    %1972 = vmatprep.subr.bf16.mxu0 0
    %1973 = vmatpush1.bf16.xpose.msra.mxu0 0
    %1974 = vmatprep.subr.bf16.mxu0 0
    %1975 = vmatpush1.bf16.xpose.msra.mxu0 0
    %1976 = vmatprep.subr.bf16.mxu0 0
    %1977 = vmatpush1.bf16.xpose.msra.mxu0 0
    %1978 = vmatprep.subr.bf16.mxu0 0
    %1979 = vmatpush1.bf16.xpose.msra.mxu0 0
    %1980 = vmatprep.subr.bf16.mxu0 0
    %1981 = vmatpush1.bf16.xpose.msra.mxu0 0
    %1982 = vmatprep.subr.bf16.mxu0 0
    %1983 = vmatpush1.bf16.xpose.msra.mxu0 0
    %1984 = vmatprep.subr.bf16.mxu0 0
    %1985 = vmatpush1.bf16.xpose.msra.mxu0 0
    %1986 = vmatprep.subr.bf16.mxu0 0
    %1987 = vmatpush1.bf16.xpose.msra.mxu0 0
    %1988 = vmatprep.subr.bf16.mxu0 0
    %1989 = vmatpush1.bf16.xpose.msra.mxu0 0
    %1990 = vmatprep.subr.bf16.mxu0 0
    %1991 = vmatpush1.bf16.xpose.msra.mxu0 0
    %1992 = vmatprep.subr.bf16.mxu0 0
    %1993 = vmatpush1.bf16.xpose.msra.mxu0 0
    %1994 = vmatprep.subr.bf16.mxu0 0
    %1995 = vmatpush1.bf16.xpose.msra.mxu0 0
    %1996 = vmatprep.subr.bf16.mxu0 0
    %1997 = vmatpush1.bf16.xpose.msra.mxu0 0
    %1998 = vmatprep.subr.bf16.mxu0 0
    %1999 = vmatpush1.bf16.xpose.msra.mxu0 0
    %2000 = vmatprep.mubr.bf16.mxu0 0
    %2001 = vmatmul.mubr.bf16.gmra.mrb[0].mxu0 %v1963
    %v2002 = vpop.f32.mrb[0].mxu0
    %v2003 = vadd.f32 0.0, %v2002
    %v2004 = vpop.f32.mrb[0].mxu0
    %v2005 = vpop.f32.mrb[0].mxu0
    %v2006 = vpop.f32.mrb[0].mxu0
    %2007 = vdwg.mxu0
    %v2009 = vrot.slane %v1863, 4
    %v2011 = vrot.slane %v1864, 4
    %v2013 = vsel %vm591, %v2009, 0
    %v2016 = vsel %vm591, %v2011, 0
    %2018 = vmatprep.subr.bf16.mxu0 0
    %2019 = vmatpush1.bf16.xpose.msra.mxu0 %v2016
    %2020 = vmatprep.subr.bf16.mxu0 0
    %2021 = vmatpush1.bf16.xpose.msra.mxu0 0
    %2022 = vmatprep.subr.bf16.mxu0 0
    %2023 = vmatpush1.bf16.xpose.msra.mxu0 0
    %2024 = vmatprep.subr.bf16.mxu0 0
    %2025 = vmatpush1.bf16.xpose.msra.mxu0 0
    %2026 = vmatprep.subr.bf16.mxu0 0
    %2027 = vmatpush1.bf16.xpose.msra.mxu0 0
    %2028 = vmatprep.subr.bf16.mxu0 0
    %2029 = vmatpush1.bf16.xpose.msra.mxu0 0
    %2030 = vmatprep.subr.bf16.mxu0 0
    %2031 = vmatpush1.bf16.xpose.msra.mxu0 0
    %2032 = vmatprep.subr.bf16.mxu0 0
    %2033 = vmatpush1.bf16.xpose.msra.mxu0 0
    %2034 = vmatprep.subr.bf16.mxu0 0
    %2035 = vmatpush1.bf16.xpose.msra.mxu0 0
    %2036 = vmatprep.subr.bf16.mxu0 0
    %2037 = vmatpush1.bf16.xpose.msra.mxu0 0
    %2038 = vmatprep.subr.bf16.mxu0 0
    %2039 = vmatpush1.bf16.xpose.msra.mxu0 0
    %2040 = vmatprep.subr.bf16.mxu0 0
    %2041 = vmatpush1.bf16.xpose.msra.mxu0 0
    %2042 = vmatprep.subr.bf16.mxu0 0
    %2043 = vmatpush1.bf16.xpose.msra.mxu0 0
    %2044 = vmatprep.subr.bf16.mxu0 0
    %2045 = vmatpush1.bf16.xpose.msra.mxu0 0
    %2046 = vmatprep.subr.bf16.mxu0 0
    %2047 = vmatpush1.bf16.xpose.msra.mxu0 0
    %2048 = vmatprep.subr.bf16.mxu0 0
    %2049 = vmatpush1.bf16.xpose.msra.mxu0 0
    %2050 = vmatprep.mubr.bf16.mxu0 0
    %2051 = vmatmul.mubr.bf16.gmra.mrb[0].mxu0 %v2013
    %v2052 = vpop.f32.mrb[0].mxu0
    %v2053 = vadd.f32 0.0, %v2052
    %v2054 = vpop.f32.mrb[0].mxu0
    %v2055 = vpop.f32.mrb[0].mxu0
    %v2056 = vpop.f32.mrb[0].mxu0
    %2057 = vdwg.mxu0
    %v2058 = vmul.f32 %v1907, 0.25
    %v2059 = vmul.f32 %v1953, 0.25
    %v2060 = vmul.f32 %v2003, 0.25
    %v2061 = vmul.f32 %v2053, 0.25
    %v2062 = vadd.f32 %v2058, %v204
    %v2063 = vadd.f32 %v2059, %v204
    %v2064 = vadd.f32 %v2060, %v208
    %v2065 = vadd.f32 %v2061, %v208
    %v2066 = vsel %vm792, %v2062, -inf
    %2067 = vmax.xlane.f32.xlu0 %v2066
    %v2068 = vpop.xlane.xlu0 %2067
    %v2069 = vsel %vm792, %v2063, -inf
    %2070 = vmax.xlane.f32.xlu0 %v2069
    %v2071 = vpop.xlane.xlu0 %2070
    %v2072 = vsel %vm792, %v2064, -inf
    %2073 = vmax.xlane.f32.xlu0 %v2072
    %v2074 = vpop.xlane.xlu0 %2073
    %v2075 = vsel %vm792, %v2065, -inf
    %2076 = vmax.xlane.f32.xlu0 %v2075
    %v2077 = vpop.xlane.xlu0 %2076
    %v2078 = vsub.f32 %v2062, %v2068
    %v2079 = vsub.f32 %v2063, %v2071
    %v2080 = vsub.f32 %v2064, %v2074
    %v2081 = vsub.f32 %v2065, %v2077
    %v2082 = vmul.f32 %v2078, 1.442695
    %v2083 = vpow.pop %v2082
    %v2084 = vmul.f32 %v2079, 1.442695
    %v2085 = vpow.pop %v2084
    %v2086 = vmul.f32 %v2080, 1.442695
    %v2087 = vpow.pop %v2086
    %v2088 = vmul.f32 %v2081, 1.442695
    %v2089 = vpow.pop %v2088
    %v2090 = vsel %vm792, %v2083, 0.0
    %2091 = vadd.xlane.f32.xlu0 %v2090
    %v2092 = vpop.xlane.xlu0 %2091
    %v2093 = vsel %vm792, %v2085, 0.0
    %2094 = vadd.xlane.f32.xlu0 %v2093
    %v2095 = vpop.xlane.xlu0 %2094
    %v2096 = vsel %vm792, %v2087, 0.0
    %2097 = vadd.xlane.f32.xlu0 %v2096
    %v2098 = vpop.xlane.xlu0 %2097
    %v2099 = vsel %vm792, %v2089, 0.0
    %2100 = vadd.xlane.f32.xlu0 %v2099
    %v2101 = vpop.xlane.xlu0 %2100
    %v2102 = vrcp.pop %v2092
    %v2103 = vrcp.pop %v2095
    %v2104 = vrcp.pop %v2098
    %v2105 = vrcp.pop %v2101
    %v2106 = vmul.f32 %v2083, %v2102
    %v2107 = vmul.f32 %v2085, %v2103
    %v2108 = vmul.f32 %v2087, %v2104
    %v2109 = vmul.f32 %v2089, %v2105
    %v2110 = vpack.c.bf16 %v2107, %v2106
    %v2111 = vpack.c.bf16 %v2109, %v2108
    %v2112 = vld [vmem:[#allocation2 + $0x100] sm:$0xf]
    %v2113 = vld [vmem:[#allocation2 + $0x104] sm:$0xf]
    %v2114 = vld [vmem:[#allocation2 + $0x108] sm:$0xf]
    %v2115 = vld [vmem:[#allocation2 + $0x10c] sm:$0xf]
    %v2116 = vld [vmem:[#allocation5 + $0x4d] sm:$0x1]
    %v2118 = vsel %vm792, %v2110, 0
    %v2121 = vsel %vm847, %v1676, 0
    %2123 = vmatprep.subr.bf16.mxu0 0
    %2124 = vmatpush1.bf16.msra.mxu0 %v2121
    %2125 = vmatprep.subr.bf16.mxu0 0
    %2126 = vmatpush1.bf16.msra.mxu0 0
    %2127 = vmatprep.subr.bf16.mxu0 0
    %2128 = vmatpush1.bf16.msra.mxu0 0
    %2129 = vmatprep.subr.bf16.mxu0 0
    %2130 = vmatpush1.bf16.msra.mxu0 0
    %2131 = vmatprep.subr.bf16.mxu0 0
    %2132 = vmatpush1.bf16.msra.mxu0 0
    %2133 = vmatprep.subr.bf16.mxu0 0
    %2134 = vmatpush1.bf16.msra.mxu0 0
    %2135 = vmatprep.subr.bf16.mxu0 0
    %2136 = vmatpush1.bf16.msra.mxu0 0
    %2137 = vmatprep.subr.bf16.mxu0 0
    %2138 = vmatpush1.bf16.msra.mxu0 0
    %2139 = vmatprep.subr.bf16.mxu0 0
    %2140 = vmatpush1.bf16.msra.mxu0 0
    %2141 = vmatprep.subr.bf16.mxu0 0
    %2142 = vmatpush1.bf16.msra.mxu0 0
    %2143 = vmatprep.subr.bf16.mxu0 0
    %2144 = vmatpush1.bf16.msra.mxu0 0
    %2145 = vmatprep.subr.bf16.mxu0 0
    %2146 = vmatpush1.bf16.msra.mxu0 0
    %2147 = vmatprep.subr.bf16.mxu0 0
    %2148 = vmatpush1.bf16.msra.mxu0 0
    %2149 = vmatprep.subr.bf16.mxu0 0
    %2150 = vmatpush1.bf16.msra.mxu0 0
    %2151 = vmatprep.subr.bf16.mxu0 0
    %2152 = vmatpush1.bf16.msra.mxu0 0
    %2153 = vmatprep.subr.bf16.mxu0 0
    %2154 = vmatpush1.bf16.msra.mxu0 0
    %2155 = vmatprep.mubr.bf16.mxu0 0
    %2156 = vmatmul.mubr.bf16.gmra.mrb[0].mxu0 %v2118
    %v2157 = vpop.f32.mrb[0].mxu0
    %v2158 = vadd.f32 0.0, %v2157
    %v2159 = vpop.f32.mrb[0].mxu0
    %v2160 = vpop.f32.mrb[0].mxu0
    %v2161 = vpop.f32.mrb[0].mxu0
    %2162 = vdwg.mxu0
    %v2163 = vpack.c.bf16 %v2158, %v2158
    %v2166 = vunpack.c.l.b16 %v2112
    %v2167 = vunpack.c.l.b16 %v2113
    %v2168 = vpack.c.b16 %v2167, %v2166
    %v2171 = vsel %vm591, %v2163, 0
    %2173 = vmatprep.subr.bf16.mxu0 0
    %2174 = vmatpush1.bf16.msra.mxu0 %v2168
    %2175 = vmatprep.subr.bf16.mxu0 0
    %2176 = vmatpush1.bf16.msra.mxu0 0
    %2177 = vmatprep.subr.bf16.mxu0 0
    %2178 = vmatpush1.bf16.msra.mxu0 0
    %2179 = vmatprep.subr.bf16.mxu0 0
    %2180 = vmatpush1.bf16.msra.mxu0 0
    %2181 = vmatprep.subr.bf16.mxu0 0
    %2182 = vmatpush1.bf16.msra.mxu0 0
    %2183 = vmatprep.subr.bf16.mxu0 0
    %2184 = vmatpush1.bf16.msra.mxu0 0
    %2185 = vmatprep.subr.bf16.mxu0 0
    %2186 = vmatpush1.bf16.msra.mxu0 0
    %2187 = vmatprep.subr.bf16.mxu0 0
    %2188 = vmatpush1.bf16.msra.mxu0 0
    %2189 = vmatprep.subr.bf16.mxu0 0
    %2190 = vmatpush1.bf16.msra.mxu0 0
    %2191 = vmatprep.subr.bf16.mxu0 0
    %2192 = vmatpush1.bf16.msra.mxu0 0
    %2193 = vmatprep.subr.bf16.mxu0 0
    %2194 = vmatpush1.bf16.msra.mxu0 0
    %2195 = vmatprep.subr.bf16.mxu0 0
    %2196 = vmatpush1.bf16.msra.mxu0 0
    %2197 = vmatprep.subr.bf16.mxu0 0
    %2198 = vmatpush1.bf16.msra.mxu0 0
    %2199 = vmatprep.subr.bf16.mxu0 0
    %2200 = vmatpush1.bf16.msra.mxu0 0
    %2201 = vmatprep.subr.bf16.mxu0 0
    %2202 = vmatpush1.bf16.msra.mxu0 0
    %2203 = vmatprep.subr.bf16.mxu0 0
    %2204 = vmatpush1.bf16.msra.mxu0 0
    %2205 = vmatprep.mubr.bf16.mxu0 0
    %2206 = vmatmul.mubr.bf16.gmra.mrb[0].mxu0 %v2171
    %v2207 = vpop.f32.mrb[0].mxu0
    %v2208 = vadd.f32 0.0, %v2207
    %v2209 = vpop.f32.mrb[0].mxu0
    %v2210 = vpop.f32.mrb[0].mxu0
    %v2211 = vpop.f32.mrb[0].mxu0
    %2212 = vdwg.mxu0
    %v2213 = vlaneseq
    %v2214 = vshrl.u32 %v2213, 7
    %v2215 = vsub.s32 0, %v2214
    %v2216 = vrot.slane %v2116, %v2215
    %v2217 = vadd.f32 %v2216, %v2208
    %v2219 = vrot.slane %v2110, 4
    %v2221 = vsel %vm792, %v2219, 0
    %v2224 = vsel %vm847, %v1865, 0
    %2226 = vmatprep.subr.bf16.mxu0 0
    %2227 = vmatpush1.bf16.msra.mxu0 %v2224
    %2228 = vmatprep.subr.bf16.mxu0 0
    %2229 = vmatpush1.bf16.msra.mxu0 0
    %2230 = vmatprep.subr.bf16.mxu0 0
    %2231 = vmatpush1.bf16.msra.mxu0 0
    %2232 = vmatprep.subr.bf16.mxu0 0
    %2233 = vmatpush1.bf16.msra.mxu0 0
    %2234 = vmatprep.subr.bf16.mxu0 0
    %2235 = vmatpush1.bf16.msra.mxu0 0
    %2236 = vmatprep.subr.bf16.mxu0 0
    %2237 = vmatpush1.bf16.msra.mxu0 0
    %2238 = vmatprep.subr.bf16.mxu0 0
    %2239 = vmatpush1.bf16.msra.mxu0 0
    %2240 = vmatprep.subr.bf16.mxu0 0
    %2241 = vmatpush1.bf16.msra.mxu0 0
    %2242 = vmatprep.subr.bf16.mxu0 0
    %2243 = vmatpush1.bf16.msra.mxu0 0
    %2244 = vmatprep.subr.bf16.mxu0 0
    %2245 = vmatpush1.bf16.msra.mxu0 0
    %2246 = vmatprep.subr.bf16.mxu0 0
    %2247 = vmatpush1.bf16.msra.mxu0 0
    %2248 = vmatprep.subr.bf16.mxu0 0
    %2249 = vmatpush1.bf16.msra.mxu0 0
    %2250 = vmatprep.subr.bf16.mxu0 0
    %2251 = vmatpush1.bf16.msra.mxu0 0
    %2252 = vmatprep.subr.bf16.mxu0 0
    %2253 = vmatpush1.bf16.msra.mxu0 0
    %2254 = vmatprep.subr.bf16.mxu0 0
    %2255 = vmatpush1.bf16.msra.mxu0 0
    %2256 = vmatprep.subr.bf16.mxu0 0
    %2257 = vmatpush1.bf16.msra.mxu0 0
    %2258 = vmatprep.mubr.bf16.mxu0 0
    %2259 = vmatmul.mubr.bf16.gmra.mrb[0].mxu0 %v2221
    %v2260 = vpop.f32.mrb[0].mxu0
    %v2261 = vadd.f32 0.0, %v2260
    %v2262 = vpop.f32.mrb[0].mxu0
    %v2263 = vpop.f32.mrb[0].mxu0
    %v2264 = vpop.f32.mrb[0].mxu0
    %2265 = vdwg.mxu0
    %v2266 = vpack.c.bf16 %v2261, %v2261
    %v2269 = vunpack.c.l.b16 %v2114
    %v2270 = vunpack.c.l.b16 %v2115
    %v2271 = vpack.c.b16 %v2270, %v2269
    %v2274 = vsel %vm591, %v2266, 0
    %2276 = vmatprep.subr.bf16.mxu0 0
    %2277 = vmatpush1.bf16.msra.mxu0 %v2271
    %2278 = vmatprep.subr.bf16.mxu0 0
    %2279 = vmatpush1.bf16.msra.mxu0 0
    %2280 = vmatprep.subr.bf16.mxu0 0
    %2281 = vmatpush1.bf16.msra.mxu0 0
    %2282 = vmatprep.subr.bf16.mxu0 0
    %2283 = vmatpush1.bf16.msra.mxu0 0
    %2284 = vmatprep.subr.bf16.mxu0 0
    %2285 = vmatpush1.bf16.msra.mxu0 0
    %2286 = vmatprep.subr.bf16.mxu0 0
    %2287 = vmatpush1.bf16.msra.mxu0 0
    %2288 = vmatprep.subr.bf16.mxu0 0
    %2289 = vmatpush1.bf16.msra.mxu0 0
    %2290 = vmatprep.subr.bf16.mxu0 0
    %2291 = vmatpush1.bf16.msra.mxu0 0
    %2292 = vmatprep.subr.bf16.mxu0 0
    %2293 = vmatpush1.bf16.msra.mxu0 0
    %2294 = vmatprep.subr.bf16.mxu0 0
    %2295 = vmatpush1.bf16.msra.mxu0 0
    %2296 = vmatprep.subr.bf16.mxu0 0
    %2297 = vmatpush1.bf16.msra.mxu0 0
    %2298 = vmatprep.subr.bf16.mxu0 0
    %2299 = vmatpush1.bf16.msra.mxu0 0
    %2300 = vmatprep.subr.bf16.mxu0 0
    %2301 = vmatpush1.bf16.msra.mxu0 0
    %2302 = vmatprep.subr.bf16.mxu0 0
    %2303 = vmatpush1.bf16.msra.mxu0 0
    %2304 = vmatprep.subr.bf16.mxu0 0
    %2305 = vmatpush1.bf16.msra.mxu0 0
    %2306 = vmatprep.subr.bf16.mxu0 0
    %2307 = vmatpush1.bf16.msra.mxu0 0
    %2308 = vmatprep.mubr.bf16.mxu0 0
    %2309 = vmatmul.mubr.bf16.gmra.mrb[0].mxu0 %v2274
    %v2310 = vpop.f32.mrb[0].mxu0
    %v2311 = vadd.f32 0.0, %v2310
    %v2312 = vpop.f32.mrb[0].mxu0
    %v2313 = vpop.f32.mrb[0].mxu0
    %v2314 = vpop.f32.mrb[0].mxu0
    %2315 = vdwg.mxu0
    %v2316 = vadd.f32 %v2217, %v2311
    %v2318 = vrot.slane %v1676, 4
    %v2320 = vsel %vm792, %v2111, 0
    %v2323 = vsel %vm847, %v2318, 0
    %2325 = vmatprep.subr.bf16.mxu0 0
    %2326 = vmatpush1.bf16.msra.mxu0 %v2323
    %2327 = vmatprep.subr.bf16.mxu0 0
    %2328 = vmatpush1.bf16.msra.mxu0 0
    %2329 = vmatprep.subr.bf16.mxu0 0
    %2330 = vmatpush1.bf16.msra.mxu0 0
    %2331 = vmatprep.subr.bf16.mxu0 0
    %2332 = vmatpush1.bf16.msra.mxu0 0
    %2333 = vmatprep.subr.bf16.mxu0 0
    %2334 = vmatpush1.bf16.msra.mxu0 0
    %2335 = vmatprep.subr.bf16.mxu0 0
    %2336 = vmatpush1.bf16.msra.mxu0 0
    %2337 = vmatprep.subr.bf16.mxu0 0
    %2338 = vmatpush1.bf16.msra.mxu0 0
    %2339 = vmatprep.subr.bf16.mxu0 0
    %2340 = vmatpush1.bf16.msra.mxu0 0
    %2341 = vmatprep.subr.bf16.mxu0 0
    %2342 = vmatpush1.bf16.msra.mxu0 0
    %2343 = vmatprep.subr.bf16.mxu0 0
    %2344 = vmatpush1.bf16.msra.mxu0 0
    %2345 = vmatprep.subr.bf16.mxu0 0
    %2346 = vmatpush1.bf16.msra.mxu0 0
    %2347 = vmatprep.subr.bf16.mxu0 0
    %2348 = vmatpush1.bf16.msra.mxu0 0
    %2349 = vmatprep.subr.bf16.mxu0 0
    %2350 = vmatpush1.bf16.msra.mxu0 0
    %2351 = vmatprep.subr.bf16.mxu0 0
    %2352 = vmatpush1.bf16.msra.mxu0 0
    %2353 = vmatprep.subr.bf16.mxu0 0
    %2354 = vmatpush1.bf16.msra.mxu0 0
    %2355 = vmatprep.subr.bf16.mxu0 0
    %2356 = vmatpush1.bf16.msra.mxu0 0
    %2357 = vmatprep.mubr.bf16.mxu0 0
    %2358 = vmatmul.mubr.bf16.gmra.mrb[0].mxu0 %v2320
    %v2359 = vpop.f32.mrb[0].mxu0
    %v2360 = vadd.f32 0.0, %v2359
    %v2361 = vpop.f32.mrb[0].mxu0
    %v2362 = vpop.f32.mrb[0].mxu0
    %v2363 = vpop.f32.mrb[0].mxu0
    %2364 = vdwg.mxu0
    %v2365 = vpack.c.bf16 %v2360, %v2360
    %v2367 = vsel %vm591, %v2365, 0
    %2369 = vmatprep.subr.bf16.mxu0 0
    %2370 = vmatpush1.bf16.msra.mxu0 %v2168
    %2371 = vmatprep.subr.bf16.mxu0 0
    %2372 = vmatpush1.bf16.msra.mxu0 0
    %2373 = vmatprep.subr.bf16.mxu0 0
    %2374 = vmatpush1.bf16.msra.mxu0 0
    %2375 = vmatprep.subr.bf16.mxu0 0
    %2376 = vmatpush1.bf16.msra.mxu0 0
    %2377 = vmatprep.subr.bf16.mxu0 0
    %2378 = vmatpush1.bf16.msra.mxu0 0
    %2379 = vmatprep.subr.bf16.mxu0 0
    %2380 = vmatpush1.bf16.msra.mxu0 0
    %2381 = vmatprep.subr.bf16.mxu0 0
    %2382 = vmatpush1.bf16.msra.mxu0 0
    %2383 = vmatprep.subr.bf16.mxu0 0
    %2384 = vmatpush1.bf16.msra.mxu0 0
    %2385 = vmatprep.subr.bf16.mxu0 0
    %2386 = vmatpush1.bf16.msra.mxu0 0
    %2387 = vmatprep.subr.bf16.mxu0 0
    %2388 = vmatpush1.bf16.msra.mxu0 0
    %2389 = vmatprep.subr.bf16.mxu0 0
    %2390 = vmatpush1.bf16.msra.mxu0 0
    %2391 = vmatprep.subr.bf16.mxu0 0
    %2392 = vmatpush1.bf16.msra.mxu0 0
    %2393 = vmatprep.subr.bf16.mxu0 0
    %2394 = vmatpush1.bf16.msra.mxu0 0
    %2395 = vmatprep.subr.bf16.mxu0 0
    %2396 = vmatpush1.bf16.msra.mxu0 0
    %2397 = vmatprep.subr.bf16.mxu0 0
    %2398 = vmatpush1.bf16.msra.mxu0 0
    %2399 = vmatprep.subr.bf16.mxu0 0
    %2400 = vmatpush1.bf16.msra.mxu0 0
    %2401 = vmatprep.mubr.bf16.mxu0 0
    %2402 = vmatmul.mubr.bf16.gmra.mrb[0].mxu0 %v2367
    %v2403 = vpop.f32.mrb[0].mxu0
    %v2404 = vadd.f32 0.0, %v2403
    %v2405 = vpop.f32.mrb[0].mxu0
    %v2406 = vpop.f32.mrb[0].mxu0
    %v2407 = vpop.f32.mrb[0].mxu0
    %2408 = vdwg.mxu0
    %v2409 = vadd.f32 %v2216, %v2404
    %v2411 = vrot.slane %v2111, 4
    %v2413 = vrot.slane %v1865, 4
    %v2415 = vsel %vm792, %v2411, 0
    %v2418 = vsel %vm847, %v2413, 0
    %2420 = vmatprep.subr.bf16.mxu0 0
    %2421 = vmatpush1.bf16.msra.mxu0 %v2418
    %2422 = vmatprep.subr.bf16.mxu0 0
    %2423 = vmatpush1.bf16.msra.mxu0 0
    %2424 = vmatprep.subr.bf16.mxu0 0
    %2425 = vmatpush1.bf16.msra.mxu0 0
    %2426 = vmatprep.subr.bf16.mxu0 0
    %2427 = vmatpush1.bf16.msra.mxu0 0
    %2428 = vmatprep.subr.bf16.mxu0 0
    %2429 = vmatpush1.bf16.msra.mxu0 0
    %2430 = vmatprep.subr.bf16.mxu0 0
    %2431 = vmatpush1.bf16.msra.mxu0 0
    %2432 = vmatprep.subr.bf16.mxu0 0
    %2433 = vmatpush1.bf16.msra.mxu0 0
    %2434 = vmatprep.subr.bf16.mxu0 0
    %2435 = vmatpush1.bf16.msra.mxu0 0
    %2436 = vmatprep.subr.bf16.mxu0 0
    %2437 = vmatpush1.bf16.msra.mxu0 0
    %2438 = vmatprep.subr.bf16.mxu0 0
    %2439 = vmatpush1.bf16.msra.mxu0 0
    %2440 = vmatprep.subr.bf16.mxu0 0
    %2441 = vmatpush1.bf16.msra.mxu0 0
    %2442 = vmatprep.subr.bf16.mxu0 0
    %2443 = vmatpush1.bf16.msra.mxu0 0
    %2444 = vmatprep.subr.bf16.mxu0 0
    %2445 = vmatpush1.bf16.msra.mxu0 0
    %2446 = vmatprep.subr.bf16.mxu0 0
    %2447 = vmatpush1.bf16.msra.mxu0 0
    %2448 = vmatprep.subr.bf16.mxu0 0
    %2449 = vmatpush1.bf16.msra.mxu0 0
    %2450 = vmatprep.subr.bf16.mxu0 0
    %2451 = vmatpush1.bf16.msra.mxu0 0
    %2452 = vmatprep.mubr.bf16.mxu0 0
    %2453 = vmatmul.mubr.bf16.gmra.mrb[0].mxu0 %v2415
    %v2454 = vpop.f32.mrb[0].mxu0
    %v2455 = vadd.f32 0.0, %v2454
    %v2456 = vpop.f32.mrb[0].mxu0
    %v2457 = vpop.f32.mrb[0].mxu0
    %v2458 = vpop.f32.mrb[0].mxu0
    %2459 = vdwg.mxu0
    %v2460 = vpack.c.bf16 %v2455, %v2455
    %v2462 = vsel %vm591, %v2460, 0
    %2464 = vmatprep.subr.bf16.mxu0 0
    %2465 = vmatpush1.bf16.msra.mxu0 %v2271
    %2466 = vmatprep.subr.bf16.mxu0 0
    %2467 = vmatpush1.bf16.msra.mxu0 0
    %2468 = vmatprep.subr.bf16.mxu0 0
    %2469 = vmatpush1.bf16.msra.mxu0 0
    %2470 = vmatprep.subr.bf16.mxu0 0
    %2471 = vmatpush1.bf16.msra.mxu0 0
    %2472 = vmatprep.subr.bf16.mxu0 0
    %2473 = vmatpush1.bf16.msra.mxu0 0
    %2474 = vmatprep.subr.bf16.mxu0 0
    %2475 = vmatpush1.bf16.msra.mxu0 0
    %2476 = vmatprep.subr.bf16.mxu0 0
    %2477 = vmatpush1.bf16.msra.mxu0 0
    %2478 = vmatprep.subr.bf16.mxu0 0
    %2479 = vmatpush1.bf16.msra.mxu0 0
    %2480 = vmatprep.subr.bf16.mxu0 0
    %2481 = vmatpush1.bf16.msra.mxu0 0
    %2482 = vmatprep.subr.bf16.mxu0 0
    %2483 = vmatpush1.bf16.msra.mxu0 0
    %2484 = vmatprep.subr.bf16.mxu0 0
    %2485 = vmatpush1.bf16.msra.mxu0 0
    %2486 = vmatprep.subr.bf16.mxu0 0
    %2487 = vmatpush1.bf16.msra.mxu0 0
    %2488 = vmatprep.subr.bf16.mxu0 0
    %2489 = vmatpush1.bf16.msra.mxu0 0
    %2490 = vmatprep.subr.bf16.mxu0 0
    %2491 = vmatpush1.bf16.msra.mxu0 0
    %2492 = vmatprep.subr.bf16.mxu0 0
    %2493 = vmatpush1.bf16.msra.mxu0 0
    %2494 = vmatprep.subr.bf16.mxu0 0
    %2495 = vmatpush1.bf16.msra.mxu0 0
    %2496 = vmatprep.mubr.bf16.mxu0 0
    %2497 = vmatmul.mubr.bf16.gmra.mrb[0].mxu0 %v2462
    %v2498 = vpop.f32.mrb[0].mxu0
    %v2499 = vadd.f32 0.0, %v2498
    %v2500 = vpop.f32.mrb[0].mxu0
    %v2501 = vpop.f32.mrb[0].mxu0
    %v2502 = vpop.f32.mrb[0].mxu0
    %2503 = vdwg.mxu0
    %v2504 = vadd.f32 %v2409, %v2499
    %v2505 = vadd.f32 %v2316, %v1482
    %v2506 = vadd.f32 %v2504, %v1483
    %v2507 = vld [vmem:[#allocation5 + $0x4e] sm:$0x1]
    %v2508 = vld [vmem:[#allocation5 + $0x4f] sm:$0x1]
    %v2509 = vsel %vm69, %v2505, 0.0
    %2510 = vadd.xlane.f32.xlu0 %v2509
    %v2511 = vpop.xlane.xlu0 %2510
    %v2512 = vsel %vm69, %v2506, 0.0
    %2513 = vadd.xlane.f32.xlu0 %v2512
    %v2514 = vpop.xlane.xlu0 %2513
    %v2515 = vmul.f32 %v2511, %v165
    %v2516 = vmul.f32 %v2514, %v165
    %v2517 = vsub.f32 %v2505, %v2515
    %v2518 = vsub.f32 %v2506, %v2516
    %v2519 = vmul.f32 %v2517, %v2517
    %v2520 = vmul.f32 %v2518, %v2518
    %v2521 = vsel %vm69, %v2519, 0.0
    %2522 = vadd.xlane.f32.xlu0 %v2521
    %v2523 = vpop.xlane.xlu0 %2522
    %v2524 = vsel %vm69, %v2520, 0.0
    %2525 = vadd.xlane.f32.xlu0 %v2524
    %v2526 = vpop.xlane.xlu0 %2525
    %v2527 = vmul.f32 %v2523, %v165
    %v2528 = vmul.f32 %v2526, %v165
    %v2529 = vadd.f32 %v2527, 1e-12
    %v2530 = vadd.f32 %v2528, 1e-12
    %v2531 = vrsqrt.pop %v2529
    %v2532 = vrsqrt.pop %v2530
    %v2533 = vmul.f32 %v2517, %v2531
    %v2534 = vmul.f32 %v2518, %v2532
    %v2535 = vlaneseq
    %v2536 = vshrl.u32 %v2535, 7
    %v2537 = vsub.s32 0, %v2536
    %v2538 = vrot.slane %v2507, %v2537
    %v2539 = vmul.f32 %v2533, %v2538
    %v2540 = vmul.f32 %v2534, %v2538
    %v2541 = vlaneseq
    %v2542 = vshrl.u32 %v2541, 7
    %v2543 = vsub.s32 0, %v2542
    %v2544 = vrot.slane %v2508, %v2543
    %v2545 = vadd.f32 %v2539, %v2544
    %v2546 = vadd.f32 %v2540, %v2544
    %v2547 = vpack.c.bf16 %v2546, %v2545
    %v2548 = vld [vmem:[#allocation2 + $0x110] sm:$0xf]
    %v2549 = vld [vmem:[#allocation2 + $0x114] sm:$0xf]
    %v2550 = vld [vmem:[#allocation2 + $0x118] sm:$0xf]
    %v2551 = vld [vmem:[#allocation2 + $0x11c] sm:$0xf]
    %v2552 = vld [vmem:[#allocation5 + $0x50] sm:$0x1]
    %v2553 = vlaneseq
    %v2554 = vshrl.u32 %v2553, 7
    %v2555 = vsub.s32 0, %v2554
    %v2556 = vrot.slane %v2552, %v2555
    %v2561 = vunpack.c.l.b16 %v2548
    %v2562 = vunpack.c.l.b16 %v2549
    %v2563 = vunpack.c.l.b16 %v2550
    %v2564 = vunpack.c.l.b16 %v2551
    %v2565 = vpack.c.b16 %v2562, %v2561
    %v2566 = vpack.c.b16 %v2564, %v2563
    %v2570 = vsel %vm69, %v2547, 0
    %2572 = vmatprep.subr.bf16.mxu0 0
    %2573 = vmatpush1.bf16.msra.mxu0 %v2565
    %2574 = vmatprep.subr.bf16.mxu0 0
    %2575 = vmatpush1.bf16.msra.mxu0 %v2566
    %2576 = vmatprep.subr.bf16.mxu0 0
    %2577 = vmatpush1.bf16.msra.mxu0 0
    %2578 = vmatprep.subr.bf16.mxu0 0
    %2579 = vmatpush1.bf16.msra.mxu0 0
    %2580 = vmatprep.subr.bf16.mxu0 0
    %2581 = vmatpush1.bf16.msra.mxu0 0
    %2582 = vmatprep.subr.bf16.mxu0 0
    %2583 = vmatpush1.bf16.msra.mxu0 0
    %2584 = vmatprep.subr.bf16.mxu0 0
    %2585 = vmatpush1.bf16.msra.mxu0 0
    %2586 = vmatprep.subr.bf16.mxu0 0
    %2587 = vmatpush1.bf16.msra.mxu0 0
    %2588 = vmatprep.subr.bf16.mxu0 0
    %2589 = vmatpush1.bf16.msra.mxu0 0
    %2590 = vmatprep.subr.bf16.mxu0 0
    %2591 = vmatpush1.bf16.msra.mxu0 0
    %2592 = vmatprep.subr.bf16.mxu0 0
    %2593 = vmatpush1.bf16.msra.mxu0 0
    %2594 = vmatprep.subr.bf16.mxu0 0
    %2595 = vmatpush1.bf16.msra.mxu0 0
    %2596 = vmatprep.subr.bf16.mxu0 0
    %2597 = vmatpush1.bf16.msra.mxu0 0
    %2598 = vmatprep.subr.bf16.mxu0 0
    %2599 = vmatpush1.bf16.msra.mxu0 0
    %2600 = vmatprep.subr.bf16.mxu0 0
    %2601 = vmatpush1.bf16.msra.mxu0 0
    %2602 = vmatprep.subr.bf16.mxu0 0
    %2603 = vmatpush1.bf16.msra.mxu0 0
    %2604 = vmatprep.mubr.bf16.mxu0 0
    %2605 = vmatmul.mubr.bf16.gmra.mrb[0].mxu0 %v2570
    %v2606 = vpop.f32.mrb[0].mxu0
    %v2607 = vadd.f32 %v2556, %v2606
    %v2608 = vpop.f32.mrb[0].mxu0
    %v2609 = vpop.f32.mrb[0].mxu0
    %v2610 = vadd.f32 %v2556, %v2609
    %v2611 = vpop.f32.mrb[0].mxu0
    %2612 = vdwg.mxu0
    %v2613 = vmul.f32 %v2607, 0.5
    %v2614 = vmul.f32 %v2610, 0.5
    %v2615 = vmul.f32 %v2607, 0.044715
    %v2616 = vmul.f32 %v2610, 0.044715
    %v2617 = vmul.f32 %v2615, %v2607
    %v2618 = vmul.f32 %v2616, %v2610
    %v2619 = vmul.f32 %v2617, %v2607
    %v2620 = vmul.f32 %v2618, %v2610
    %v2621 = vadd.f32 %v2607, %v2619
    %v2622 = vadd.f32 %v2610, %v2620
    %v2623 = vmul.f32 %v2621, 0.7978846
    %v2624 = vmul.f32 %v2622, 0.7978846
    %v2625 = vtanh.pop %v2623
    %v2626 = vtanh.pop %v2624
    %v2627 = vadd.f32 %v2625, 1.0
    %v2628 = vadd.f32 %v2626, 1.0
    %v2629 = vmul.f32 %v2613, %v2627
    %v2630 = vmul.f32 %v2614, %v2628
    %v2631 = vpack.c.bf16 %v2630, %v2629
    %v2632 = vld [vmem:[#allocation2 + $0x120] sm:$0xf]
    %v2633 = vld [vmem:[#allocation2 + $0x124] sm:$0xf]
    %v2634 = vld [vmem:[#allocation2 + $0x128] sm:$0xf]
    %v2635 = vld [vmem:[#allocation2 + $0x12c] sm:$0xf]
    %v2636 = vld [vmem:[#allocation2 + $0x130] sm:$0xf]
    %v2637 = vld [vmem:[#allocation2 + $0x134] sm:$0xf]
    %v2638 = vld [vmem:[#allocation2 + $0x138] sm:$0xf]
    %v2639 = vld [vmem:[#allocation2 + $0x13c] sm:$0xf]
    %v2640 = vld [vmem:[#allocation5 + $0x51] sm:$0x1]
    %v2641 = vlaneseq
    %v2642 = vshrl.u32 %v2641, 7
    %v2643 = vsub.s32 0, %v2642
    %v2644 = vrot.slane %v2640, %v2643
    %v2653 = vunpack.c.l.b16 %v2632
    %v2654 = vunpack.c.l.b16 %v2633
    %v2655 = vunpack.c.l.b16 %v2634
    %v2656 = vunpack.c.l.b16 %v2635
    %v2657 = vunpack.c.l.b16 %v2636
    %v2658 = vunpack.c.l.b16 %v2637
    %v2659 = vunpack.c.l.b16 %v2638
    %v2660 = vunpack.c.l.b16 %v2639
    %v2661 = vpack.c.b16 %v2654, %v2653
    %v2662 = vpack.c.b16 %v2656, %v2655
    %v2663 = vpack.c.b16 %v2658, %v2657
    %v2664 = vpack.c.b16 %v2660, %v2659
    %v2670 = vsel %vm1397, %v2631, 0
    %2672 = vmatprep.subr.bf16.mxu0 0
    %2673 = vmatpush1.bf16.msra.mxu0 %v2661
    %2674 = vmatprep.subr.bf16.mxu0 0
    %2675 = vmatpush1.bf16.msra.mxu0 %v2662
    %2676 = vmatprep.subr.bf16.mxu0 0
    %2677 = vmatpush1.bf16.msra.mxu0 %v2663
    %2678 = vmatprep.subr.bf16.mxu0 0
    %2679 = vmatpush1.bf16.msra.mxu0 %v2664
    %2680 = vmatprep.subr.bf16.mxu0 0
    %2681 = vmatpush1.bf16.msra.mxu0 0
    %2682 = vmatprep.subr.bf16.mxu0 0
    %2683 = vmatpush1.bf16.msra.mxu0 0
    %2684 = vmatprep.subr.bf16.mxu0 0
    %2685 = vmatpush1.bf16.msra.mxu0 0
    %2686 = vmatprep.subr.bf16.mxu0 0
    %2687 = vmatpush1.bf16.msra.mxu0 0
    %2688 = vmatprep.subr.bf16.mxu0 0
    %2689 = vmatpush1.bf16.msra.mxu0 0
    %2690 = vmatprep.subr.bf16.mxu0 0
    %2691 = vmatpush1.bf16.msra.mxu0 0
    %2692 = vmatprep.subr.bf16.mxu0 0
    %2693 = vmatpush1.bf16.msra.mxu0 0
    %2694 = vmatprep.subr.bf16.mxu0 0
    %2695 = vmatpush1.bf16.msra.mxu0 0
    %2696 = vmatprep.subr.bf16.mxu0 0
    %2697 = vmatpush1.bf16.msra.mxu0 0
    %2698 = vmatprep.subr.bf16.mxu0 0
    %2699 = vmatpush1.bf16.msra.mxu0 0
    %2700 = vmatprep.subr.bf16.mxu0 0
    %2701 = vmatpush1.bf16.msra.mxu0 0
    %2702 = vmatprep.subr.bf16.mxu0 0
    %2703 = vmatpush1.bf16.msra.mxu0 0
    %2704 = vmatprep.mubr.bf16.mxu0 0
    %2705 = vmatmul.mubr.bf16.gmra.mrb[0].mxu0 %v2670
    %v2706 = vpop.f32.mrb[0].mxu0
    %v2707 = vadd.f32 %v2644, %v2706
    %v2708 = vpop.f32.mrb[0].mxu0
    %v2709 = vpop.f32.mrb[0].mxu0
    %v2710 = vadd.f32 %v2644, %v2709
    %v2711 = vpop.f32.mrb[0].mxu0
    %2712 = vdwg.mxu0
    %v2713 = vadd.f32 %v2707, %v2545
    %v2714 = vadd.f32 %v2710, %v2546
    %v2715 = vld [vmem:[#allocation5 + $0x52] sm:$0x1]
    %v2716 = vld [vmem:[#allocation5 + $0x53] sm:$0x1]
    %v2717 = vsel %vm69, %v2713, 0.0
    %2718 = vadd.xlane.f32.xlu0 %v2717
    %v2719 = vpop.xlane.xlu0 %2718
    %v2720 = vsel %vm69, %v2714, 0.0
    %2721 = vadd.xlane.f32.xlu0 %v2720
    %v2722 = vpop.xlane.xlu0 %2721
    %v2723 = vmul.f32 %v2719, %v165
    %v2724 = vmul.f32 %v2722, %v165
    %v2725 = vsub.f32 %v2713, %v2723
    %v2726 = vsub.f32 %v2714, %v2724
    %v2727 = vmul.f32 %v2725, %v2725
    %v2728 = vmul.f32 %v2726, %v2726
    %v2729 = vsel %vm69, %v2727, 0.0
    %2730 = vadd.xlane.f32.xlu0 %v2729
    %v2731 = vpop.xlane.xlu0 %2730
    %v2732 = vsel %vm69, %v2728, 0.0
    %2733 = vadd.xlane.f32.xlu0 %v2732
    %v2734 = vpop.xlane.xlu0 %2733
    %v2735 = vmul.f32 %v2731, %v165
    %v2736 = vmul.f32 %v2734, %v165
    %v2737 = vadd.f32 %v2735, 1e-12
    %v2738 = vadd.f32 %v2736, 1e-12
    %v2739 = vrsqrt.pop %v2737
    %v2740 = vrsqrt.pop %v2738
    %v2741 = vmul.f32 %v2725, %v2739
    %v2742 = vmul.f32 %v2726, %v2740
    %v2743 = vlaneseq
    %v2744 = vshrl.u32 %v2743, 7
    %v2745 = vsub.s32 0, %v2744
    %v2746 = vrot.slane %v2715, %v2745
    %v2747 = vmul.f32 %v2741, %v2746
    %v2748 = vmul.f32 %v2742, %v2746
    %v2749 = vlaneseq
    %v2750 = vshrl.u32 %v2749, 7
    %v2751 = vsub.s32 0, %v2750
    %v2752 = vrot.slane %v2716, %v2751
    %v2753 = vadd.f32 %v2747, %v2752
    %v2754 = vadd.f32 %v2748, %v2752
    %v2756 = vrot.slane %v2754, 7
    %vm2758 = vcmask 1040384
    %v2759 = vsel %vm2758, %v2753, %v2756
    %v2760 = vpack.c.bf16 %v2759, %v2759
    %v2761 = vld [vmem:[#allocation2 + $0x140] sm:$0xf]
    %v2762 = vld [vmem:[#allocation2 + $0x144] sm:$0xf]
    %v2763 = vld [vmem:[#allocation2 + $0x148] sm:$0xf]
    %v2764 = vld [vmem:[#allocation2 + $0x14c] sm:$0xf]
    %v2765 = vld [vmem:[#allocation5 + $0x54] sm:$0x1]
    %v2766 = vlaneseq
    %v2767 = vshrl.u32 %v2766, 7
    %v2768 = vsub.s32 0, %v2767
    %v2769 = vrot.slane %v2765, %v2768
    %v2774 = vunpack.c.l.b16 %v2761
    %v2775 = vunpack.c.l.b16 %v2762
    %v2776 = vunpack.c.l.b16 %v2763
    %v2777 = vunpack.c.l.b16 %v2764
    %v2778 = vpack.c.b16 %v2775, %v2774
    %v2779 = vpack.c.b16 %v2777, %v2776
    %v2783 = vsel %vm69, %v2760, 0
    %2785 = vmatprep.subr.bf16.mxu0 0
    %2786 = vmatpush1.bf16.msra.mxu0 %v2778
    %2787 = vmatprep.subr.bf16.mxu0 0
    %2788 = vmatpush1.bf16.msra.mxu0 %v2779
    %2789 = vmatprep.subr.bf16.mxu0 0
    %2790 = vmatpush1.bf16.msra.mxu0 0
    %2791 = vmatprep.subr.bf16.mxu0 0
    %2792 = vmatpush1.bf16.msra.mxu0 0
    %2793 = vmatprep.subr.bf16.mxu0 0
    %2794 = vmatpush1.bf16.msra.mxu0 0
    %2795 = vmatprep.subr.bf16.mxu0 0
    %2796 = vmatpush1.bf16.msra.mxu0 0
    %2797 = vmatprep.subr.bf16.mxu0 0
    %2798 = vmatpush1.bf16.msra.mxu0 0
    %2799 = vmatprep.subr.bf16.mxu0 0
    %2800 = vmatpush1.bf16.msra.mxu0 0
    %2801 = vmatprep.subr.bf16.mxu0 0
    %2802 = vmatpush1.bf16.msra.mxu0 0
    %2803 = vmatprep.subr.bf16.mxu0 0
    %2804 = vmatpush1.bf16.msra.mxu0 0
    %2805 = vmatprep.subr.bf16.mxu0 0
    %2806 = vmatpush1.bf16.msra.mxu0 0
    %2807 = vmatprep.subr.bf16.mxu0 0
    %2808 = vmatpush1.bf16.msra.mxu0 0
    %2809 = vmatprep.subr.bf16.mxu0 0
    %2810 = vmatpush1.bf16.msra.mxu0 0
    %2811 = vmatprep.subr.bf16.mxu0 0
    %2812 = vmatpush1.bf16.msra.mxu0 0
    %2813 = vmatprep.subr.bf16.mxu0 0
    %2814 = vmatpush1.bf16.msra.mxu0 0
    %2815 = vmatprep.subr.bf16.mxu0 0
    %2816 = vmatpush1.bf16.msra.mxu0 0
    %2817 = vmatprep.mubr.bf16.mxu0 0
    %2818 = vmatmul.mubr.bf16.gmra.mrb[0].mxu0 %v2783
    %v2819 = vpop.f32.mrb[0].mxu0
    %v2820 = vadd.f32 %v2769, %v2819
    %v2821 = vpop.f32.mrb[0].mxu0
    %v2822 = vpop.f32.mrb[0].mxu0
    %v2823 = vpop.f32.mrb[0].mxu0
    %2824 = vdwg.mxu0
    %v2825 = vtanh.pop %v2820
    %v2826 = vpack.c.bf16 %v2825, %v2825
    %v2827 = vld [vmem:[#allocation2 + $0x150] sm:$0xf]
    %v2828 = vld [vmem:[#allocation2 + $0x154] sm:$0xf]
    %v2829 = vld [vmem:[#allocation2 + $0x158] sm:$0xf]
    %v2830 = vld [vmem:[#allocation2 + $0x15c] sm:$0xf]
    %v2831 = vld [vmem:[#allocation5 + $0x55] sm:$0x1]
    %v2832 = vlaneseq
    %v2833 = vshrl.u32 %v2832, 7
    %v2834 = vsub.s32 0, %v2833
    %v2835 = vrot.slane %v2831, %v2834
    %v2840 = vunpack.c.l.b16 %v2827
    %v2841 = vunpack.c.l.b16 %v2828
    %v2842 = vunpack.c.l.b16 %v2829
    %v2843 = vunpack.c.l.b16 %v2830
    %v2844 = vpack.c.b16 %v2841, %v2840
    %v2845 = vpack.c.b16 %v2843, %v2842
    %v2849 = vsel %vm69, %v2826, 0
    %2851 = vmatprep.subr.bf16.mxu0 0
    %2852 = vmatpush1.bf16.msra.mxu0 %v2844
    %2853 = vmatprep.subr.bf16.mxu0 0
    %2854 = vmatpush1.bf16.msra.mxu0 %v2845
    %2855 = vmatprep.subr.bf16.mxu0 0
    %2856 = vmatpush1.bf16.msra.mxu0 0
    %2857 = vmatprep.subr.bf16.mxu0 0
    %2858 = vmatpush1.bf16.msra.mxu0 0
    %2859 = vmatprep.subr.bf16.mxu0 0
    %2860 = vmatpush1.bf16.msra.mxu0 0
    %2861 = vmatprep.subr.bf16.mxu0 0
    %2862 = vmatpush1.bf16.msra.mxu0 0
    %2863 = vmatprep.subr.bf16.mxu0 0
    %2864 = vmatpush1.bf16.msra.mxu0 0
    %2865 = vmatprep.subr.bf16.mxu0 0
    %2866 = vmatpush1.bf16.msra.mxu0 0
    %2867 = vmatprep.subr.bf16.mxu0 0
    %2868 = vmatpush1.bf16.msra.mxu0 0
    %2869 = vmatprep.subr.bf16.mxu0 0
    %2870 = vmatpush1.bf16.msra.mxu0 0
    %2871 = vmatprep.subr.bf16.mxu0 0
    %2872 = vmatpush1.bf16.msra.mxu0 0
    %2873 = vmatprep.subr.bf16.mxu0 0
    %2874 = vmatpush1.bf16.msra.mxu0 0
    %2875 = vmatprep.subr.bf16.mxu0 0
    %2876 = vmatpush1.bf16.msra.mxu0 0
    %2877 = vmatprep.subr.bf16.mxu0 0
    %2878 = vmatpush1.bf16.msra.mxu0 0
    %2879 = vmatprep.subr.bf16.mxu0 0
    %2880 = vmatpush1.bf16.msra.mxu0 0
    %2881 = vmatprep.subr.bf16.mxu0 0
    %2882 = vmatpush1.bf16.msra.mxu0 0
    %2883 = vmatprep.mubr.bf16.mxu0 0
    %2884 = vmatmul.mubr.bf16.gmra.mrb[0].mxu0 %v2849
    %v2885 = vpop.f32.mrb[0].mxu0
    %v2886 = vadd.f32 %v2835, %v2885
    %v2887 = vpop.f32.mrb[0].mxu0
    %v2888 = vpop.f32.mrb[0].mxu0
    %v2889 = vpop.f32.mrb[0].mxu0
    %2890 = vdwg.mxu0
    %2891 = vst [vmem:[#allocation7] sm:$0x3] %v2886
    // Predicated region
    $region22: #{forward.1} parent=1 // pred_check
      _
    $region23: #{forward.1} parent=1 // pred_check_branch
      %2893 = sbr.rel (0) target = $region25
    $region24: #{forward.1} parent=1 // pred_region
      %s2895 = ssub.s32 32, 32
      %2896 = vsyncadd [#allocation4], %s2895
      %s2898 = sshll.u32 [#allocation7], 4
      %s2899 = int_to_ptr.vmem [resolvable:$true] %s2898
      %2901 = dma.vmem_to_hbm [thread:$0]  %s2899, 32, %s3, [#allocation4]
    $region25: #{forward.1} parent=1 // pred_fallthru
      _
    // Predicated region
    $region26: #{forward.1} parent=1 // pred_check
      _
    $region27: #{forward.1} parent=1 // pred_check_branch
      %2903 = sbr.rel (0) target = $region29
    $region28: #{forward.1} parent=1 // pred_region
      %2904 = dma.done [#allocation4], 32
    $region29: #{forward.1} parent=1 // pred_fallthru
      _
    %2905 = vsyncpa [#allocation3], 1
    %2906 = vsyncpa [#allocation6], 1
    %2907 = vsyncpa [#allocation4], 1

</llo_original>
